<compile_context>
chip_gen: v7x
topology: tpu7x:2x2x1
jax: 0.10.0
libtpu: 0.0.40
codegen_flags: <defaults>
</compile_context>

<pallas_src>
import functools

import jax
import jax.numpy as jnp
import numpy as np
from jax import lax
from jax.experimental import pallas as pl
from jax.experimental.pallas import tpu as pltpu


# ----------------------------------------------------------------------------
# Fused Pallas kernel: one batch element per grid step; all layers in VMEM.
# ----------------------------------------------------------------------------
def _cnn_fused_kernel(x_ref, w1_ref, b1_ref, w2_ref, b2_ref, w3t_ref, b3_ref,
                      out_ref):
    # x_ref  : (1, H, W, Cin)        f32   input tile (NHWC)
    # w1_ref : (9*Cin, width)        bf16  im2col weight, layer 1
    # b1_ref : (1, width)            f32
    # w2_ref : (9*width, width)      bf16  im2col weight, layer 2
    # b2_ref : (1, width)            f32
    # w3t_ref: (Cout, 9*width)       bf16  im2col weight, layer 3 (transposed)
    # b3_ref : (Cout, 1)             f32
    # out_ref: (1, Cout, H*W)        f32   lane-dense output (H*W multiple of 128)
    _, H, W, _ = x_ref.shape

    def pad_replicate(a):
        # (H, W, C) -> (H+2, W+2, C), 1-pixel edge replication, in VMEM.
        a = jnp.concatenate([a[0:1], a, a[H - 1:H]], axis=0)
        a = jnp.concatenate([a[:, 0:1], a, a[:, W - 1:W]], axis=1)
        return a

    def im2col_3x3(a):
        # (H, W, C) -> (H*W, 9*C) column matrix for a 3x3 stencil.
        # Column order: k = dx*(3*C) + dy*C + c  (matches the wrapper's weight
        # flattening).  Built with two channel-axis concatenations so the
        # flatten to (H*W, 9*C) only merges leading dims (layout-preserving).
        ap = pad_replicate(a)                                   # (H+2, W+2, C)
        rows = jnp.concatenate([ap[dy:dy + H] for dy in range(3)], axis=2)
        cols = jnp.concatenate([rows[:, dx:dx + W] for dx in range(3)], axis=2)
        return cols.reshape(H * W, cols.shape[-1])

    # ---- Layer 1: conv3x3 + ReLU ------------------------------------------
    col1 = im2col_3x3(x_ref[0]).astype(jnp.bfloat16)            # (HW, 9*Cin)
    y1 = jnp.dot(col1, w1_ref[...], preferred_element_type=jnp.float32)
    y1 = jnp.maximum(y1 + b1_ref[...], 0.0)                     # (HW, width) f32

    width = y1.shape[-1]

    # ---- Layer 2: conv3x3 + ReLU ------------------------------------------
    col2 = im2col_3x3(y1.reshape(H, W, width)).astype(jnp.bfloat16)
    y2 = jnp.dot(col2, w2_ref[...], preferred_element_type=jnp.float32)
    y2 = jnp.maximum(y2 + b2_ref[...], 0.0)                     # (HW, width) f32

    # ---- Layer 3: conv3x3, computed directly as (Cout, H*W) ----------------
    # out_t[co, p] = sum_k w3t[co, k] * col3[p, k]   (q.kT-style dot_general)
    # -> lane-dense output store, wrapper only needs a reshape to NCHW.
    col3 = im2col_3x3(y2.reshape(H, W, width)).astype(jnp.bfloat16)
    y3t = lax.dot_general(w3t_ref[...], col3,
                          dimension_numbers=(((1,), (1,)), ((), ())),
                          preferred_element_type=jnp.float32)   # (Cout, HW)
    y3t = y3t + b3_ref[...]
    out_ref[0] = y3t.astype(out_ref.dtype)


# ----------------------------------------------------------------------------
# Wrapper: weight flattening (done once by XLA) + single pallas_call.
# ----------------------------------------------------------------------------
def _w_to_mat(w):
    """PyTorch (Cout, Cin, ky, kx) -> (9*Cin, Cout), row = kx*3*Cin + ky*Cin + ci."""
    cout, cin = w.shape[0], w.shape[1]
    return jnp.transpose(w, (3, 2, 1, 0)).reshape(9 * cin, cout)


def _cnn_pallas(x_nchw, params):
    N, Cin, H, W = x_nchw.shape
    w1, b1 = params["conv1"]
    w2, b2 = params["conv2"]
    w3, b3 = params["conv3"]
    width = w1.shape[0]
    Cout = w3.shape[0]

    # Single NCHW -> NHWC transpose of the (tiny) network input.
    x_nhwc = jnp.transpose(x_nchw, (0, 2, 3, 1))

    # bf16 MXU operands (f32 accumulation happens in the kernel).
    w1m = _w_to_mat(w1).astype(jnp.bfloat16)                    # (9*Cin, width)
    w2m = _w_to_mat(w2).astype(jnp.bfloat16)                    # (9*width, width)
    w3mt = jnp.transpose(_w_to_mat(w3)).astype(jnp.bfloat16)    # (Cout, 9*width)
    b1r = b1.reshape(1, width).astype(jnp.float32)
    b2r = b2.reshape(1, width).astype(jnp.float32)
    b3r = b3.reshape(Cout, 1).astype(jnp.float32)

    flops = int(2 * N * H * W * 9 *
                (Cin * width + width * width + width * Cout))
    bytes_accessed = int(x_nhwc.size * 4 +
                         (w1m.size + w2m.size + w3mt.size) * 2 +
                         (b1r.size + b2r.size + b3r.size) * 4 +
                         N * Cout * H * W * 4)

    out = pl.pallas_call(
        _cnn_fused_kernel,
        out_shape=jax.ShapeDtypeStruct((N, Cout, H * W), x_nchw.dtype),
        grid_spec=pltpu.PrefetchScalarGridSpec(
            num_scalar_prefetch=0,
            grid=(N,),
            in_specs=[
                pl.BlockSpec((1, H, W, Cin), lambda n: (n, 0, 0, 0)),
                pl.BlockSpec(w1m.shape, lambda n: (0, 0)),
                pl.BlockSpec(b1r.shape, lambda n: (0, 0)),
                pl.BlockSpec(w2m.shape, lambda n: (0, 0)),
                pl.BlockSpec(b2r.shape, lambda n: (0, 0)),
                pl.BlockSpec(w3mt.shape, lambda n: (0, 0)),
                pl.BlockSpec(b3r.shape, lambda n: (0, 0)),
            ],
            out_specs=pl.BlockSpec((1, Cout, H * W), lambda n: (n, 0, 0)),
        ),
        compiler_params=pltpu.CompilerParams(
            dimension_semantics=("parallel",),
            vmem_limit_bytes=32 * 1024 * 1024),
        cost_estimate=pl.CostEstimate(flops=flops, transcendentals=0,
                                      bytes_accessed=bytes_accessed),
    )(x_nhwc, w1m, b1r, w2m, b2r, w3mt, b3r)

    # (N, Cout, H*W) -> (N, Cout, H, W): pure reshape, no transpose needed.
    return out.reshape(N, Cout, H, W)


# ----------------------------------------------------------------------------
# Module-level forward (mirrors CNN.forward) + params init.
# ----------------------------------------------------------------------------
def init_cnn_params(key, nb_in, nb_out, int_width=64, kernel_size=3):
    """Deterministic init; PyTorch Conv2d weight shape is (Cout, Cin, kh, kw)."""
    def one_conv(k, cin, cout):
        kw_, kb_ = jax.random.split(k)
        fan_in = cin * kernel_size * kernel_size
        bound = 1.0 / np.sqrt(fan_in)
        w = jax.random.uniform(kw_, (cout, cin, kernel_size, kernel_size),
                               jnp.float32, -bound, bound)
        b = jax.random.uniform(kb_, (cout,), jnp.float32, -bound, bound)
        return w, b

    k1, k2, k3 = jax.random.split(key, 3)
    return {
        "conv1": one_conv(k1, nb_in, int_width),
        "conv2": one_conv(k2, int_width, int_width),
        "conv3": one_conv(k3, nb_in if False else nb_out),
    } if False else {
        "conv1": one_conv(k1, nb_in, int_width),
        "conv2": one_conv(k2, int_width, int_width),
        "conv3": one_conv(k3, int_width, nb_out),
    }


def cnn_forward(params, x_nchw, data_geometry="2D"):
    """Matches CNN.forward: conv1 -> relu -> conv2 -> relu -> conv3."""
    if data_geometry == "3D":
        batch_len, nb_levels = x_nchw.shape[0], x_nchw.shape[1]
        res = x_nchw.reshape((batch_len * nb_levels,) + x_nchw.shape[2:])
    else:
        res = x_nchw
    res = _cnn_pallas(res, params)
    if data_geometry == "3D":
        res = res.reshape((batch_len, nb_levels) + res.shape[1:])
    return res


# ----------------------------------------------------------------------------
# Reference (lax.conv with the same bf16-operand / f32-accumulate numerics).
# ----------------------------------------------------------------------------
def _w_oihw_to_hwio(w):
    return jnp.transpose(w, (2, 3, 1, 0))


def cnn_forward_ref(params, x_nchw):
    def conv(a_nhwc, w, b, relu):
        ap = jnp.pad(a_nhwc, ((0, 0), (1, 1), (1, 1), (0, 0)), mode="edge")
        out = lax.conv_general_dilated(
            ap.astype(jnp.bfloat16), _w_oihw_to_hwio(w).astype(jnp.bfloat16),
            (1, 1), "VALID", dimension_numbers=("NHWC", "HWIO", "NHWC"),
            preferred_element_type=jnp.float32)
        out = out + b
        return jnp.maximum(out, 0.0) if relu else out

    a = jnp.transpose(x_nchw, (0, 2, 3, 1))
    a = conv(a, *params["conv1"], True)
    a = conv(a, *params["conv2"], True)
    a = conv(a, *params["conv3"], False)
    return jnp.transpose(a, (0, 3, 1, 2))


if __name__ == "__main__":
    key = jax.random.PRNGKey(0)
    kp, kx = jax.random.split(key)

    # Small shapes: batch=2, in/out channels=4, spatial 16x16, int_width=32.
    N, CIN, COUT, H, W, WIDTH = 2, 4, 4, 16, 16, 32

    params = init_cnn_params(kp, CIN, COUT, int_width=WIDTH)
    x = jax.random.normal(kx, (N, CIN, H, W), jnp.float32)   # NCHW, like PyTorch

    fwd = jax.jit(functools.partial(cnn_forward, data_geometry="2D"))
    out = jax.block_until_ready(fwd(params, x))
    assert out.shape == (N, COUT, H, W), out.shape

    ref = jax.block_until_ready(cnn_forward_ref(params, x))
    np.testing.assert_allclose(np.asarray(out), np.asarray(ref),
                               rtol=1e-2, atol=1e-2)
    print("KERNEL_OK")
</pallas_src>

<mosaic_0001>
module attributes {stable_mosaic.version = 11 : i64} {
  func.func @_cnn_fused_kernel(%arg0: i32, %arg1: memref<1x16x16x4xf32, #tpu.memory_space<vmem>>, %arg2: memref<36x32xbf16, #tpu.memory_space<vmem>>, %arg3: memref<1x32xf32, #tpu.memory_space<vmem>>, %arg4: memref<288x32xbf16, #tpu.memory_space<vmem>>, %arg5: memref<1x32xf32, #tpu.memory_space<vmem>>, %arg6: memref<4x288xbf16, #tpu.memory_space<vmem>>, %arg7: memref<4x1xf32, #tpu.memory_space<vmem>>, %arg8: memref<1x4x256xf32, #tpu.memory_space<vmem>>) attributes {dimension_semantics = [#tpu.dimension_semantics<parallel>], iteration_bounds = array<i64: 2>, scalar_prefetch = 0 : i64, scratch_operands = 0 : i64, tpu.core_type = #tpu.core_type<tc>, window_params = [{transform_indices = @transform_0, window_bounds = array<i64: 1, 16, 16, 4>}, {pipeline_mode = #tpu.pipeline_mode<synchronous>, transform_indices = @transform_1, window_bounds = array<i64: 36, 32>}, {pipeline_mode = #tpu.pipeline_mode<synchronous>, transform_indices = @transform_2, window_bounds = array<i64: 1, 32>}, {pipeline_mode = #tpu.pipeline_mode<synchronous>, transform_indices = @transform_3, window_bounds = array<i64: 288, 32>}, {pipeline_mode = #tpu.pipeline_mode<synchronous>, transform_indices = @transform_4, window_bounds = array<i64: 1, 32>}, {pipeline_mode = #tpu.pipeline_mode<synchronous>, transform_indices = @transform_5, window_bounds = array<i64: 4, 288>}, {pipeline_mode = #tpu.pipeline_mode<synchronous>, transform_indices = @transform_6, window_bounds = array<i64: 4, 1>}, {transform_indices = @transform_7, window_bounds = array<i64: 1, 4, 256>}]} {
    %c0 = arith.constant 0 : index
    %c0_0 = arith.constant 0 : index
    %c0_1 = arith.constant 0 : index
    %c0_2 = arith.constant 0 : index
    %0 = vector.load %arg1[%c0, %c0_0, %c0_1, %c0_2] : memref<1x16x16x4xf32, #tpu.memory_space<vmem>>, vector<1x16x16x4xf32>
    %1 = vector.shape_cast %0 : vector<1x16x16x4xf32> to vector<16x16x4xf32>
    %2 = vector.extract_strided_slice %1 {offsets = [0, 0, 0], sizes = [1, 16, 4], strides = [1, 1, 1]} : vector<16x16x4xf32> to vector<1x16x4xf32>
    %3 = vector.extract_strided_slice %1 {offsets = [15, 0, 0], sizes = [1, 16, 4], strides = [1, 1, 1]} : vector<16x16x4xf32> to vector<1x16x4xf32>
    %4 = tpu.concatenate %2, %1, %3 in 0 : vector<1x16x4xf32>, vector<16x16x4xf32>, vector<1x16x4xf32> -> vector<18x16x4xf32>
    %5 = vector.extract_strided_slice %4 {offsets = [0, 0, 0], sizes = [18, 1, 4], strides = [1, 1, 1]} : vector<18x16x4xf32> to vector<18x1x4xf32>
    %6 = vector.extract_strided_slice %4 {offsets = [0, 15, 0], sizes = [18, 1, 4], strides = [1, 1, 1]} : vector<18x16x4xf32> to vector<18x1x4xf32>
    %7 = tpu.concatenate %5, %4, %6 in 1 : vector<18x1x4xf32>, vector<18x16x4xf32>, vector<18x1x4xf32> -> vector<18x18x4xf32>
    %8 = vector.extract_strided_slice %7 {offsets = [0, 0, 0], sizes = [16, 18, 4], strides = [1, 1, 1]} : vector<18x18x4xf32> to vector<16x18x4xf32>
    %9 = vector.extract_strided_slice %7 {offsets = [1, 0, 0], sizes = [16, 18, 4], strides = [1, 1, 1]} : vector<18x18x4xf32> to vector<16x18x4xf32>
    %10 = vector.extract_strided_slice %7 {offsets = [2, 0, 0], sizes = [16, 18, 4], strides = [1, 1, 1]} : vector<18x18x4xf32> to vector<16x18x4xf32>
    %11 = tpu.concatenate %8, %9, %10 in 2 : vector<16x18x4xf32>, vector<16x18x4xf32>, vector<16x18x4xf32> -> vector<16x18x12xf32>
    %12 = vector.extract_strided_slice %11 {offsets = [0, 0, 0], sizes = [16, 16, 12], strides = [1, 1, 1]} : vector<16x18x12xf32> to vector<16x16x12xf32>
    %13 = vector.extract_strided_slice %11 {offsets = [0, 1, 0], sizes = [16, 16, 12], strides = [1, 1, 1]} : vector<16x18x12xf32> to vector<16x16x12xf32>
    %14 = vector.extract_strided_slice %11 {offsets = [0, 2, 0], sizes = [16, 16, 12], strides = [1, 1, 1]} : vector<16x18x12xf32> to vector<16x16x12xf32>
    %15 = tpu.concatenate %12, %13, %14 in 2 : vector<16x16x12xf32>, vector<16x16x12xf32>, vector<16x16x12xf32> -> vector<16x16x36xf32>
    %16 = vector.shape_cast %15 : vector<16x16x36xf32> to vector<256x36xf32>
    %17 = arith.truncf %16 : vector<256x36xf32> to vector<256x36xbf16>
    %c0_3 = arith.constant 0 : index
    %c0_4 = arith.constant 0 : index
    %18 = vector.load %arg2[%c0_3, %c0_4] : memref<36x32xbf16, #tpu.memory_space<vmem>>, vector<36x32xbf16>
    %cst = arith.constant dense<0.000000e+00> : vector<256x32xf32>
    %19 = tpu.matmul %17, %18, %cst {dimension_numbers = #tpu.dot_dimension_numbers<[1], [0], [0], [1], [0, 0, 1, 1], [], []>} : vector<256x36xbf16>, vector<36x32xbf16>, vector<256x32xf32> -> vector<256x32xf32>
    %c0_5 = arith.constant 0 : index
    %c0_6 = arith.constant 0 : index
    %20 = vector.load %arg3[%c0_5, %c0_6] : memref<1x32xf32, #tpu.memory_space<vmem>>, vector<1x32xf32>
    %21 = vector.broadcast %20 : vector<1x32xf32> to vector<256x32xf32>
    %22 = arith.addf %19, %21 : vector<256x32xf32>
    %cst_7 = arith.constant 0.000000e+00 : f32
    %23 = vector.broadcast %cst_7 : f32 to vector<256x32xf32>
    %24 = arith.maximumf %22, %23 : vector<256x32xf32>
    %25 = vector.shape_cast %24 : vector<256x32xf32> to vector<16x16x32xf32>
    %26 = vector.extract_strided_slice %25 {offsets = [0, 0, 0], sizes = [1, 16, 32], strides = [1, 1, 1]} : vector<16x16x32xf32> to vector<1x16x32xf32>
    %27 = vector.extract_strided_slice %25 {offsets = [15, 0, 0], sizes = [1, 16, 32], strides = [1, 1, 1]} : vector<16x16x32xf32> to vector<1x16x32xf32>
    %28 = tpu.concatenate %26, %25, %27 in 0 : vector<1x16x32xf32>, vector<16x16x32xf32>, vector<1x16x32xf32> -> vector<18x16x32xf32>
    %29 = vector.extract_strided_slice %28 {offsets = [0, 0, 0], sizes = [18, 1, 32], strides = [1, 1, 1]} : vector<18x16x32xf32> to vector<18x1x32xf32>
    %30 = vector.extract_strided_slice %28 {offsets = [0, 15, 0], sizes = [18, 1, 32], strides = [1, 1, 1]} : vector<18x16x32xf32> to vector<18x1x32xf32>
    %31 = tpu.concatenate %29, %28, %30 in 1 : vector<18x1x32xf32>, vector<18x16x32xf32>, vector<18x1x32xf32> -> vector<18x18x32xf32>
    %32 = vector.extract_strided_slice %31 {offsets = [0, 0, 0], sizes = [16, 18, 32], strides = [1, 1, 1]} : vector<18x18x32xf32> to vector<16x18x32xf32>
    %33 = vector.extract_strided_slice %31 {offsets = [1, 0, 0], sizes = [16, 18, 32], strides = [1, 1, 1]} : vector<18x18x32xf32> to vector<16x18x32xf32>
    %34 = vector.extract_strided_slice %31 {offsets = [2, 0, 0], sizes = [16, 18, 32], strides = [1, 1, 1]} : vector<18x18x32xf32> to vector<16x18x32xf32>
    %35 = tpu.concatenate %32, %33, %34 in 2 : vector<16x18x32xf32>, vector<16x18x32xf32>, vector<16x18x32xf32> -> vector<16x18x96xf32>
    %36 = vector.extract_strided_slice %35 {offsets = [0, 0, 0], sizes = [16, 16, 96], strides = [1, 1, 1]} : vector<16x18x96xf32> to vector<16x16x96xf32>
    %37 = vector.extract_strided_slice %35 {offsets = [0, 1, 0], sizes = [16, 16, 96], strides = [1, 1, 1]} : vector<16x18x96xf32> to vector<16x16x96xf32>
    %38 = vector.extract_strided_slice %35 {offsets = [0, 2, 0], sizes = [16, 16, 96], strides = [1, 1, 1]} : vector<16x18x96xf32> to vector<16x16x96xf32>
    %39 = tpu.concatenate %36, %37, %38 in 2 : vector<16x16x96xf32>, vector<16x16x96xf32>, vector<16x16x96xf32> -> vector<16x16x288xf32>
    %40 = vector.shape_cast %39 : vector<16x16x288xf32> to vector<256x288xf32>
    %41 = arith.truncf %40 : vector<256x288xf32> to vector<256x288xbf16>
    %c0_8 = arith.constant 0 : index
    %c0_9 = arith.constant 0 : index
    %42 = vector.load %arg4[%c0_8, %c0_9] : memref<288x32xbf16, #tpu.memory_space<vmem>>, vector<288x32xbf16>
    %cst_10 = arith.constant dense<0.000000e+00> : vector<256x32xf32>
    %43 = tpu.matmul %41, %42, %cst_10 {dimension_numbers = #tpu.dot_dimension_numbers<[1], [0], [0], [1], [0, 0, 1, 1], [], []>} : vector<256x288xbf16>, vector<288x32xbf16>, vector<256x32xf32> -> vector<256x32xf32>
    %c0_11 = arith.constant 0 : index
    %c0_12 = arith.constant 0 : index
    %44 = vector.load %arg5[%c0_11, %c0_12] : memref<1x32xf32, #tpu.memory_space<vmem>>, vector<1x32xf32>
    %45 = vector.broadcast %44 : vector<1x32xf32> to vector<256x32xf32>
    %46 = arith.addf %43, %45 : vector<256x32xf32>
    %cst_13 = arith.constant 0.000000e+00 : f32
    %47 = vector.broadcast %cst_13 : f32 to vector<256x32xf32>
    %48 = arith.maximumf %46, %47 : vector<256x32xf32>
    %49 = vector.shape_cast %48 : vector<256x32xf32> to vector<16x16x32xf32>
    %50 = vector.extract_strided_slice %49 {offsets = [0, 0, 0], sizes = [1, 16, 32], strides = [1, 1, 1]} : vector<16x16x32xf32> to vector<1x16x32xf32>
    %51 = vector.extract_strided_slice %49 {offsets = [15, 0, 0], sizes = [1, 16, 32], strides = [1, 1, 1]} : vector<16x16x32xf32> to vector<1x16x32xf32>
    %52 = tpu.concatenate %50, %49, %51 in 0 : vector<1x16x32xf32>, vector<16x16x32xf32>, vector<1x16x32xf32> -> vector<18x16x32xf32>
    %53 = vector.extract_strided_slice %52 {offsets = [0, 0, 0], sizes = [18, 1, 32], strides = [1, 1, 1]} : vector<18x16x32xf32> to vector<18x1x32xf32>
    %54 = vector.extract_strided_slice %52 {offsets = [0, 15, 0], sizes = [18, 1, 32], strides = [1, 1, 1]} : vector<18x16x32xf32> to vector<18x1x32xf32>
    %55 = tpu.concatenate %53, %52, %54 in 1 : vector<18x1x32xf32>, vector<18x16x32xf32>, vector<18x1x32xf32> -> vector<18x18x32xf32>
    %56 = vector.extract_strided_slice %55 {offsets = [0, 0, 0], sizes = [16, 18, 32], strides = [1, 1, 1]} : vector<18x18x32xf32> to vector<16x18x32xf32>
    %57 = vector.extract_strided_slice %55 {offsets = [1, 0, 0], sizes = [16, 18, 32], strides = [1, 1, 1]} : vector<18x18x32xf32> to vector<16x18x32xf32>
    %58 = vector.extract_strided_slice %55 {offsets = [2, 0, 0], sizes = [16, 18, 32], strides = [1, 1, 1]} : vector<18x18x32xf32> to vector<16x18x32xf32>
    %59 = tpu.concatenate %56, %57, %58 in 2 : vector<16x18x32xf32>, vector<16x18x32xf32>, vector<16x18x32xf32> -> vector<16x18x96xf32>
    %60 = vector.extract_strided_slice %59 {offsets = [0, 0, 0], sizes = [16, 16, 96], strides = [1, 1, 1]} : vector<16x18x96xf32> to vector<16x16x96xf32>
    %61 = vector.extract_strided_slice %59 {offsets = [0, 1, 0], sizes = [16, 16, 96], strides = [1, 1, 1]} : vector<16x18x96xf32> to vector<16x16x96xf32>
    %62 = vector.extract_strided_slice %59 {offsets = [0, 2, 0], sizes = [16, 16, 96], strides = [1, 1, 1]} : vector<16x18x96xf32> to vector<16x16x96xf32>
    %63 = tpu.concatenate %60, %61, %62 in 2 : vector<16x16x96xf32>, vector<16x16x96xf32>, vector<16x16x96xf32> -> vector<16x16x288xf32>
    %64 = vector.shape_cast %63 : vector<16x16x288xf32> to vector<256x288xf32>
    %65 = arith.truncf %64 : vector<256x288xf32> to vector<256x288xbf16>
    %c0_14 = arith.constant 0 : index
    %c0_15 = arith.constant 0 : index
    %66 = vector.load %arg6[%c0_14, %c0_15] : memref<4x288xbf16, #tpu.memory_space<vmem>>, vector<4x288xbf16>
    %cst_16 = arith.constant dense<0.000000e+00> : vector<4x256xf32>
    %67 = tpu.matmul %66, %65, %cst_16 {dimension_numbers = #tpu.dot_dimension_numbers<[1], [1], [0], [0], [0, 0, 1, 0], [], []>} : vector<4x288xbf16>, vector<256x288xbf16>, vector<4x256xf32> -> vector<4x256xf32>
    %c0_17 = arith.constant 0 : index
    %c0_18 = arith.constant 0 : index
    %68 = vector.load %arg7[%c0_17, %c0_18] : memref<4x1xf32, #tpu.memory_space<vmem>>, vector<4x1xf32>
    %69 = vector.broadcast %68 : vector<4x1xf32> to vector<4x256xf32>
    %70 = arith.addf %67, %69 : vector<4x256xf32>
    %c0_19 = arith.constant 0 : index
    %c0_20 = arith.constant 0 : index
    %c0_21 = arith.constant 0 : index
    %71 = vector.load %arg8[%c0_19, %c0_20, %c0_21] : memref<1x4x256xf32, #tpu.memory_space<vmem>>, vector<1x4x256xf32>
    %72 = vector.shape_cast %71 : vector<1x4x256xf32> to vector<4x256xf32>
    %73 = vector.shape_cast %70 : vector<4x256xf32> to vector<1x4x256xf32>
    tpu.vector_store %arg8[%c0_19, %c0_20, %c0_21], %73 {strides = array<i32>} : memref<1x4x256xf32, #tpu.memory_space<vmem>>, vector<1x4x256xf32>,
    return
  }
  func.func @transform_0(%arg0: i32) -> (i32, i32, i32, i32) {
    %c0_i32 = arith.constant 0 : i32
    %c0_i32_0 = arith.constant 0 : i32
    %c0_i32_1 = arith.constant 0 : i32
    %c0_i32_2 = arith.constant 0 : i32
    return %arg0, %c0_i32, %c0_i32_0, %c0_i32_1 : i32, i32, i32, i32
  }
  func.func @transform_1(%arg0: i32) -> (i32, i32) {
    %c0_i32 = arith.constant 0 : i32
    %c0_i32_0 = arith.constant 0 : i32
    %c0_i32_1 = arith.constant 0 : i32
    return %c0_i32, %c0_i32_0 : i32, i32
  }
  func.func @transform_2(%arg0: i32) -> (i32, i32) {
    %c0_i32 = arith.constant 0 : i32
    %c0_i32_0 = arith.constant 0 : i32
    %c0_i32_1 = arith.constant 0 : i32
    return %c0_i32, %c0_i32_0 : i32, i32
  }
  func.func @transform_3(%arg0: i32) -> (i32, i32) {
    %c0_i32 = arith.constant 0 : i32
    %c0_i32_0 = arith.constant 0 : i32
    %c0_i32_1 = arith.constant 0 : i32
    return %c0_i32, %c0_i32_0 : i32, i32
  }
  func.func @transform_4(%arg0: i32) -> (i32, i32) {
    %c0_i32 = arith.constant 0 : i32
    %c0_i32_0 = arith.constant 0 : i32
    %c0_i32_1 = arith.constant 0 : i32
    return %c0_i32, %c0_i32_0 : i32, i32
  }
  func.func @transform_5(%arg0: i32) -> (i32, i32) {
    %c0_i32 = arith.constant 0 : i32
    %c0_i32_0 = arith.constant 0 : i32
    %c0_i32_1 = arith.constant 0 : i32
    return %c0_i32, %c0_i32_0 : i32, i32
  }
  func.func @transform_6(%arg0: i32) -> (i32, i32) {
    %c0_i32 = arith.constant 0 : i32
    %c0_i32_0 = arith.constant 0 : i32
    %c0_i32_1 = arith.constant 0 : i32
    return %c0_i32, %c0_i32_0 : i32, i32
  }
  func.func @transform_7(%arg0: i32) -> (i32, i32, i32) {
    %c0_i32 = arith.constant 0 : i32
    %c0_i32_0 = arith.constant 0 : i32
    %c0_i32_1 = arith.constant 0 : i32
    return %arg0, %c0_i32, %c0_i32_0 : i32, i32, i32
  }
}

</mosaic_0001>

<llo_original>
// kernel: cnn_forward.1
$region0: #{cnn_forward.1}
  #allocation0 [shape = 'u32[]', space=smem, size = 0x4, offset = 0x4, fixed_abs, tag = 'smem constant byte address 0x4 - core index']
  #allocation1 [shape = 'u32[144,128]{1,0:T(1,128)}', space=vmem, size = 0x12000, scoped, tag = 'internal scratch']
  %s0 = inlined_call_operand.vmem [shape: f32[2,16,16,4], index: 0, kind: input, shape index: {}]
  %s1 = inlined_call_operand.vmem [shape: bf16[36,32], index: 1, kind: input, shape index: {}]
  %s2 = inlined_call_operand.vmem [shape: f32[1,32], index: 2, kind: input, shape index: {}]
  %s3 = inlined_call_operand.vmem [shape: bf16[288,32], index: 3, kind: input, shape index: {}]
  %s4 = inlined_call_operand.vmem [shape: f32[1,32], index: 4, kind: input, shape index: {}]
  %s5 = inlined_call_operand.vmem [shape: bf16[4,288], index: 5, kind: input, shape index: {}]
  %s6 = inlined_call_operand.vmem [shape: f32[4,1], index: 6, kind: input, shape index: {}]
  %s7 = inlined_call_operand.vmem [shape: f32[2,4,256], index: 7, kind: output, shape index: {}]
  %s8 = sld [smem:[#allocation0]]
  $region61: #{cnn_forward.1} parent=0
    _
  %s10 = ssub.s32 1, %s8
  %s11 = scalar_select 0, %s10, %s8
  loop: start=0, step=1, limit=4
  $region2: #{cnn_forward.1} parent=0 // loop_pre_header
    _
  $region3: #{cnn_forward.1} parent=0 // loop_header
    %s13 = sphi 0, %s17
    %p14 = scmp.ge.s32.totalorder %s13, 4
    %s23 = sphi 0, %s25
    %s26 = sphi 0, %s23
    %s27 = sphi 0, %s26
    %s43 = sphi 0, %s27
    %s47 = sphi 0, %s47
    %s49 = sphi 0, %s47
    %s50 = sphi 0, %s49
    %s64 = sphi 0, %s50
    %s68 = sphi 0, %s68
    %s70 = sphi 0, %s68
    %s71 = sphi 0, %s70
    %s85 = sphi 0, %s71
    %s89 = sphi 0, %s89
    %s91 = sphi 0, %s89
    %s92 = sphi 0, %s91
    %s106 = sphi 0, %s92
    %s110 = sphi 0, %s110
    %s112 = sphi 0, %s110
    %s113 = sphi 0, %s112
    %s127 = sphi 0, %s113
    %s131 = sphi 0, %s131
    %s133 = sphi 0, %s131
    %s134 = sphi 0, %s133
    %s148 = sphi 0, %s134
    %s152 = sphi 0, %s152
    %s154 = sphi 0, %s152
    %s155 = sphi 0, %s154
    %s169 = sphi 0, %s155
    %s175 = sphi 0, %s177
    %s178 = sphi 0, %s175
    %s179 = sphi 0, %s178
    %s195 = sphi 0, %s179
  $region4: #{cnn_forward.1} parent=0 // loop_header_branch
    %16 = sbr.rel (%p14) target = $region8
  $region5: #{cnn_forward.1} parent=0 // loop_body
    %s18 = ssub.s32 %s13, 1
    %s19 = ssub.s32 %s13, 2
    %s20 = sadd.s32 %s13, 1
    %s21 = ssub.s32 %s13, %s20
    %p22 = scmp.eq.s32.totalorder %s21, 0
    %s24 = sadd.s32 %s23, 1
    %s25 = scalar_select %p22, %s23, %s24
    %p28 = pneg %p22
    %p29 = scmp.eq.s32.totalorder %s13, 1
    %p30 = por %p28, %p29
    %p31 = scmp.ne.s32.totalorder %s23, %s26
    %p32 = scmp.eq.s32.totalorder %s13, 0
    %p33 = por %p31, %p32
    %p34 = scmp.ne.s32.totalorder %s23, %s26
    %p35 = scmp.eq.s32.totalorder %s18, 1
    %p36 = por %p34, %p35
    %p37 = scmp.ne.s32.totalorder %s26, %s27
    %p38 = scmp.eq.s32.totalorder %s18, 0
    %p39 = por %p37, %p38
    %p40 = scmp.ne.s32.totalorder %s26, %s27
    %p41 = scmp.eq.s32.totalorder %s19, 1
    %p42 = por %p40, %p41
    %p44 = scmp.ne.s32.totalorder %s27, %s43
    %p45 = scmp.eq.s32.totalorder %s19, 0
    %p46 = por %p44, %p45
    %s48 = sadd.s32 %s47, 1
    %p51 = scmp.eq.s32.totalorder %s13, 1
    %p52 = scmp.ne.s32.totalorder %s47, %s49
    %p53 = scmp.eq.s32.totalorder %s13, 0
    %p54 = por %p52, %p53
    %p55 = scmp.ne.s32.totalorder %s47, %s49
    %p56 = scmp.eq.s32.totalorder %s18, 1
    %p57 = por %p55, %p56
    %p58 = scmp.ne.s32.totalorder %s49, %s50
    %p59 = scmp.eq.s32.totalorder %s18, 0
    %p60 = por %p58, %p59
    %p61 = scmp.ne.s32.totalorder %s49, %s50
    %p62 = scmp.eq.s32.totalorder %s19, 1
    %p63 = por %p61, %p62
    %p65 = scmp.ne.s32.totalorder %s50, %s64
    %p66 = scmp.eq.s32.totalorder %s19, 0
    %p67 = por %p65, %p66
    %s69 = sadd.s32 %s68, 1
    %p72 = scmp.eq.s32.totalorder %s13, 1
    %p73 = scmp.ne.s32.totalorder %s68, %s70
    %p74 = scmp.eq.s32.totalorder %s13, 0
    %p75 = por %p73, %p74
    %p76 = scmp.ne.s32.totalorder %s68, %s70
    %p77 = scmp.eq.s32.totalorder %s18, 1
    %p78 = por %p76, %p77
    %p79 = scmp.ne.s32.totalorder %s70, %s71
    %p80 = scmp.eq.s32.totalorder %s18, 0
    %p81 = por %p79, %p80
    %p82 = scmp.ne.s32.totalorder %s70, %s71
    %p83 = scmp.eq.s32.totalorder %s19, 1
    %p84 = por %p82, %p83
    %p86 = scmp.ne.s32.totalorder %s71, %s85
    %p87 = scmp.eq.s32.totalorder %s19, 0
    %p88 = por %p86, %p87
    %s90 = sadd.s32 %s89, 1
    %p93 = scmp.eq.s32.totalorder %s13, 1
    %p94 = scmp.ne.s32.totalorder %s89, %s91
    %p95 = scmp.eq.s32.totalorder %s13, 0
    %p96 = por %p94, %p95
    %p97 = scmp.ne.s32.totalorder %s89, %s91
    %p98 = scmp.eq.s32.totalorder %s18, 1
    %p99 = por %p97, %p98
    %p100 = scmp.ne.s32.totalorder %s91, %s92
    %p101 = scmp.eq.s32.totalorder %s18, 0
    %p102 = por %p100, %p101
    %p103 = scmp.ne.s32.totalorder %s91, %s92
    %p104 = scmp.eq.s32.totalorder %s19, 1
    %p105 = por %p103, %p104
    %p107 = scmp.ne.s32.totalorder %s92, %s106
    %p108 = scmp.eq.s32.totalorder %s19, 0
    %p109 = por %p107, %p108
    %s111 = sadd.s32 %s110, 1
    %p114 = scmp.eq.s32.totalorder %s13, 1
    %p115 = scmp.ne.s32.totalorder %s110, %s112
    %p116 = scmp.eq.s32.totalorder %s13, 0
    %p117 = por %p115, %p116
    %p118 = scmp.ne.s32.totalorder %s110, %s112
    %p119 = scmp.eq.s32.totalorder %s18, 1
    %p120 = por %p118, %p119
    %p121 = scmp.ne.s32.totalorder %s112, %s113
    %p122 = scmp.eq.s32.totalorder %s18, 0
    %p123 = por %p121, %p122
    %p124 = scmp.ne.s32.totalorder %s112, %s113
    %p125 = scmp.eq.s32.totalorder %s19, 1
    %p126 = por %p124, %p125
    %p128 = scmp.ne.s32.totalorder %s113, %s127
    %p129 = scmp.eq.s32.totalorder %s19, 0
    %p130 = por %p128, %p129
    %s132 = sadd.s32 %s131, 1
    %p135 = scmp.eq.s32.totalorder %s13, 1
    %p136 = scmp.ne.s32.totalorder %s131, %s133
    %p137 = scmp.eq.s32.totalorder %s13, 0
    %p138 = por %p136, %p137
    %p139 = scmp.ne.s32.totalorder %s131, %s133
    %p140 = scmp.eq.s32.totalorder %s18, 1
    %p141 = por %p139, %p140
    %p142 = scmp.ne.s32.totalorder %s133, %s134
    %p143 = scmp.eq.s32.totalorder %s18, 0
    %p144 = por %p142, %p143
    %p145 = scmp.ne.s32.totalorder %s133, %s134
    %p146 = scmp.eq.s32.totalorder %s19, 1
    %p147 = por %p145, %p146
    %p149 = scmp.ne.s32.totalorder %s134, %s148
    %p150 = scmp.eq.s32.totalorder %s19, 0
    %p151 = por %p149, %p150
    %s153 = sadd.s32 %s152, 1
    %p156 = scmp.eq.s32.totalorder %s13, 1
    %p157 = scmp.ne.s32.totalorder %s152, %s154
    %p158 = scmp.eq.s32.totalorder %s13, 0
    %p159 = por %p157, %p158
    %p160 = scmp.ne.s32.totalorder %s152, %s154
    %p161 = scmp.eq.s32.totalorder %s18, 1
    %p162 = por %p160, %p161
    %p163 = scmp.ne.s32.totalorder %s154, %s155
    %p164 = scmp.eq.s32.totalorder %s18, 0
    %p165 = por %p163, %p164
    %p166 = scmp.ne.s32.totalorder %s154, %s155
    %p167 = scmp.eq.s32.totalorder %s19, 1
    %p168 = por %p166, %p167
    %p170 = scmp.ne.s32.totalorder %s155, %s169
    %p171 = scmp.eq.s32.totalorder %s19, 0
    %p172 = por %p170, %p171
    %s173 = ssub.s32 %s13, %s20
    %p174 = scmp.eq.s32.totalorder %s173, 0
    %s176 = sadd.s32 %s175, 1
    %s177 = scalar_select %p174, %s175, %s176
    %p180 = pneg %p174
    %p181 = scmp.eq.s32.totalorder %s13, 1
    %p182 = por %p180, %p181
    %p183 = scmp.ne.s32.totalorder %s175, %s178
    %p184 = scmp.eq.s32.totalorder %s13, 0
    %p185 = por %p183, %p184
    %p186 = scmp.ne.s32.totalorder %s175, %s178
    %p187 = scmp.eq.s32.totalorder %s18, 1
    %p188 = por %p186, %p187
    %p189 = scmp.ne.s32.totalorder %s178, %s179
    %p190 = scmp.eq.s32.totalorder %s18, 0
    %p191 = por %p189, %p190
    %p192 = scmp.ne.s32.totalorder %s178, %s179
    %p193 = scmp.eq.s32.totalorder %s19, 1
    %p194 = por %p192, %p193
    %p196 = scmp.ne.s32.totalorder %s179, %s195
    %p197 = scmp.eq.s32.totalorder %s19, 0
    %p198 = por %p196, %p197
    %p199 = scmp.le.s32.totalorder 1, %s13
    %p200 = scmp.lt.s32.totalorder %s13, 3
    %p201 = pnand %p199, %p200
    %p202 = pneg %p201
    // Predicated region
    $region9: #{cnn_forward.1} parent=5 // pred_check
      _
    $region10: #{cnn_forward.1} parent=5 // pred_check_branch
      %204 = sbr.rel (%p201) target = $region12
    $region11: #{cnn_forward.1} parent=5 // pred_region
      %s205 = ssub.s32 %s13, 1
      // Predicated region
      $region13: #{cnn_forward.1} parent=11 // pred_check
        %p206 = pneg %p60
      $region14: #{cnn_forward.1} parent=11 // pred_check_branch
        %208 = sbr.rel (%p206) target = $region16
      $region15: #{cnn_forward.1} parent=11 // pred_region
        _
      $region16: #{cnn_forward.1} parent=11 // pred_fallthru
        _
      // Predicated region
      $region17: #{cnn_forward.1} parent=11 // pred_check
        %p209 = pneg %p81
      $region18: #{cnn_forward.1} parent=11 // pred_check_branch
        %211 = sbr.rel (%p209) target = $region20
      $region19: #{cnn_forward.1} parent=11 // pred_region
        _
      $region20: #{cnn_forward.1} parent=11 // pred_fallthru
        _
      // Predicated region
      $region21: #{cnn_forward.1} parent=11 // pred_check
        %p212 = pneg %p102
      $region22: #{cnn_forward.1} parent=11 // pred_check_branch
        %214 = sbr.rel (%p212) target = $region24
      $region23: #{cnn_forward.1} parent=11 // pred_region
        _
      $region24: #{cnn_forward.1} parent=11 // pred_fallthru
        _
      // Predicated region
      $region25: #{cnn_forward.1} parent=11 // pred_check
        %p215 = pneg %p123
      $region26: #{cnn_forward.1} parent=11 // pred_check_branch
        %217 = sbr.rel (%p215) target = $region28
      $region27: #{cnn_forward.1} parent=11 // pred_region
        _
      $region28: #{cnn_forward.1} parent=11 // pred_fallthru
        _
      // Predicated region
      $region29: #{cnn_forward.1} parent=11 // pred_check
        %p218 = pneg %p144
      $region30: #{cnn_forward.1} parent=11 // pred_check_branch
        %220 = sbr.rel (%p218) target = $region32
      $region31: #{cnn_forward.1} parent=11 // pred_region
        _
      $region32: #{cnn_forward.1} parent=11 // pred_fallthru
        _
      // Predicated region
      $region33: #{cnn_forward.1} parent=11 // pred_check
        %p221 = pneg %p165
      $region34: #{cnn_forward.1} parent=11 // pred_check_branch
        %223 = sbr.rel (%p221) target = $region36
      $region35: #{cnn_forward.1} parent=11 // pred_region
        _
      $region36: #{cnn_forward.1} parent=11 // pred_fallthru
        _
    $region12: #{cnn_forward.1} parent=5 // pred_fallthru
      _
    %p224 = scmp.lt.s32.totalorder %s13, 2
    // Predicated region
    $region37: #{cnn_forward.1} parent=5 // pred_check
      %p225 = pneg %p224
    $region38: #{cnn_forward.1} parent=5 // pred_check_branch
      %227 = sbr.rel (%p225) target = $region40
    $region39: #{cnn_forward.1} parent=5 // pred_region
      // Predicated region
      $region41: #{cnn_forward.1} parent=39 // pred_check
        %p228 = pneg %p33
      $region42: #{cnn_forward.1} parent=39 // pred_check_branch
        %230 = sbr.rel (%p228) target = $region44
      $region43: #{cnn_forward.1} parent=39 // pred_region
        %p231 = scmp.lt.s32.totalorder %s13, 1
        %s232 = scalar_select %p231, %s13, 1
        %s233 = smul.addr %s232, 32
        %s234 = smul.addr %s233, 8
        %s235 = scalar_lea.vmem %s0, %s234
      $region44: #{cnn_forward.1} parent=39 // pred_fallthru
        _
    $region40: #{cnn_forward.1} parent=5 // pred_fallthru
      _
    %p236 = scmp.le.s32.totalorder 1, %s13
    %p237 = scmp.lt.s32.totalorder %s13, 3
    %p238 = pnand %p236, %p237
    %p239 = pneg %p238
    // Predicated region
    $region45: #{cnn_forward.1} parent=5 // pred_check
      _
    $region46: #{cnn_forward.1} parent=5 // pred_check_branch
      %241 = sbr.rel (%p238) target = $region48
    $region47: #{cnn_forward.1} parent=5 // pred_region
      %s242 = ssub.s32 %s13, 1
      %p243 = scmp.lt.s32.totalorder %s18, 1
      %s244 = scalar_select %p243, %s18, 1
      %s245 = smul.addr %s244, 32
      %s246 = smul.addr %s245, 8
      %s247 = scalar_lea.vmem %s0, %s246
      %p248 = pneg %p39
      %p249 = pneg %p36
      %p250 = pneg %p60
      %p251 = pneg %p57
      %p252 = pneg %p81
      %p253 = pneg %p78
      %p254 = pneg %p102
      %p255 = pneg %p99
      %p256 = pneg %p123
      %p257 = pneg %p120
      %p258 = pneg %p144
      %p259 = pneg %p141
      %p260 = pneg %p165
      %p261 = pneg %p162
      %p262 = pneg %p191
      %p263 = pneg %p188
      %p264 = scmp.lt.s32.totalorder %s18, 1
      %s265 = scalar_select %p264, %s18, 1
      %s266 = smul.addr %s265, 2
      %s267 = smul.addr %s266, 4
      %s268 = scalar_lea.vmem %s7, %s267
      %p269 = scmp.lt.s32.totalorder %s18, 1
      %s270 = scalar_select %p269, %s18, 1
      %s271 = smul.addr %s270, 32
      %s272 = smul.addr %s271, 8
      %s273 = scalar_lea.vmem %s0, %s272
      %p274 = scmp.lt.s32.totalorder %s18, 1
      %s275 = scalar_select %p274, %s18, 1
      %s276 = smul.addr %s275, 2
      %s277 = smul.addr %s276, 4
      %s278 = scalar_lea.vmem %s7, %s277
      %v280 = vld [vmem:[%s273] sm:$0xff]
      %v281 = vld [vmem:[%s273 + $0x8] sm:$0xff]
      %v282 = vld [vmem:[%s273 + $0x10] sm:$0xff]
      %v283 = vld [vmem:[%s273 + $0x18] sm:$0xff]
      %v284 = vld [vmem:[%s273 + $0x20] sm:$0xff]
      %v285 = vld [vmem:[%s273 + $0x28] sm:$0xff]
      %v286 = vld [vmem:[%s273 + $0x30] sm:$0xff]
      %v287 = vld [vmem:[%s273 + $0x38] sm:$0xff]
      %v288 = vld [vmem:[%s273 + $0x40] sm:$0xff]
      %v289 = vld [vmem:[%s273 + $0x48] sm:$0xff]
      %v290 = vld [vmem:[%s273 + $0x50] sm:$0xff]
      %v291 = vld [vmem:[%s273 + $0x58] sm:$0xff]
      %v292 = vld [vmem:[%s273 + $0x60] sm:$0xff]
      %v293 = vld [vmem:[%s273 + $0x68] sm:$0xff]
      %v294 = vld [vmem:[%s273 + $0x70] sm:$0xff]
      %v295 = vld [vmem:[%s273 + $0x78] sm:$0xff]
      %v296 = vld [vmem:[%s273 + $0x80] sm:$0xff]
      %v297 = vld [vmem:[%s273 + $0x88] sm:$0xff]
      %v298 = vld [vmem:[%s273 + $0x90] sm:$0xff]
      %v299 = vld [vmem:[%s273 + $0x98] sm:$0xff]
      %v300 = vld [vmem:[%s273 + $0xa0] sm:$0xff]
      %v301 = vld [vmem:[%s273 + $0xa8] sm:$0xff]
      %v302 = vld [vmem:[%s273 + $0xb0] sm:$0xff]
      %v303 = vld [vmem:[%s273 + $0xb8] sm:$0xff]
      %v304 = vld [vmem:[%s273 + $0xc0] sm:$0xff]
      %v305 = vld [vmem:[%s273 + $0xc8] sm:$0xff]
      %v306 = vld [vmem:[%s273 + $0xd0] sm:$0xff]
      %v307 = vld [vmem:[%s273 + $0xd8] sm:$0xff]
      %v308 = vld [vmem:[%s273 + $0xe0] sm:$0xff]
      %v309 = vld [vmem:[%s273 + $0xe8] sm:$0xff]
      %v310 = vld [vmem:[%s273 + $0xf0] sm:$0xff]
      %v311 = vld [vmem:[%s273 + $0xf8] sm:$0xff]
      %vm344 = vcmask 1040384
      %v345 = vrot.slane %v280, 7
      %v346 = vrot.slane %v281, 7
      %v347 = vsel %vm344, %v345, %v346
      %v348 = vrot.slane %v282, 7
      %v349 = vrot.slane %v283, 7
      %v350 = vsel %vm344, %v348, %v349
      %v351 = vrot.slane %v284, 7
      %v352 = vrot.slane %v285, 7
      %v353 = vsel %vm344, %v351, %v352
      %v354 = vrot.slane %v286, 7
      %v355 = vrot.slane %v287, 7
      %v356 = vsel %vm344, %v354, %v355
      %v357 = vrot.slane %v288, 7
      %v358 = vrot.slane %v289, 7
      %v359 = vsel %vm344, %v357, %v358
      %v360 = vrot.slane %v290, 7
      %v361 = vrot.slane %v291, 7
      %v362 = vsel %vm344, %v360, %v361
      %v363 = vrot.slane %v292, 7
      %v364 = vrot.slane %v293, 7
      %v365 = vsel %vm344, %v363, %v364
      %v366 = vrot.slane %v294, 7
      %v367 = vrot.slane %v295, 7
      %v368 = vsel %vm344, %v366, %v367
      %v369 = vrot.slane %v296, 7
      %v370 = vrot.slane %v297, 7
      %v371 = vsel %vm344, %v369, %v370
      %v372 = vrot.slane %v298, 7
      %v373 = vrot.slane %v299, 7
      %v374 = vsel %vm344, %v372, %v373
      %v375 = vrot.slane %v300, 7
      %v376 = vrot.slane %v301, 7
      %v377 = vsel %vm344, %v375, %v376
      %v378 = vrot.slane %v302, 7
      %v379 = vrot.slane %v303, 7
      %v380 = vsel %vm344, %v378, %v379
      %v381 = vrot.slane %v304, 7
      %v382 = vrot.slane %v305, 7
      %v383 = vsel %vm344, %v381, %v382
      %v384 = vrot.slane %v306, 7
      %v385 = vrot.slane %v307, 7
      %v386 = vsel %vm344, %v384, %v385
      %v387 = vrot.slane %v308, 7
      %v388 = vrot.slane %v309, 7
      %v389 = vsel %vm344, %v387, %v388
      %v390 = vrot.slane %v310, 7
      %v391 = vrot.slane %v311, 7
      %v392 = vsel %vm344, %v390, %v391
      %v440 = vrot.slane %v281, 6
      %v441 = vrot.slane %v283, 6
      %v442 = vrot.slane %v285, 6
      %v443 = vrot.slane %v287, 6
      %v444 = vrot.slane %v289, 6
      %v445 = vrot.slane %v291, 6
      %v446 = vrot.slane %v293, 6
      %v447 = vrot.slane %v295, 6
      %v448 = vrot.slane %v297, 6
      %v449 = vrot.slane %v299, 6
      %v450 = vrot.slane %v301, 6
      %v451 = vrot.slane %v303, 6
      %v452 = vrot.slane %v305, 6
      %v453 = vrot.slane %v307, 6
      %v454 = vrot.slane %v309, 6
      %v455 = vrot.slane %v311, 6
      %v472 = vsel %vm344, %v280, %v345
      %v473 = vsel %vm344, %v282, %v348
      %v474 = vsel %vm344, %v284, %v351
      %v475 = vsel %vm344, %v286, %v354
      %v476 = vsel %vm344, %v288, %v357
      %v477 = vsel %vm344, %v290, %v360
      %v478 = vsel %vm344, %v292, %v363
      %v479 = vsel %vm344, %v294, %v366
      %v480 = vsel %vm344, %v296, %v369
      %v481 = vsel %vm344, %v298, %v372
      %v482 = vsel %vm344, %v300, %v375
      %v483 = vsel %vm344, %v302, %v378
      %v484 = vsel %vm344, %v304, %v381
      %v485 = vsel %vm344, %v306, %v384
      %v486 = vsel %vm344, %v308, %v387
      %v487 = vsel %vm344, %v310, %v390
      %v488 = vsel %vm344, %v346, %v440
      %v489 = vsel %vm344, %v349, %v441
      %v490 = vsel %vm344, %v352, %v442
      %v491 = vsel %vm344, %v355, %v443
      %v492 = vsel %vm344, %v358, %v444
      %v493 = vsel %vm344, %v361, %v445
      %v494 = vsel %vm344, %v364, %v446
      %v495 = vsel %vm344, %v367, %v447
      %v496 = vsel %vm344, %v370, %v448
      %v497 = vsel %vm344, %v373, %v449
      %v498 = vsel %vm344, %v376, %v450
      %v499 = vsel %vm344, %v379, %v451
      %v500 = vsel %vm344, %v382, %v452
      %v501 = vsel %vm344, %v385, %v453
      %v502 = vsel %vm344, %v388, %v454
      %v503 = vsel %vm344, %v391, %v455
      %536 = vrot.lane.b32.xlu0 %v472, 4
      %v537 = vpop.permute.xlu0 %536
      %538 = vrot.lane.b32.xlu0 %v347, 4
      %v539 = vpop.permute.xlu0 %538
      %540 = vrot.lane.b32.xlu0 %v488, 4
      %v541 = vpop.permute.xlu0 %540
      %542 = vrot.lane.b32.xlu0 %v473, 4
      %v543 = vpop.permute.xlu0 %542
      %544 = vrot.lane.b32.xlu0 %v350, 4
      %v545 = vpop.permute.xlu0 %544
      %546 = vrot.lane.b32.xlu0 %v489, 4
      %v547 = vpop.permute.xlu0 %546
      %548 = vrot.lane.b32.xlu0 %v474, 4
      %v549 = vpop.permute.xlu0 %548
      %550 = vrot.lane.b32.xlu0 %v353, 4
      %v551 = vpop.permute.xlu0 %550
      %552 = vrot.lane.b32.xlu0 %v490, 4
      %v553 = vpop.permute.xlu0 %552
      %554 = vrot.lane.b32.xlu0 %v475, 4
      %v555 = vpop.permute.xlu0 %554
      %556 = vrot.lane.b32.xlu0 %v356, 4
      %v557 = vpop.permute.xlu0 %556
      %558 = vrot.lane.b32.xlu0 %v491, 4
      %v559 = vpop.permute.xlu0 %558
      %560 = vrot.lane.b32.xlu0 %v476, 4
      %v561 = vpop.permute.xlu0 %560
      %562 = vrot.lane.b32.xlu0 %v359, 4
      %v563 = vpop.permute.xlu0 %562
      %564 = vrot.lane.b32.xlu0 %v492, 4
      %v565 = vpop.permute.xlu0 %564
      %566 = vrot.lane.b32.xlu0 %v477, 4
      %v567 = vpop.permute.xlu0 %566
      %568 = vrot.lane.b32.xlu0 %v362, 4
      %v569 = vpop.permute.xlu0 %568
      %570 = vrot.lane.b32.xlu0 %v493, 4
      %v571 = vpop.permute.xlu0 %570
      %572 = vrot.lane.b32.xlu0 %v478, 4
      %v573 = vpop.permute.xlu0 %572
      %574 = vrot.lane.b32.xlu0 %v365, 4
      %v575 = vpop.permute.xlu0 %574
      %576 = vrot.lane.b32.xlu0 %v494, 4
      %v577 = vpop.permute.xlu0 %576
      %578 = vrot.lane.b32.xlu0 %v479, 4
      %v579 = vpop.permute.xlu0 %578
      %580 = vrot.lane.b32.xlu0 %v368, 4
      %v581 = vpop.permute.xlu0 %580
      %582 = vrot.lane.b32.xlu0 %v495, 4
      %v583 = vpop.permute.xlu0 %582
      %584 = vrot.lane.b32.xlu0 %v480, 4
      %v585 = vpop.permute.xlu0 %584
      %586 = vrot.lane.b32.xlu0 %v371, 4
      %v587 = vpop.permute.xlu0 %586
      %588 = vrot.lane.b32.xlu0 %v496, 4
      %v589 = vpop.permute.xlu0 %588
      %590 = vrot.lane.b32.xlu0 %v481, 4
      %v591 = vpop.permute.xlu0 %590
      %592 = vrot.lane.b32.xlu0 %v374, 4
      %v593 = vpop.permute.xlu0 %592
      %594 = vrot.lane.b32.xlu0 %v497, 4
      %v595 = vpop.permute.xlu0 %594
      %596 = vrot.lane.b32.xlu0 %v482, 4
      %v597 = vpop.permute.xlu0 %596
      %598 = vrot.lane.b32.xlu0 %v377, 4
      %v599 = vpop.permute.xlu0 %598
      %600 = vrot.lane.b32.xlu0 %v498, 4
      %v601 = vpop.permute.xlu0 %600
      %602 = vrot.lane.b32.xlu0 %v483, 4
      %v603 = vpop.permute.xlu0 %602
      %604 = vrot.lane.b32.xlu0 %v380, 4
      %v605 = vpop.permute.xlu0 %604
      %606 = vrot.lane.b32.xlu0 %v499, 4
      %v607 = vpop.permute.xlu0 %606
      %608 = vrot.lane.b32.xlu0 %v484, 4
      %v609 = vpop.permute.xlu0 %608
      %610 = vrot.lane.b32.xlu0 %v383, 4
      %v611 = vpop.permute.xlu0 %610
      %612 = vrot.lane.b32.xlu0 %v500, 4
      %v613 = vpop.permute.xlu0 %612
      %614 = vrot.lane.b32.xlu0 %v485, 4
      %v615 = vpop.permute.xlu0 %614
      %616 = vrot.lane.b32.xlu0 %v386, 4
      %v617 = vpop.permute.xlu0 %616
      %618 = vrot.lane.b32.xlu0 %v501, 4
      %v619 = vpop.permute.xlu0 %618
      %620 = vrot.lane.b32.xlu0 %v486, 4
      %v621 = vpop.permute.xlu0 %620
      %622 = vrot.lane.b32.xlu0 %v389, 4
      %v623 = vpop.permute.xlu0 %622
      %624 = vrot.lane.b32.xlu0 %v502, 4
      %v625 = vpop.permute.xlu0 %624
      %626 = vrot.lane.b32.xlu0 %v487, 4
      %v627 = vpop.permute.xlu0 %626
      %628 = vrot.lane.b32.xlu0 %v392, 4
      %v629 = vpop.permute.xlu0 %628
      %630 = vrot.lane.b32.xlu0 %v503, 4
      %v631 = vpop.permute.xlu0 %630
      %680 = vrot.lane.b32.xlu0 %v473, 8
      %v681 = vpop.permute.xlu0 %680
      %682 = vrot.lane.b32.xlu0 %v350, 8
      %v683 = vpop.permute.xlu0 %682
      %684 = vrot.lane.b32.xlu0 %v489, 8
      %v685 = vpop.permute.xlu0 %684
      %686 = vrot.lane.b32.xlu0 %v474, 8
      %v687 = vpop.permute.xlu0 %686
      %688 = vrot.lane.b32.xlu0 %v353, 8
      %v689 = vpop.permute.xlu0 %688
      %690 = vrot.lane.b32.xlu0 %v490, 8
      %v691 = vpop.permute.xlu0 %690
      %692 = vrot.lane.b32.xlu0 %v475, 8
      %v693 = vpop.permute.xlu0 %692
      %694 = vrot.lane.b32.xlu0 %v356, 8
      %v695 = vpop.permute.xlu0 %694
      %696 = vrot.lane.b32.xlu0 %v491, 8
      %v697 = vpop.permute.xlu0 %696
      %698 = vrot.lane.b32.xlu0 %v476, 8
      %v699 = vpop.permute.xlu0 %698
      %700 = vrot.lane.b32.xlu0 %v359, 8
      %v701 = vpop.permute.xlu0 %700
      %702 = vrot.lane.b32.xlu0 %v492, 8
      %v703 = vpop.permute.xlu0 %702
      %704 = vrot.lane.b32.xlu0 %v477, 8
      %v705 = vpop.permute.xlu0 %704
      %706 = vrot.lane.b32.xlu0 %v362, 8
      %v707 = vpop.permute.xlu0 %706
      %708 = vrot.lane.b32.xlu0 %v493, 8
      %v709 = vpop.permute.xlu0 %708
      %710 = vrot.lane.b32.xlu0 %v478, 8
      %v711 = vpop.permute.xlu0 %710
      %712 = vrot.lane.b32.xlu0 %v365, 8
      %v713 = vpop.permute.xlu0 %712
      %714 = vrot.lane.b32.xlu0 %v494, 8
      %v715 = vpop.permute.xlu0 %714
      %716 = vrot.lane.b32.xlu0 %v479, 8
      %v717 = vpop.permute.xlu0 %716
      %718 = vrot.lane.b32.xlu0 %v368, 8
      %v719 = vpop.permute.xlu0 %718
      %720 = vrot.lane.b32.xlu0 %v495, 8
      %v721 = vpop.permute.xlu0 %720
      %722 = vrot.lane.b32.xlu0 %v480, 8
      %v723 = vpop.permute.xlu0 %722
      %724 = vrot.lane.b32.xlu0 %v371, 8
      %v725 = vpop.permute.xlu0 %724
      %726 = vrot.lane.b32.xlu0 %v496, 8
      %v727 = vpop.permute.xlu0 %726
      %728 = vrot.lane.b32.xlu0 %v481, 8
      %v729 = vpop.permute.xlu0 %728
      %730 = vrot.lane.b32.xlu0 %v374, 8
      %v731 = vpop.permute.xlu0 %730
      %732 = vrot.lane.b32.xlu0 %v497, 8
      %v733 = vpop.permute.xlu0 %732
      %734 = vrot.lane.b32.xlu0 %v482, 8
      %v735 = vpop.permute.xlu0 %734
      %736 = vrot.lane.b32.xlu0 %v377, 8
      %v737 = vpop.permute.xlu0 %736
      %738 = vrot.lane.b32.xlu0 %v498, 8
      %v739 = vpop.permute.xlu0 %738
      %740 = vrot.lane.b32.xlu0 %v483, 8
      %v741 = vpop.permute.xlu0 %740
      %742 = vrot.lane.b32.xlu0 %v380, 8
      %v743 = vpop.permute.xlu0 %742
      %744 = vrot.lane.b32.xlu0 %v499, 8
      %v745 = vpop.permute.xlu0 %744
      %746 = vrot.lane.b32.xlu0 %v484, 8
      %v747 = vpop.permute.xlu0 %746
      %748 = vrot.lane.b32.xlu0 %v383, 8
      %v749 = vpop.permute.xlu0 %748
      %750 = vrot.lane.b32.xlu0 %v500, 8
      %v751 = vpop.permute.xlu0 %750
      %752 = vrot.lane.b32.xlu0 %v485, 8
      %v753 = vpop.permute.xlu0 %752
      %754 = vrot.lane.b32.xlu0 %v386, 8
      %v755 = vpop.permute.xlu0 %754
      %756 = vrot.lane.b32.xlu0 %v501, 8
      %v757 = vpop.permute.xlu0 %756
      %758 = vrot.lane.b32.xlu0 %v486, 8
      %v759 = vpop.permute.xlu0 %758
      %760 = vrot.lane.b32.xlu0 %v389, 8
      %v761 = vpop.permute.xlu0 %760
      %762 = vrot.lane.b32.xlu0 %v502, 8
      %v763 = vpop.permute.xlu0 %762
      %764 = vrot.lane.b32.xlu0 %v487, 8
      %v765 = vpop.permute.xlu0 %764
      %766 = vrot.lane.b32.xlu0 %v392, 8
      %v767 = vpop.permute.xlu0 %766
      %768 = vrot.lane.b32.xlu0 %v503, 8
      %v769 = vpop.permute.xlu0 %768
      %vm815 = vcmask 31744
      %v816 = vsel %vm815, %v472, %v537
      %v817 = vsel %vm815, %v347, %v539
      %v818 = vsel %vm815, %v488, %v541
      %v819 = vsel %vm815, %v472, %v543
      %v820 = vsel %vm815, %v347, %v545
      %v821 = vsel %vm815, %v488, %v547
      %v822 = vsel %vm815, %v473, %v549
      %v823 = vsel %vm815, %v350, %v551
      %v824 = vsel %vm815, %v489, %v553
      %v825 = vsel %vm815, %v474, %v555
      %v826 = vsel %vm815, %v353, %v557
      %v827 = vsel %vm815, %v490, %v559
      %v828 = vsel %vm815, %v475, %v561
      %v829 = vsel %vm815, %v356, %v563
      %v830 = vsel %vm815, %v491, %v565
      %v831 = vsel %vm815, %v476, %v567
      %v832 = vsel %vm815, %v359, %v569
      %v833 = vsel %vm815, %v492, %v571
      %v834 = vsel %vm815, %v477, %v573
      %v835 = vsel %vm815, %v362, %v575
      %v836 = vsel %vm815, %v493, %v577
      %v837 = vsel %vm815, %v478, %v579
      %v838 = vsel %vm815, %v365, %v581
      %v839 = vsel %vm815, %v494, %v583
      %v840 = vsel %vm815, %v479, %v585
      %v841 = vsel %vm815, %v368, %v587
      %v842 = vsel %vm815, %v495, %v589
      %v843 = vsel %vm815, %v480, %v591
      %v844 = vsel %vm815, %v371, %v593
      %v845 = vsel %vm815, %v496, %v595
      %v846 = vsel %vm815, %v481, %v597
      %v847 = vsel %vm815, %v374, %v599
      %v848 = vsel %vm815, %v497, %v601
      %v849 = vsel %vm815, %v482, %v603
      %v850 = vsel %vm815, %v377, %v605
      %v851 = vsel %vm815, %v498, %v607
      %v852 = vsel %vm815, %v483, %v609
      %v853 = vsel %vm815, %v380, %v611
      %v854 = vsel %vm815, %v499, %v613
      %v855 = vsel %vm815, %v484, %v615
      %v856 = vsel %vm815, %v383, %v617
      %v857 = vsel %vm815, %v500, %v619
      %v858 = vsel %vm815, %v485, %v621
      %v859 = vsel %vm815, %v386, %v623
      %v860 = vsel %vm815, %v501, %v625
      %v861 = vsel %vm815, %v486, %v627
      %v862 = vsel %vm815, %v389, %v629
      %v863 = vsel %vm815, %v502, %v631
      %vm864 = vcmask 64512
      %v865 = vsel %vm864, %v816, %v681
      %v866 = vsel %vm864, %v817, %v683
      %v867 = vsel %vm864, %v818, %v685
      %v868 = vsel %vm864, %v819, %v687
      %v869 = vsel %vm864, %v820, %v689
      %v870 = vsel %vm864, %v821, %v691
      %v871 = vsel %vm864, %v822, %v693
      %v872 = vsel %vm864, %v823, %v695
      %v873 = vsel %vm864, %v824, %v697
      %v874 = vsel %vm864, %v825, %v699
      %v875 = vsel %vm864, %v826, %v701
      %v876 = vsel %vm864, %v827, %v703
      %v877 = vsel %vm864, %v828, %v705
      %v878 = vsel %vm864, %v829, %v707
      %v879 = vsel %vm864, %v830, %v709
      %v880 = vsel %vm864, %v831, %v711
      %v881 = vsel %vm864, %v832, %v713
      %v882 = vsel %vm864, %v833, %v715
      %v883 = vsel %vm864, %v834, %v717
      %v884 = vsel %vm864, %v835, %v719
      %v885 = vsel %vm864, %v836, %v721
      %v886 = vsel %vm864, %v837, %v723
      %v887 = vsel %vm864, %v838, %v725
      %v888 = vsel %vm864, %v839, %v727
      %v889 = vsel %vm864, %v840, %v729
      %v890 = vsel %vm864, %v841, %v731
      %v891 = vsel %vm864, %v842, %v733
      %v892 = vsel %vm864, %v843, %v735
      %v893 = vsel %vm864, %v844, %v737
      %v894 = vsel %vm864, %v845, %v739
      %v895 = vsel %vm864, %v846, %v741
      %v896 = vsel %vm864, %v847, %v743
      %v897 = vsel %vm864, %v848, %v745
      %v898 = vsel %vm864, %v849, %v747
      %v899 = vsel %vm864, %v850, %v749
      %v900 = vsel %vm864, %v851, %v751
      %v901 = vsel %vm864, %v852, %v753
      %v902 = vsel %vm864, %v853, %v755
      %v903 = vsel %vm864, %v854, %v757
      %v904 = vsel %vm864, %v855, %v759
      %v905 = vsel %vm864, %v856, %v761
      %v906 = vsel %vm864, %v857, %v763
      %v907 = vsel %vm864, %v858, %v765
      %v908 = vsel %vm864, %v859, %v767
      %v909 = vsel %vm864, %v860, %v769
      %v910 = vsel %vm864, %v861, %v765
      %v911 = vsel %vm864, %v862, %v767
      %v912 = vsel %vm864, %v863, %v769
      %vm961 = vcmask 1046528
      %v962 = vrot.slane %v865, 1
      %v963 = vrot.slane %v866, 1
      %v964 = vsel %vm961, %v962, %v963
      %v965 = vrot.slane %v867, 1
      %v966 = vsel %vm961, %v963, %v965
      %v967 = vrot.slane %v868, 1
      %v968 = vrot.slane %v869, 1
      %v969 = vsel %vm961, %v967, %v968
      %v970 = vrot.slane %v870, 1
      %v971 = vsel %vm961, %v968, %v970
      %v972 = vrot.slane %v871, 1
      %v973 = vrot.slane %v872, 1
      %v974 = vsel %vm961, %v972, %v973
      %v975 = vrot.slane %v873, 1
      %v976 = vsel %vm961, %v973, %v975
      %v977 = vrot.slane %v874, 1
      %v978 = vrot.slane %v875, 1
      %v979 = vsel %vm961, %v977, %v978
      %v980 = vrot.slane %v876, 1
      %v981 = vsel %vm961, %v978, %v980
      %v982 = vrot.slane %v877, 1
      %v983 = vrot.slane %v878, 1
      %v984 = vsel %vm961, %v982, %v983
      %v985 = vrot.slane %v879, 1
      %v986 = vsel %vm961, %v983, %v985
      %v987 = vrot.slane %v880, 1
      %v988 = vrot.slane %v881, 1
      %v989 = vsel %vm961, %v987, %v988
      %v990 = vrot.slane %v882, 1
      %v991 = vsel %vm961, %v988, %v990
      %v992 = vrot.slane %v883, 1
      %v993 = vrot.slane %v884, 1
      %v994 = vsel %vm961, %v992, %v993
      %v995 = vrot.slane %v885, 1
      %v996 = vsel %vm961, %v993, %v995
      %v997 = vrot.slane %v886, 1
      %v998 = vrot.slane %v887, 1
      %v999 = vsel %vm961, %v997, %v998
      %v1000 = vrot.slane %v888, 1
      %v1001 = vsel %vm961, %v998, %v1000
      %v1002 = vrot.slane %v889, 1
      %v1003 = vrot.slane %v890, 1
      %v1004 = vsel %vm961, %v1002, %v1003
      %v1005 = vrot.slane %v891, 1
      %v1006 = vsel %vm961, %v1003, %v1005
      %v1007 = vrot.slane %v892, 1
      %v1008 = vrot.slane %v893, 1
      %v1009 = vsel %vm961, %v1007, %v1008
      %v1010 = vrot.slane %v894, 1
      %v1011 = vsel %vm961, %v1008, %v1010
      %v1012 = vrot.slane %v895, 1
      %v1013 = vrot.slane %v896, 1
      %v1014 = vsel %vm961, %v1012, %v1013
      %v1015 = vrot.slane %v897, 1
      %v1016 = vsel %vm961, %v1013, %v1015
      %v1017 = vrot.slane %v898, 1
      %v1018 = vrot.slane %v899, 1
      %v1019 = vsel %vm961, %v1017, %v1018
      %v1020 = vrot.slane %v900, 1
      %v1021 = vsel %vm961, %v1018, %v1020
      %v1022 = vrot.slane %v901, 1
      %v1023 = vrot.slane %v902, 1
      %v1024 = vsel %vm961, %v1022, %v1023
      %v1025 = vrot.slane %v903, 1
      %v1026 = vsel %vm961, %v1023, %v1025
      %v1027 = vrot.slane %v904, 1
      %v1028 = vrot.slane %v905, 1
      %v1029 = vsel %vm961, %v1027, %v1028
      %v1030 = vrot.slane %v906, 1
      %v1031 = vsel %vm961, %v1028, %v1030
      %v1032 = vrot.slane %v907, 1
      %v1033 = vrot.slane %v908, 1
      %v1034 = vsel %vm961, %v1032, %v1033
      %v1035 = vrot.slane %v909, 1
      %v1036 = vsel %vm961, %v1033, %v1035
      %v1037 = vrot.slane %v910, 1
      %v1038 = vrot.slane %v911, 1
      %v1039 = vsel %vm961, %v1037, %v1038
      %v1040 = vrot.slane %v912, 1
      %v1041 = vsel %vm961, %v1038, %v1040
      %1042 = vrot.lane.b32.xlu0 %v964, 12
      %v1043 = vpop.permute.xlu0 %1042
      %1044 = vrot.lane.b32.xlu0 %v966, 12
      %v1045 = vpop.permute.xlu0 %1044
      %1046 = vrot.lane.b32.xlu0 %v969, 12
      %v1047 = vpop.permute.xlu0 %1046
      %1048 = vrot.lane.b32.xlu0 %v971, 12
      %v1049 = vpop.permute.xlu0 %1048
      %1050 = vrot.lane.b32.xlu0 %v974, 12
      %v1051 = vpop.permute.xlu0 %1050
      %1052 = vrot.lane.b32.xlu0 %v976, 12
      %v1053 = vpop.permute.xlu0 %1052
      %1054 = vrot.lane.b32.xlu0 %v979, 12
      %v1055 = vpop.permute.xlu0 %1054
      %1056 = vrot.lane.b32.xlu0 %v981, 12
      %v1057 = vpop.permute.xlu0 %1056
      %1058 = vrot.lane.b32.xlu0 %v984, 12
      %v1059 = vpop.permute.xlu0 %1058
      %1060 = vrot.lane.b32.xlu0 %v986, 12
      %v1061 = vpop.permute.xlu0 %1060
      %1062 = vrot.lane.b32.xlu0 %v989, 12
      %v1063 = vpop.permute.xlu0 %1062
      %1064 = vrot.lane.b32.xlu0 %v991, 12
      %v1065 = vpop.permute.xlu0 %1064
      %1066 = vrot.lane.b32.xlu0 %v994, 12
      %v1067 = vpop.permute.xlu0 %1066
      %1068 = vrot.lane.b32.xlu0 %v996, 12
      %v1069 = vpop.permute.xlu0 %1068
      %1070 = vrot.lane.b32.xlu0 %v999, 12
      %v1071 = vpop.permute.xlu0 %1070
      %1072 = vrot.lane.b32.xlu0 %v1001, 12
      %v1073 = vpop.permute.xlu0 %1072
      %1074 = vrot.lane.b32.xlu0 %v1004, 12
      %v1075 = vpop.permute.xlu0 %1074
      %1076 = vrot.lane.b32.xlu0 %v1006, 12
      %v1077 = vpop.permute.xlu0 %1076
      %1078 = vrot.lane.b32.xlu0 %v1009, 12
      %v1079 = vpop.permute.xlu0 %1078
      %1080 = vrot.lane.b32.xlu0 %v1011, 12
      %v1081 = vpop.permute.xlu0 %1080
      %1082 = vrot.lane.b32.xlu0 %v1014, 12
      %v1083 = vpop.permute.xlu0 %1082
      %1084 = vrot.lane.b32.xlu0 %v1016, 12
      %v1085 = vpop.permute.xlu0 %1084
      %1086 = vrot.lane.b32.xlu0 %v1019, 12
      %v1087 = vpop.permute.xlu0 %1086
      %1088 = vrot.lane.b32.xlu0 %v1021, 12
      %v1089 = vpop.permute.xlu0 %1088
      %1090 = vrot.lane.b32.xlu0 %v1024, 12
      %v1091 = vpop.permute.xlu0 %1090
      %1092 = vrot.lane.b32.xlu0 %v1026, 12
      %v1093 = vpop.permute.xlu0 %1092
      %1094 = vrot.lane.b32.xlu0 %v1029, 12
      %v1095 = vpop.permute.xlu0 %1094
      %1096 = vrot.lane.b32.xlu0 %v1031, 12
      %v1097 = vpop.permute.xlu0 %1096
      %1098 = vrot.lane.b32.xlu0 %v1034, 12
      %v1099 = vpop.permute.xlu0 %1098
      %1100 = vrot.lane.b32.xlu0 %v1036, 12
      %v1101 = vpop.permute.xlu0 %1100
      %1102 = vrot.lane.b32.xlu0 %v1039, 12
      %v1103 = vpop.permute.xlu0 %1102
      %1104 = vrot.lane.b32.xlu0 %v1041, 12
      %v1105 = vpop.permute.xlu0 %1104
      %vm1138 = vcmask 1045504
      %v1139 = vrot.slane %v865, 2
      %v1140 = vrot.slane %v866, 2
      %v1141 = vsel %vm1138, %v1139, %v1140
      %v1142 = vrot.slane %v867, 2
      %v1143 = vsel %vm1138, %v1140, %v1142
      %v1144 = vrot.slane %v868, 2
      %v1145 = vrot.slane %v869, 2
      %v1146 = vsel %vm1138, %v1144, %v1145
      %v1147 = vrot.slane %v870, 2
      %v1148 = vsel %vm1138, %v1145, %v1147
      %v1149 = vrot.slane %v871, 2
      %v1150 = vrot.slane %v872, 2
      %v1151 = vsel %vm1138, %v1149, %v1150
      %v1152 = vrot.slane %v873, 2
      %v1153 = vsel %vm1138, %v1150, %v1152
      %v1154 = vrot.slane %v874, 2
      %v1155 = vrot.slane %v875, 2
      %v1156 = vsel %vm1138, %v1154, %v1155
      %v1157 = vrot.slane %v876, 2
      %v1158 = vsel %vm1138, %v1155, %v1157
      %v1159 = vrot.slane %v877, 2
      %v1160 = vrot.slane %v878, 2
      %v1161 = vsel %vm1138, %v1159, %v1160
      %v1162 = vrot.slane %v879, 2
      %v1163 = vsel %vm1138, %v1160, %v1162
      %v1164 = vrot.slane %v880, 2
      %v1165 = vrot.slane %v881, 2
      %v1166 = vsel %vm1138, %v1164, %v1165
      %v1167 = vrot.slane %v882, 2
      %v1168 = vsel %vm1138, %v1165, %v1167
      %v1169 = vrot.slane %v883, 2
      %v1170 = vrot.slane %v884, 2
      %v1171 = vsel %vm1138, %v1169, %v1170
      %v1172 = vrot.slane %v885, 2
      %v1173 = vsel %vm1138, %v1170, %v1172
      %v1174 = vrot.slane %v886, 2
      %v1175 = vrot.slane %v887, 2
      %v1176 = vsel %vm1138, %v1174, %v1175
      %v1177 = vrot.slane %v888, 2
      %v1178 = vsel %vm1138, %v1175, %v1177
      %v1179 = vrot.slane %v889, 2
      %v1180 = vrot.slane %v890, 2
      %v1181 = vsel %vm1138, %v1179, %v1180
      %v1182 = vrot.slane %v891, 2
      %v1183 = vsel %vm1138, %v1180, %v1182
      %v1184 = vrot.slane %v892, 2
      %v1185 = vrot.slane %v893, 2
      %v1186 = vsel %vm1138, %v1184, %v1185
      %v1187 = vrot.slane %v894, 2
      %v1188 = vsel %vm1138, %v1185, %v1187
      %v1189 = vrot.slane %v895, 2
      %v1190 = vrot.slane %v896, 2
      %v1191 = vsel %vm1138, %v1189, %v1190
      %v1192 = vrot.slane %v897, 2
      %v1193 = vsel %vm1138, %v1190, %v1192
      %v1194 = vrot.slane %v898, 2
      %v1195 = vrot.slane %v899, 2
      %v1196 = vsel %vm1138, %v1194, %v1195
      %v1197 = vrot.slane %v900, 2
      %v1198 = vsel %vm1138, %v1195, %v1197
      %v1199 = vrot.slane %v901, 2
      %v1200 = vrot.slane %v902, 2
      %v1201 = vsel %vm1138, %v1199, %v1200
      %v1202 = vrot.slane %v903, 2
      %v1203 = vsel %vm1138, %v1200, %v1202
      %v1204 = vrot.slane %v904, 2
      %v1205 = vrot.slane %v905, 2
      %v1206 = vsel %vm1138, %v1204, %v1205
      %v1207 = vrot.slane %v906, 2
      %v1208 = vsel %vm1138, %v1205, %v1207
      %v1209 = vrot.slane %v907, 2
      %v1210 = vrot.slane %v908, 2
      %v1211 = vsel %vm1138, %v1209, %v1210
      %v1212 = vrot.slane %v909, 2
      %v1213 = vsel %vm1138, %v1210, %v1212
      %v1214 = vrot.slane %v910, 2
      %v1215 = vrot.slane %v911, 2
      %v1216 = vsel %vm1138, %v1214, %v1215
      %v1217 = vrot.slane %v912, 2
      %v1218 = vsel %vm1138, %v1215, %v1217
      %1219 = vrot.lane.b32.xlu0 %v1141, 24
      %v1220 = vpop.permute.xlu0 %1219
      %1221 = vrot.lane.b32.xlu0 %v1143, 24
      %v1222 = vpop.permute.xlu0 %1221
      %1223 = vrot.lane.b32.xlu0 %v1146, 24
      %v1224 = vpop.permute.xlu0 %1223
      %1225 = vrot.lane.b32.xlu0 %v1148, 24
      %v1226 = vpop.permute.xlu0 %1225
      %1227 = vrot.lane.b32.xlu0 %v1151, 24
      %v1228 = vpop.permute.xlu0 %1227
      %1229 = vrot.lane.b32.xlu0 %v1153, 24
      %v1230 = vpop.permute.xlu0 %1229
      %1231 = vrot.lane.b32.xlu0 %v1156, 24
      %v1232 = vpop.permute.xlu0 %1231
      %1233 = vrot.lane.b32.xlu0 %v1158, 24
      %v1234 = vpop.permute.xlu0 %1233
      %1235 = vrot.lane.b32.xlu0 %v1161, 24
      %v1236 = vpop.permute.xlu0 %1235
      %1237 = vrot.lane.b32.xlu0 %v1163, 24
      %v1238 = vpop.permute.xlu0 %1237
      %1239 = vrot.lane.b32.xlu0 %v1166, 24
      %v1240 = vpop.permute.xlu0 %1239
      %1241 = vrot.lane.b32.xlu0 %v1168, 24
      %v1242 = vpop.permute.xlu0 %1241
      %1243 = vrot.lane.b32.xlu0 %v1171, 24
      %v1244 = vpop.permute.xlu0 %1243
      %1245 = vrot.lane.b32.xlu0 %v1173, 24
      %v1246 = vpop.permute.xlu0 %1245
      %1247 = vrot.lane.b32.xlu0 %v1176, 24
      %v1248 = vpop.permute.xlu0 %1247
      %1249 = vrot.lane.b32.xlu0 %v1178, 24
      %v1250 = vpop.permute.xlu0 %1249
      %1251 = vrot.lane.b32.xlu0 %v1181, 24
      %v1252 = vpop.permute.xlu0 %1251
      %1253 = vrot.lane.b32.xlu0 %v1183, 24
      %v1254 = vpop.permute.xlu0 %1253
      %1255 = vrot.lane.b32.xlu0 %v1186, 24
      %v1256 = vpop.permute.xlu0 %1255
      %1257 = vrot.lane.b32.xlu0 %v1188, 24
      %v1258 = vpop.permute.xlu0 %1257
      %1259 = vrot.lane.b32.xlu0 %v1191, 24
      %v1260 = vpop.permute.xlu0 %1259
      %1261 = vrot.lane.b32.xlu0 %v1193, 24
      %v1262 = vpop.permute.xlu0 %1261
      %1263 = vrot.lane.b32.xlu0 %v1196, 24
      %v1264 = vpop.permute.xlu0 %1263
      %1265 = vrot.lane.b32.xlu0 %v1198, 24
      %v1266 = vpop.permute.xlu0 %1265
      %1267 = vrot.lane.b32.xlu0 %v1201, 24
      %v1268 = vpop.permute.xlu0 %1267
      %1269 = vrot.lane.b32.xlu0 %v1203, 24
      %v1270 = vpop.permute.xlu0 %1269
      %1271 = vrot.lane.b32.xlu0 %v1206, 24
      %v1272 = vpop.permute.xlu0 %1271
      %1273 = vrot.lane.b32.xlu0 %v1208, 24
      %v1274 = vpop.permute.xlu0 %1273
      %1275 = vrot.lane.b32.xlu0 %v1211, 24
      %v1276 = vpop.permute.xlu0 %1275
      %1277 = vrot.lane.b32.xlu0 %v1213, 24
      %v1278 = vpop.permute.xlu0 %1277
      %1279 = vrot.lane.b32.xlu0 %v1216, 24
      %v1280 = vpop.permute.xlu0 %1279
      %1281 = vrot.lane.b32.xlu0 %v1218, 24
      %v1282 = vpop.permute.xlu0 %1281
      %vm1315 = vcmask 97280
      %v1316 = vsel %vm1315, %v865, %v1043
      %v1317 = vsel %vm1315, %v866, %v1045
      %v1318 = vsel %vm1315, %v868, %v1047
      %v1319 = vsel %vm1315, %v869, %v1049
      %v1320 = vsel %vm1315, %v871, %v1051
      %v1321 = vsel %vm1315, %v872, %v1053
      %v1322 = vsel %vm1315, %v874, %v1055
      %v1323 = vsel %vm1315, %v875, %v1057
      %v1324 = vsel %vm1315, %v877, %v1059
      %v1325 = vsel %vm1315, %v878, %v1061
      %v1326 = vsel %vm1315, %v880, %v1063
      %v1327 = vsel %vm1315, %v881, %v1065
      %v1328 = vsel %vm1315, %v883, %v1067
      %v1329 = vsel %vm1315, %v884, %v1069
      %v1330 = vsel %vm1315, %v886, %v1071
      %v1331 = vsel %vm1315, %v887, %v1073
      %v1332 = vsel %vm1315, %v889, %v1075
      %v1333 = vsel %vm1315, %v890, %v1077
      %v1334 = vsel %vm1315, %v892, %v1079
      %v1335 = vsel %vm1315, %v893, %v1081
      %v1336 = vsel %vm1315, %v895, %v1083
      %v1337 = vsel %vm1315, %v896, %v1085
      %v1338 = vsel %vm1315, %v898, %v1087
      %v1339 = vsel %vm1315, %v899, %v1089
      %v1340 = vsel %vm1315, %v901, %v1091
      %v1341 = vsel %vm1315, %v902, %v1093
      %v1342 = vsel %vm1315, %v904, %v1095
      %v1343 = vsel %vm1315, %v905, %v1097
      %v1344 = vsel %vm1315, %v907, %v1099
      %v1345 = vsel %vm1315, %v908, %v1101
      %v1346 = vsel %vm1315, %v910, %v1103
      %v1347 = vsel %vm1315, %v911, %v1105
      %vm1348 = vcmask 195584
      %v1349 = vsel %vm1348, %v1316, %v1220
      %v1350 = vsel %vm1348, %v1317, %v1222
      %v1351 = vsel %vm1348, %v1318, %v1224
      %v1352 = vsel %vm1348, %v1319, %v1226
      %v1353 = vsel %vm1348, %v1320, %v1228
      %v1354 = vsel %vm1348, %v1321, %v1230
      %v1355 = vsel %vm1348, %v1322, %v1232
      %v1356 = vsel %vm1348, %v1323, %v1234
      %v1357 = vsel %vm1348, %v1324, %v1236
      %v1358 = vsel %vm1348, %v1325, %v1238
      %v1359 = vsel %vm1348, %v1326, %v1240
      %v1360 = vsel %vm1348, %v1327, %v1242
      %v1361 = vsel %vm1348, %v1328, %v1244
      %v1362 = vsel %vm1348, %v1329, %v1246
      %v1363 = vsel %vm1348, %v1330, %v1248
      %v1364 = vsel %vm1348, %v1331, %v1250
      %v1365 = vsel %vm1348, %v1332, %v1252
      %v1366 = vsel %vm1348, %v1333, %v1254
      %v1367 = vsel %vm1348, %v1334, %v1256
      %v1368 = vsel %vm1348, %v1335, %v1258
      %v1369 = vsel %vm1348, %v1336, %v1260
      %v1370 = vsel %vm1348, %v1337, %v1262
      %v1371 = vsel %vm1348, %v1338, %v1264
      %v1372 = vsel %vm1348, %v1339, %v1266
      %v1373 = vsel %vm1348, %v1340, %v1268
      %v1374 = vsel %vm1348, %v1341, %v1270
      %v1375 = vsel %vm1348, %v1342, %v1272
      %v1376 = vsel %vm1348, %v1343, %v1274
      %v1377 = vsel %vm1348, %v1344, %v1276
      %v1378 = vsel %vm1348, %v1345, %v1278
      %v1379 = vsel %vm1348, %v1346, %v1280
      %v1380 = vsel %vm1348, %v1347, %v1282
      %v1381 = vpack.c.bf16 %v1350, %v1349
      %v1382 = vpack.c.bf16 %v1352, %v1351
      %v1383 = vpack.c.bf16 %v1354, %v1353
      %v1384 = vpack.c.bf16 %v1356, %v1355
      %v1385 = vpack.c.bf16 %v1358, %v1357
      %v1386 = vpack.c.bf16 %v1360, %v1359
      %v1387 = vpack.c.bf16 %v1362, %v1361
      %v1388 = vpack.c.bf16 %v1364, %v1363
      %v1389 = vpack.c.bf16 %v1366, %v1365
      %v1390 = vpack.c.bf16 %v1368, %v1367
      %v1391 = vpack.c.bf16 %v1370, %v1369
      %v1392 = vpack.c.bf16 %v1372, %v1371
      %v1393 = vpack.c.bf16 %v1374, %v1373
      %v1394 = vpack.c.bf16 %v1376, %v1375
      %v1395 = vpack.c.bf16 %v1378, %v1377
      %v1396 = vpack.c.bf16 %v1380, %v1379
      %v1397 = vld [vmem:[%s1] sm:$0xf]
      %v1398 = vld [vmem:[%s1 + $0x4] sm:$0xf]
      %v1399 = vld [vmem:[%s1 + $0x8] sm:$0xf]
      %v1400 = vld [vmem:[%s1 + $0xc] sm:$0xf]
      %v1401 = vld [vmem:[%s1 + $0x10] sm:$0x3]
      %v1402 = vld [vmem:[%s2] sm:$0x1]
      %v1404 = vlaneseq
      %v1405 = vshrl.u32 %v1404, 7
      %v1406 = vsub.s32 0, %v1405
      %v1407 = vrot.slane %v1402, %v1406
      %v1414 = vunpack.c.l.b16 %v1397
      %v1415 = vunpack.c.l.b16 %v1398
      %v1416 = vunpack.c.l.b16 %v1399
      %v1417 = vunpack.c.l.b16 %v1400
      %v1418 = vunpack.c.l.b16 %v1401
      %v1419 = vpack.c.b16 %v1415, %v1414
      %v1420 = vpack.c.b16 %v1417, %v1416
      %v1421 = vpack.c.b16 %v1418, %v1418
      %vm1424 = vcmask 293888
      %v1426 = vsel %vm1424, %v1381, 0
      %v1429 = vsel %vm1424, %v1382, 0
      %v1432 = vsel %vm1424, %v1383, 0
      %v1435 = vsel %vm1424, %v1384, 0
      %v1438 = vsel %vm1424, %v1385, 0
      %v1441 = vsel %vm1424, %v1386, 0
      %v1444 = vsel %vm1424, %v1387, 0
      %v1447 = vsel %vm1424, %v1388, 0
      %v1450 = vsel %vm1424, %v1389, 0
      %v1453 = vsel %vm1424, %v1390, 0
      %v1456 = vsel %vm1424, %v1391, 0
      %v1459 = vsel %vm1424, %v1392, 0
      %v1462 = vsel %vm1424, %v1393, 0
      %v1465 = vsel %vm1424, %v1394, 0
      %v1468 = vsel %vm1424, %v1395, 0
      %v1471 = vsel %vm1424, %v1396, 0
      %vm1473 = vcmask 1041408
      %v1475 = vsel %vm1473, %v1421, 0
      %1477 = vmatprep.subr.bf16.mxu0 0
      %1478 = vmatpush1.bf16.msra.mxu0 %v1419
      %1479 = vmatprep.subr.bf16.mxu0 0
      %1480 = vmatpush1.bf16.msra.mxu0 %v1420
      %1481 = vmatprep.subr.bf16.mxu0 0
      %1482 = vmatpush1.bf16.msra.mxu0 %v1475
      %1483 = vmatprep.subr.bf16.mxu0 0
      %1484 = vmatpush1.bf16.msra.mxu0 0
      %1485 = vmatprep.subr.bf16.mxu0 0
      %1486 = vmatpush1.bf16.msra.mxu0 0
      %1487 = vmatprep.subr.bf16.mxu0 0
      %1488 = vmatpush1.bf16.msra.mxu0 0
      %1489 = vmatprep.subr.bf16.mxu0 0
      %1490 = vmatpush1.bf16.msra.mxu0 0
      %1491 = vmatprep.subr.bf16.mxu0 0
      %1492 = vmatpush1.bf16.msra.mxu0 0
      %1493 = vmatprep.subr.bf16.mxu0 0
      %1494 = vmatpush1.bf16.msra.mxu0 0
      %1495 = vmatprep.subr.bf16.mxu0 0
      %1496 = vmatpush1.bf16.msra.mxu0 0
      %1497 = vmatprep.subr.bf16.mxu0 0
      %1498 = vmatpush1.bf16.msra.mxu0 0
      %1499 = vmatprep.subr.bf16.mxu0 0
      %1500 = vmatpush1.bf16.msra.mxu0 0
      %1501 = vmatprep.subr.bf16.mxu0 0
      %1502 = vmatpush1.bf16.msra.mxu0 0
      %1503 = vmatprep.subr.bf16.mxu0 0
      %1504 = vmatpush1.bf16.msra.mxu0 0
      %1505 = vmatprep.subr.bf16.mxu0 0
      %1506 = vmatpush1.bf16.msra.mxu0 0
      %1507 = vmatprep.subr.bf16.mxu0 0
      %1508 = vmatpush1.bf16.msra.mxu0 0
      %1509 = vmatprep.mubr.bf16.mxu0 0
      %1510 = vmatmul.mubr.bf16.gmra.mrb[0].mxu0 %v1426
      %v1511 = vpop.f32.mrb[0].mxu0
      %v1512 = vadd.f32 %v1407, %v1511
      %v1513 = vpop.f32.mrb[0].mxu0
      %v1514 = vpop.f32.mrb[0].mxu0
      %v1515 = vadd.f32 %v1407, %v1514
      %v1516 = vpop.f32.mrb[0].mxu0
      %1517 = vmatprep.mubr.bf16.mxu0 0
      %1518 = vmatmul.mubr.bf16.gmra.mrb[0].mxu0 %v1429
      %v1519 = vpop.f32.mrb[0].mxu0
      %v1520 = vadd.f32 %v1407, %v1519
      %v1521 = vpop.f32.mrb[0].mxu0
      %v1522 = vpop.f32.mrb[0].mxu0
      %v1523 = vadd.f32 %v1407, %v1522
      %v1524 = vpop.f32.mrb[0].mxu0
      %1525 = vmatprep.mubr.bf16.mxu0 0
      %1526 = vmatmul.mubr.bf16.gmra.mrb[0].mxu0 %v1432
      %v1527 = vpop.f32.mrb[0].mxu0
      %v1528 = vadd.f32 %v1407, %v1527
      %v1529 = vpop.f32.mrb[0].mxu0
      %v1530 = vpop.f32.mrb[0].mxu0
      %v1531 = vadd.f32 %v1407, %v1530
      %v1532 = vpop.f32.mrb[0].mxu0
      %1533 = vmatprep.mubr.bf16.mxu0 0
      %1534 = vmatmul.mubr.bf16.gmra.mrb[0].mxu0 %v1435
      %v1535 = vpop.f32.mrb[0].mxu0
      %v1536 = vadd.f32 %v1407, %v1535
      %v1537 = vpop.f32.mrb[0].mxu0
      %v1538 = vpop.f32.mrb[0].mxu0
      %v1539 = vadd.f32 %v1407, %v1538
      %v1540 = vpop.f32.mrb[0].mxu0
      %1541 = vmatprep.mubr.bf16.mxu0 0
      %1542 = vmatmul.mubr.bf16.gmra.mrb[0].mxu0 %v1438
      %v1543 = vpop.f32.mrb[0].mxu0
      %v1544 = vadd.f32 %v1407, %v1543
      %v1545 = vpop.f32.mrb[0].mxu0
      %v1546 = vpop.f32.mrb[0].mxu0
      %v1547 = vadd.f32 %v1407, %v1546
      %v1548 = vpop.f32.mrb[0].mxu0
      %1549 = vmatprep.mubr.bf16.mxu0 0
      %1550 = vmatmul.mubr.bf16.gmra.mrb[0].mxu0 %v1441
      %v1551 = vpop.f32.mrb[0].mxu0
      %v1552 = vadd.f32 %v1407, %v1551
      %v1553 = vpop.f32.mrb[0].mxu0
      %v1554 = vpop.f32.mrb[0].mxu0
      %v1555 = vadd.f32 %v1407, %v1554
      %v1556 = vpop.f32.mrb[0].mxu0
      %1557 = vmatprep.mubr.bf16.mxu0 0
      %1558 = vmatmul.mubr.bf16.gmra.mrb[0].mxu0 %v1444
      %v1559 = vpop.f32.mrb[0].mxu0
      %v1560 = vadd.f32 %v1407, %v1559
      %v1561 = vpop.f32.mrb[0].mxu0
      %v1562 = vpop.f32.mrb[0].mxu0
      %v1563 = vadd.f32 %v1407, %v1562
      %v1564 = vpop.f32.mrb[0].mxu0
      %1565 = vmatprep.mubr.bf16.mxu0 0
      %1566 = vmatmul.mubr.bf16.gmra.mrb[0].mxu0 %v1447
      %v1567 = vpop.f32.mrb[0].mxu0
      %v1568 = vadd.f32 %v1407, %v1567
      %v1569 = vpop.f32.mrb[0].mxu0
      %v1570 = vpop.f32.mrb[0].mxu0
      %v1571 = vadd.f32 %v1407, %v1570
      %v1572 = vpop.f32.mrb[0].mxu0
      %1573 = vmatprep.mubr.bf16.mxu0 0
      %1574 = vmatmul.mubr.bf16.gmra.mrb[0].mxu0 %v1450
      %v1575 = vpop.f32.mrb[0].mxu0
      %v1576 = vadd.f32 %v1407, %v1575
      %v1577 = vpop.f32.mrb[0].mxu0
      %v1578 = vpop.f32.mrb[0].mxu0
      %v1579 = vadd.f32 %v1407, %v1578
      %v1580 = vpop.f32.mrb[0].mxu0
      %1581 = vmatprep.mubr.bf16.mxu0 0
      %1582 = vmatmul.mubr.bf16.gmra.mrb[0].mxu0 %v1453
      %v1583 = vpop.f32.mrb[0].mxu0
      %v1584 = vadd.f32 %v1407, %v1583
      %v1585 = vpop.f32.mrb[0].mxu0
      %v1586 = vpop.f32.mrb[0].mxu0
      %v1587 = vadd.f32 %v1407, %v1586
      %v1588 = vpop.f32.mrb[0].mxu0
      %1589 = vmatprep.mubr.bf16.mxu0 0
      %1590 = vmatmul.mubr.bf16.gmra.mrb[0].mxu0 %v1456
      %v1591 = vpop.f32.mrb[0].mxu0
      %v1592 = vadd.f32 %v1407, %v1591
      %v1593 = vpop.f32.mrb[0].mxu0
      %v1594 = vpop.f32.mrb[0].mxu0
      %v1595 = vadd.f32 %v1407, %v1594
      %v1596 = vpop.f32.mrb[0].mxu0
      %1597 = vmatprep.mubr.bf16.mxu0 0
      %1598 = vmatmul.mubr.bf16.gmra.mrb[0].mxu0 %v1459
      %v1599 = vpop.f32.mrb[0].mxu0
      %v1600 = vadd.f32 %v1407, %v1599
      %v1601 = vpop.f32.mrb[0].mxu0
      %v1602 = vpop.f32.mrb[0].mxu0
      %v1603 = vadd.f32 %v1407, %v1602
      %v1604 = vpop.f32.mrb[0].mxu0
      %1605 = vmatprep.mubr.bf16.mxu0 0
      %1606 = vmatmul.mubr.bf16.gmra.mrb[0].mxu0 %v1462
      %v1607 = vpop.f32.mrb[0].mxu0
      %v1608 = vadd.f32 %v1407, %v1607
      %v1609 = vpop.f32.mrb[0].mxu0
      %v1610 = vpop.f32.mrb[0].mxu0
      %v1611 = vadd.f32 %v1407, %v1610
      %v1612 = vpop.f32.mrb[0].mxu0
      %1613 = vmatprep.mubr.bf16.mxu0 0
      %1614 = vmatmul.mubr.bf16.gmra.mrb[0].mxu0 %v1465
      %v1615 = vpop.f32.mrb[0].mxu0
      %v1616 = vadd.f32 %v1407, %v1615
      %v1617 = vpop.f32.mrb[0].mxu0
      %v1618 = vpop.f32.mrb[0].mxu0
      %v1619 = vadd.f32 %v1407, %v1618
      %v1620 = vpop.f32.mrb[0].mxu0
      %1621 = vmatprep.mubr.bf16.mxu0 0
      %1622 = vmatmul.mubr.bf16.gmra.mrb[0].mxu0 %v1468
      %v1623 = vpop.f32.mrb[0].mxu0
      %v1624 = vadd.f32 %v1407, %v1623
      %v1625 = vpop.f32.mrb[0].mxu0
      %v1626 = vpop.f32.mrb[0].mxu0
      %v1627 = vadd.f32 %v1407, %v1626
      %v1628 = vpop.f32.mrb[0].mxu0
      %1629 = vmatprep.mubr.bf16.mxu0 0
      %1630 = vmatmul.mubr.bf16.gmra.mrb[0].mxu0 %v1471
      %v1631 = vpop.f32.mrb[0].mxu0
      %v1632 = vadd.f32 %v1407, %v1631
      %v1633 = vpop.f32.mrb[0].mxu0
      %v1634 = vpop.f32.mrb[0].mxu0
      %v1635 = vadd.f32 %v1407, %v1634
      %v1636 = vpop.f32.mrb[0].mxu0
      %1637 = vdwg.mxu0
      %v1638 = vmax.f32 %v1512, 0.0
      %v1639 = vmax.f32 %v1515, 0.0
      %v1640 = vmax.f32 %v1520, 0.0
      %v1641 = vmax.f32 %v1523, 0.0
      %v1642 = vmax.f32 %v1528, 0.0
      %v1643 = vmax.f32 %v1531, 0.0
      %v1644 = vmax.f32 %v1536, 0.0
      %v1645 = vmax.f32 %v1539, 0.0
      %v1646 = vmax.f32 %v1544, 0.0
      %v1647 = vmax.f32 %v1547, 0.0
      %v1648 = vmax.f32 %v1552, 0.0
      %v1649 = vmax.f32 %v1555, 0.0
      %v1650 = vmax.f32 %v1560, 0.0
      %v1651 = vmax.f32 %v1563, 0.0
      %v1652 = vmax.f32 %v1568, 0.0
      %v1653 = vmax.f32 %v1571, 0.0
      %v1654 = vmax.f32 %v1576, 0.0
      %v1655 = vmax.f32 %v1579, 0.0
      %v1656 = vmax.f32 %v1584, 0.0
      %v1657 = vmax.f32 %v1587, 0.0
      %v1658 = vmax.f32 %v1592, 0.0
      %v1659 = vmax.f32 %v1595, 0.0
      %v1660 = vmax.f32 %v1600, 0.0
      %v1661 = vmax.f32 %v1603, 0.0
      %v1662 = vmax.f32 %v1608, 0.0
      %v1663 = vmax.f32 %v1611, 0.0
      %v1664 = vmax.f32 %v1616, 0.0
      %v1665 = vmax.f32 %v1619, 0.0
      %v1666 = vmax.f32 %v1624, 0.0
      %v1667 = vmax.f32 %v1627, 0.0
      %v1668 = vmax.f32 %v1632, 0.0
      %v1669 = vmax.f32 %v1635, 0.0
      %v1702 = vrot.slane %v1638, 7
      %v1703 = vrot.slane %v1639, 7
      %v1704 = vsel %vm344, %v1702, %v1703
      %v1705 = vrot.slane %v1640, 7
      %v1706 = vrot.slane %v1641, 7
      %v1707 = vsel %vm344, %v1705, %v1706
      %v1708 = vrot.slane %v1642, 7
      %v1709 = vrot.slane %v1643, 7
      %v1710 = vsel %vm344, %v1708, %v1709
      %v1711 = vrot.slane %v1644, 7
      %v1712 = vrot.slane %v1645, 7
      %v1713 = vsel %vm344, %v1711, %v1712
      %v1714 = vrot.slane %v1646, 7
      %v1715 = vrot.slane %v1647, 7
      %v1716 = vsel %vm344, %v1714, %v1715
      %v1717 = vrot.slane %v1648, 7
      %v1718 = vrot.slane %v1649, 7
      %v1719 = vsel %vm344, %v1717, %v1718
      %v1720 = vrot.slane %v1650, 7
      %v1721 = vrot.slane %v1651, 7
      %v1722 = vsel %vm344, %v1720, %v1721
      %v1723 = vrot.slane %v1652, 7
      %v1724 = vrot.slane %v1653, 7
      %v1725 = vsel %vm344, %v1723, %v1724
      %v1726 = vrot.slane %v1654, 7
      %v1727 = vrot.slane %v1655, 7
      %v1728 = vsel %vm344, %v1726, %v1727
      %v1729 = vrot.slane %v1656, 7
      %v1730 = vrot.slane %v1657, 7
      %v1731 = vsel %vm344, %v1729, %v1730
      %v1732 = vrot.slane %v1658, 7
      %v1733 = vrot.slane %v1659, 7
      %v1734 = vsel %vm344, %v1732, %v1733
      %v1735 = vrot.slane %v1660, 7
      %v1736 = vrot.slane %v1661, 7
      %v1737 = vsel %vm344, %v1735, %v1736
      %v1738 = vrot.slane %v1662, 7
      %v1739 = vrot.slane %v1663, 7
      %v1740 = vsel %vm344, %v1738, %v1739
      %v1741 = vrot.slane %v1664, 7
      %v1742 = vrot.slane %v1665, 7
      %v1743 = vsel %vm344, %v1741, %v1742
      %v1744 = vrot.slane %v1666, 7
      %v1745 = vrot.slane %v1667, 7
      %v1746 = vsel %vm344, %v1744, %v1745
      %v1747 = vrot.slane %v1668, 7
      %v1748 = vrot.slane %v1669, 7
      %v1749 = vsel %vm344, %v1747, %v1748
      %v1797 = vrot.slane %v1639, 6
      %v1798 = vrot.slane %v1641, 6
      %v1799 = vrot.slane %v1643, 6
      %v1800 = vrot.slane %v1645, 6
      %v1801 = vrot.slane %v1647, 6
      %v1802 = vrot.slane %v1649, 6
      %v1803 = vrot.slane %v1651, 6
      %v1804 = vrot.slane %v1653, 6
      %v1805 = vrot.slane %v1655, 6
      %v1806 = vrot.slane %v1657, 6
      %v1807 = vrot.slane %v1659, 6
      %v1808 = vrot.slane %v1661, 6
      %v1809 = vrot.slane %v1663, 6
      %v1810 = vrot.slane %v1665, 6
      %v1811 = vrot.slane %v1667, 6
      %v1812 = vrot.slane %v1669, 6
      %v1829 = vsel %vm344, %v1638, %v1702
      %v1830 = vsel %vm344, %v1640, %v1705
      %v1831 = vsel %vm344, %v1642, %v1708
      %v1832 = vsel %vm344, %v1644, %v1711
      %v1833 = vsel %vm344, %v1646, %v1714
      %v1834 = vsel %vm344, %v1648, %v1717
      %v1835 = vsel %vm344, %v1650, %v1720
      %v1836 = vsel %vm344, %v1652, %v1723
      %v1837 = vsel %vm344, %v1654, %v1726
      %v1838 = vsel %vm344, %v1656, %v1729
      %v1839 = vsel %vm344, %v1658, %v1732
      %v1840 = vsel %vm344, %v1660, %v1735
      %v1841 = vsel %vm344, %v1662, %v1738
      %v1842 = vsel %vm344, %v1664, %v1741
      %v1843 = vsel %vm344, %v1666, %v1744
      %v1844 = vsel %vm344, %v1668, %v1747
      %v1845 = vsel %vm344, %v1703, %v1797
      %v1846 = vsel %vm344, %v1706, %v1798
      %v1847 = vsel %vm344, %v1709, %v1799
      %v1848 = vsel %vm344, %v1712, %v1800
      %v1849 = vsel %vm344, %v1715, %v1801
      %v1850 = vsel %vm344, %v1718, %v1802
      %v1851 = vsel %vm344, %v1721, %v1803
      %v1852 = vsel %vm344, %v1724, %v1804
      %v1853 = vsel %vm344, %v1727, %v1805
      %v1854 = vsel %vm344, %v1730, %v1806
      %v1855 = vsel %vm344, %v1733, %v1807
      %v1856 = vsel %vm344, %v1736, %v1808
      %v1857 = vsel %vm344, %v1739, %v1809
      %v1858 = vsel %vm344, %v1742, %v1810
      %v1859 = vsel %vm344, %v1745, %v1811
      %v1860 = vsel %vm344, %v1748, %v1812
      %1893 = vrot.lane.b32.xlu0 %v1829, 32
      %v1894 = vpop.permute.xlu0 %1893
      %1895 = vrot.lane.b32.xlu0 %v1704, 32
      %v1896 = vpop.permute.xlu0 %1895
      %1897 = vrot.lane.b32.xlu0 %v1845, 32
      %v1898 = vpop.permute.xlu0 %1897
      %1899 = vrot.lane.b32.xlu0 %v1830, 32
      %v1900 = vpop.permute.xlu0 %1899
      %1901 = vrot.lane.b32.xlu0 %v1707, 32
      %v1902 = vpop.permute.xlu0 %1901
      %1903 = vrot.lane.b32.xlu0 %v1846, 32
      %v1904 = vpop.permute.xlu0 %1903
      %1905 = vrot.lane.b32.xlu0 %v1831, 32
      %v1906 = vpop.permute.xlu0 %1905
      %1907 = vrot.lane.b32.xlu0 %v1710, 32
      %v1908 = vpop.permute.xlu0 %1907
      %1909 = vrot.lane.b32.xlu0 %v1847, 32
      %v1910 = vpop.permute.xlu0 %1909
      %1911 = vrot.lane.b32.xlu0 %v1832, 32
      %v1912 = vpop.permute.xlu0 %1911
      %1913 = vrot.lane.b32.xlu0 %v1713, 32
      %v1914 = vpop.permute.xlu0 %1913
      %1915 = vrot.lane.b32.xlu0 %v1848, 32
      %v1916 = vpop.permute.xlu0 %1915
      %1917 = vrot.lane.b32.xlu0 %v1833, 32
      %v1918 = vpop.permute.xlu0 %1917
      %1919 = vrot.lane.b32.xlu0 %v1716, 32
      %v1920 = vpop.permute.xlu0 %1919
      %1921 = vrot.lane.b32.xlu0 %v1849, 32
      %v1922 = vpop.permute.xlu0 %1921
      %1923 = vrot.lane.b32.xlu0 %v1834, 32
      %v1924 = vpop.permute.xlu0 %1923
      %1925 = vrot.lane.b32.xlu0 %v1719, 32
      %v1926 = vpop.permute.xlu0 %1925
      %1927 = vrot.lane.b32.xlu0 %v1850, 32
      %v1928 = vpop.permute.xlu0 %1927
      %1929 = vrot.lane.b32.xlu0 %v1835, 32
      %v1930 = vpop.permute.xlu0 %1929
      %1931 = vrot.lane.b32.xlu0 %v1722, 32
      %v1932 = vpop.permute.xlu0 %1931
      %1933 = vrot.lane.b32.xlu0 %v1851, 32
      %v1934 = vpop.permute.xlu0 %1933
      %1935 = vrot.lane.b32.xlu0 %v1836, 32
      %v1936 = vpop.permute.xlu0 %1935
      %1937 = vrot.lane.b32.xlu0 %v1725, 32
      %v1938 = vpop.permute.xlu0 %1937
      %1939 = vrot.lane.b32.xlu0 %v1852, 32
      %v1940 = vpop.permute.xlu0 %1939
      %1941 = vrot.lane.b32.xlu0 %v1837, 32
      %v1942 = vpop.permute.xlu0 %1941
      %1943 = vrot.lane.b32.xlu0 %v1728, 32
      %v1944 = vpop.permute.xlu0 %1943
      %1945 = vrot.lane.b32.xlu0 %v1853, 32
      %v1946 = vpop.permute.xlu0 %1945
      %1947 = vrot.lane.b32.xlu0 %v1838, 32
      %v1948 = vpop.permute.xlu0 %1947
      %1949 = vrot.lane.b32.xlu0 %v1731, 32
      %v1950 = vpop.permute.xlu0 %1949
      %1951 = vrot.lane.b32.xlu0 %v1854, 32
      %v1952 = vpop.permute.xlu0 %1951
      %1953 = vrot.lane.b32.xlu0 %v1839, 32
      %v1954 = vpop.permute.xlu0 %1953
      %1955 = vrot.lane.b32.xlu0 %v1734, 32
      %v1956 = vpop.permute.xlu0 %1955
      %1957 = vrot.lane.b32.xlu0 %v1855, 32
      %v1958 = vpop.permute.xlu0 %1957
      %1959 = vrot.lane.b32.xlu0 %v1840, 32
      %v1960 = vpop.permute.xlu0 %1959
      %1961 = vrot.lane.b32.xlu0 %v1737, 32
      %v1962 = vpop.permute.xlu0 %1961
      %1963 = vrot.lane.b32.xlu0 %v1856, 32
      %v1964 = vpop.permute.xlu0 %1963
      %1965 = vrot.lane.b32.xlu0 %v1841, 32
      %v1966 = vpop.permute.xlu0 %1965
      %1967 = vrot.lane.b32.xlu0 %v1740, 32
      %v1968 = vpop.permute.xlu0 %1967
      %1969 = vrot.lane.b32.xlu0 %v1857, 32
      %v1970 = vpop.permute.xlu0 %1969
      %1971 = vrot.lane.b32.xlu0 %v1842, 32
      %v1972 = vpop.permute.xlu0 %1971
      %1973 = vrot.lane.b32.xlu0 %v1743, 32
      %v1974 = vpop.permute.xlu0 %1973
      %1975 = vrot.lane.b32.xlu0 %v1858, 32
      %v1976 = vpop.permute.xlu0 %1975
      %1977 = vrot.lane.b32.xlu0 %v1843, 32
      %v1978 = vpop.permute.xlu0 %1977
      %1979 = vrot.lane.b32.xlu0 %v1746, 32
      %v1980 = vpop.permute.xlu0 %1979
      %1981 = vrot.lane.b32.xlu0 %v1859, 32
      %v1982 = vpop.permute.xlu0 %1981
      %1983 = vrot.lane.b32.xlu0 %v1844, 32
      %v1984 = vpop.permute.xlu0 %1983
      %1985 = vrot.lane.b32.xlu0 %v1749, 32
      %v1986 = vpop.permute.xlu0 %1985
      %1987 = vrot.lane.b32.xlu0 %v1860, 32
      %v1988 = vpop.permute.xlu0 %1987
      %2037 = vrot.lane.b32.xlu0 %v1830, 64
      %v2038 = vpop.permute.xlu0 %2037
      %2039 = vrot.lane.b32.xlu0 %v1707, 64
      %v2040 = vpop.permute.xlu0 %2039
      %2041 = vrot.lane.b32.xlu0 %v1846, 64
      %v2042 = vpop.permute.xlu0 %2041
      %2043 = vrot.lane.b32.xlu0 %v1831, 64
      %v2044 = vpop.permute.xlu0 %2043
      %2045 = vrot.lane.b32.xlu0 %v1710, 64
      %v2046 = vpop.permute.xlu0 %2045
      %2047 = vrot.lane.b32.xlu0 %v1847, 64
      %v2048 = vpop.permute.xlu0 %2047
      %2049 = vrot.lane.b32.xlu0 %v1832, 64
      %v2050 = vpop.permute.xlu0 %2049
      %2051 = vrot.lane.b32.xlu0 %v1713, 64
      %v2052 = vpop.permute.xlu0 %2051
      %2053 = vrot.lane.b32.xlu0 %v1848, 64
      %v2054 = vpop.permute.xlu0 %2053
      %2055 = vrot.lane.b32.xlu0 %v1833, 64
      %v2056 = vpop.permute.xlu0 %2055
      %2057 = vrot.lane.b32.xlu0 %v1716, 64
      %v2058 = vpop.permute.xlu0 %2057
      %2059 = vrot.lane.b32.xlu0 %v1849, 64
      %v2060 = vpop.permute.xlu0 %2059
      %2061 = vrot.lane.b32.xlu0 %v1834, 64
      %v2062 = vpop.permute.xlu0 %2061
      %2063 = vrot.lane.b32.xlu0 %v1719, 64
      %v2064 = vpop.permute.xlu0 %2063
      %2065 = vrot.lane.b32.xlu0 %v1850, 64
      %v2066 = vpop.permute.xlu0 %2065
      %2067 = vrot.lane.b32.xlu0 %v1835, 64
      %v2068 = vpop.permute.xlu0 %2067
      %2069 = vrot.lane.b32.xlu0 %v1722, 64
      %v2070 = vpop.permute.xlu0 %2069
      %2071 = vrot.lane.b32.xlu0 %v1851, 64
      %v2072 = vpop.permute.xlu0 %2071
      %2073 = vrot.lane.b32.xlu0 %v1836, 64
      %v2074 = vpop.permute.xlu0 %2073
      %2075 = vrot.lane.b32.xlu0 %v1725, 64
      %v2076 = vpop.permute.xlu0 %2075
      %2077 = vrot.lane.b32.xlu0 %v1852, 64
      %v2078 = vpop.permute.xlu0 %2077
      %2079 = vrot.lane.b32.xlu0 %v1837, 64
      %v2080 = vpop.permute.xlu0 %2079
      %2081 = vrot.lane.b32.xlu0 %v1728, 64
      %v2082 = vpop.permute.xlu0 %2081
      %2083 = vrot.lane.b32.xlu0 %v1853, 64
      %v2084 = vpop.permute.xlu0 %2083
      %2085 = vrot.lane.b32.xlu0 %v1838, 64
      %v2086 = vpop.permute.xlu0 %2085
      %2087 = vrot.lane.b32.xlu0 %v1731, 64
      %v2088 = vpop.permute.xlu0 %2087
      %2089 = vrot.lane.b32.xlu0 %v1854, 64
      %v2090 = vpop.permute.xlu0 %2089
      %2091 = vrot.lane.b32.xlu0 %v1839, 64
      %v2092 = vpop.permute.xlu0 %2091
      %2093 = vrot.lane.b32.xlu0 %v1734, 64
      %v2094 = vpop.permute.xlu0 %2093
      %2095 = vrot.lane.b32.xlu0 %v1855, 64
      %v2096 = vpop.permute.xlu0 %2095
      %2097 = vrot.lane.b32.xlu0 %v1840, 64
      %v2098 = vpop.permute.xlu0 %2097
      %2099 = vrot.lane.b32.xlu0 %v1737, 64
      %v2100 = vpop.permute.xlu0 %2099
      %2101 = vrot.lane.b32.xlu0 %v1856, 64
      %v2102 = vpop.permute.xlu0 %2101
      %2103 = vrot.lane.b32.xlu0 %v1841, 64
      %v2104 = vpop.permute.xlu0 %2103
      %2105 = vrot.lane.b32.xlu0 %v1740, 64
      %v2106 = vpop.permute.xlu0 %2105
      %2107 = vrot.lane.b32.xlu0 %v1857, 64
      %v2108 = vpop.permute.xlu0 %2107
      %2109 = vrot.lane.b32.xlu0 %v1842, 64
      %v2110 = vpop.permute.xlu0 %2109
      %2111 = vrot.lane.b32.xlu0 %v1743, 64
      %v2112 = vpop.permute.xlu0 %2111
      %2113 = vrot.lane.b32.xlu0 %v1858, 64
      %v2114 = vpop.permute.xlu0 %2113
      %2115 = vrot.lane.b32.xlu0 %v1843, 64
      %v2116 = vpop.permute.xlu0 %2115
      %2117 = vrot.lane.b32.xlu0 %v1746, 64
      %v2118 = vpop.permute.xlu0 %2117
      %2119 = vrot.lane.b32.xlu0 %v1859, 64
      %v2120 = vpop.permute.xlu0 %2119
      %2121 = vrot.lane.b32.xlu0 %v1844, 64
      %v2122 = vpop.permute.xlu0 %2121
      %2123 = vrot.lane.b32.xlu0 %v1749, 64
      %v2124 = vpop.permute.xlu0 %2123
      %2125 = vrot.lane.b32.xlu0 %v1860, 64
      %v2126 = vpop.permute.xlu0 %2125
      %vm2172 = vcmask 261120
      %v2173 = vsel %vm2172, %v1829, %v1894
      %v2174 = vsel %vm2172, %v1704, %v1896
      %v2175 = vsel %vm2172, %v1845, %v1898
      %v2176 = vsel %vm2172, %v1829, %v1900
      %v2177 = vsel %vm2172, %v1704, %v1902
      %v2178 = vsel %vm2172, %v1845, %v1904
      %v2179 = vsel %vm2172, %v1830, %v1906
      %v2180 = vsel %vm2172, %v1707, %v1908
      %v2181 = vsel %vm2172, %v1846, %v1910
      %v2182 = vsel %vm2172, %v1831, %v1912
      %v2183 = vsel %vm2172, %v1710, %v1914
      %v2184 = vsel %vm2172, %v1847, %v1916
      %v2185 = vsel %vm2172, %v1832, %v1918
      %v2186 = vsel %vm2172, %v1713, %v1920
      %v2187 = vsel %vm2172, %v1848, %v1922
      %v2188 = vsel %vm2172, %v1833, %v1924
      %v2189 = vsel %vm2172, %v1716, %v1926
      %v2190 = vsel %vm2172, %v1849, %v1928
      %v2191 = vsel %vm2172, %v1834, %v1930
      %v2192 = vsel %vm2172, %v1719, %v1932
      %v2193 = vsel %vm2172, %v1850, %v1934
      %v2194 = vsel %vm2172, %v1835, %v1936
      %v2195 = vsel %vm2172, %v1722, %v1938
      %v2196 = vsel %vm2172, %v1851, %v1940
      %v2197 = vsel %vm2172, %v1836, %v1942
      %v2198 = vsel %vm2172, %v1725, %v1944
      %v2199 = vsel %vm2172, %v1852, %v1946
      %v2200 = vsel %vm2172, %v1837, %v1948
      %v2201 = vsel %vm2172, %v1728, %v1950
      %v2202 = vsel %vm2172, %v1853, %v1952
      %v2203 = vsel %vm2172, %v1838, %v1954
      %v2204 = vsel %vm2172, %v1731, %v1956
      %v2205 = vsel %vm2172, %v1854, %v1958
      %v2206 = vsel %vm2172, %v1839, %v1960
      %v2207 = vsel %vm2172, %v1734, %v1962
      %v2208 = vsel %vm2172, %v1855, %v1964
      %v2209 = vsel %vm2172, %v1840, %v1966
      %v2210 = vsel %vm2172, %v1737, %v1968
      %v2211 = vsel %vm2172, %v1856, %v1970
      %v2212 = vsel %vm2172, %v1841, %v1972
      %v2213 = vsel %vm2172, %v1740, %v1974
      %v2214 = vsel %vm2172, %v1857, %v1976
      %v2215 = vsel %vm2172, %v1842, %v1978
      %v2216 = vsel %vm2172, %v1743, %v1980
      %v2217 = vsel %vm2172, %v1858, %v1982
      %v2218 = vsel %vm2172, %v1843, %v1984
      %v2219 = vsel %vm2172, %v1746, %v1986
      %v2220 = vsel %vm2172, %v1859, %v1988
      %vm2221 = vcmask 523264
      %v2222 = vsel %vm2221, %v2173, %v2038
      %v2223 = vsel %vm2221, %v2174, %v2040
      %v2224 = vsel %vm2221, %v2175, %v2042
      %v2225 = vsel %vm2221, %v2176, %v2044
      %v2226 = vsel %vm2221, %v2177, %v2046
      %v2227 = vsel %vm2221, %v2178, %v2048
      %v2228 = vsel %vm2221, %v2179, %v2050
      %v2229 = vsel %vm2221, %v2180, %v2052
      %v2230 = vsel %vm2221, %v2181, %v2054
      %v2231 = vsel %vm2221, %v2182, %v2056
      %v2232 = vsel %vm2221, %v2183, %v2058
      %v2233 = vsel %vm2221, %v2184, %v2060
      %v2234 = vsel %vm2221, %v2185, %v2062
      %v2235 = vsel %vm2221, %v2186, %v2064
      %v2236 = vsel %vm2221, %v2187, %v2066
      %v2237 = vsel %vm2221, %v2188, %v2068
      %v2238 = vsel %vm2221, %v2189, %v2070
      %v2239 = vsel %vm2221, %v2190, %v2072
      %v2240 = vsel %vm2221, %v2191, %v2074
      %v2241 = vsel %vm2221, %v2192, %v2076
      %v2242 = vsel %vm2221, %v2193, %v2078
      %v2243 = vsel %vm2221, %v2194, %v2080
      %v2244 = vsel %vm2221, %v2195, %v2082
      %v2245 = vsel %vm2221, %v2196, %v2084
      %v2246 = vsel %vm2221, %v2197, %v2086
      %v2247 = vsel %vm2221, %v2198, %v2088
      %v2248 = vsel %vm2221, %v2199, %v2090
      %v2249 = vsel %vm2221, %v2200, %v2092
      %v2250 = vsel %vm2221, %v2201, %v2094
      %v2251 = vsel %vm2221, %v2202, %v2096
      %v2252 = vsel %vm2221, %v2203, %v2098
      %v2253 = vsel %vm2221, %v2204, %v2100
      %v2254 = vsel %vm2221, %v2205, %v2102
      %v2255 = vsel %vm2221, %v2206, %v2104
      %v2256 = vsel %vm2221, %v2207, %v2106
      %v2257 = vsel %vm2221, %v2208, %v2108
      %v2258 = vsel %vm2221, %v2209, %v2110
      %v2259 = vsel %vm2221, %v2210, %v2112
      %v2260 = vsel %vm2221, %v2211, %v2114
      %v2261 = vsel %vm2221, %v2212, %v2116
      %v2262 = vsel %vm2221, %v2213, %v2118
      %v2263 = vsel %vm2221, %v2214, %v2120
      %v2264 = vsel %vm2221, %v2215, %v2122
      %v2265 = vsel %vm2221, %v2216, %v2124
      %v2266 = vsel %vm2221, %v2217, %v2126
      %v2267 = vsel %vm2221, %v2218, %v2122
      %v2268 = vsel %vm2221, %v2219, %v2124
      %v2269 = vsel %vm2221, %v2220, %v2126
      %v2318 = vrot.slane %v2222, 1
      %v2319 = vrot.slane %v2223, 1
      %v2320 = vsel %vm961, %v2318, %v2319
      %v2321 = vrot.slane %v2224, 1
      %v2322 = vsel %vm961, %v2319, %v2321
      %v2323 = vrot.slane %v2225, 1
      %v2324 = vrot.slane %v2226, 1
      %v2325 = vsel %vm961, %v2323, %v2324
      %v2326 = vrot.slane %v2227, 1
      %v2327 = vsel %vm961, %v2324, %v2326
      %v2328 = vrot.slane %v2228, 1
      %v2329 = vrot.slane %v2229, 1
      %v2330 = vsel %vm961, %v2328, %v2329
      %v2331 = vrot.slane %v2230, 1
      %v2332 = vsel %vm961, %v2329, %v2331
      %v2333 = vrot.slane %v2231, 1
      %v2334 = vrot.slane %v2232, 1
      %v2335 = vsel %vm961, %v2333, %v2334
      %v2336 = vrot.slane %v2233, 1
      %v2337 = vsel %vm961, %v2334, %v2336
      %v2338 = vrot.slane %v2234, 1
      %v2339 = vrot.slane %v2235, 1
      %v2340 = vsel %vm961, %v2338, %v2339
      %v2341 = vrot.slane %v2236, 1
      %v2342 = vsel %vm961, %v2339, %v2341
      %v2343 = vrot.slane %v2237, 1
      %v2344 = vrot.slane %v2238, 1
      %v2345 = vsel %vm961, %v2343, %v2344
      %v2346 = vrot.slane %v2239, 1
      %v2347 = vsel %vm961, %v2344, %v2346
      %v2348 = vrot.slane %v2240, 1
      %v2349 = vrot.slane %v2241, 1
      %v2350 = vsel %vm961, %v2348, %v2349
      %v2351 = vrot.slane %v2242, 1
      %v2352 = vsel %vm961, %v2349, %v2351
      %v2353 = vrot.slane %v2243, 1
      %v2354 = vrot.slane %v2244, 1
      %v2355 = vsel %vm961, %v2353, %v2354
      %v2356 = vrot.slane %v2245, 1
      %v2357 = vsel %vm961, %v2354, %v2356
      %v2358 = vrot.slane %v2246, 1
      %v2359 = vrot.slane %v2247, 1
      %v2360 = vsel %vm961, %v2358, %v2359
      %v2361 = vrot.slane %v2248, 1
      %v2362 = vsel %vm961, %v2359, %v2361
      %v2363 = vrot.slane %v2249, 1
      %v2364 = vrot.slane %v2250, 1
      %v2365 = vsel %vm961, %v2363, %v2364
      %v2366 = vrot.slane %v2251, 1
      %v2367 = vsel %vm961, %v2364, %v2366
      %v2368 = vrot.slane %v2252, 1
      %v2369 = vrot.slane %v2253, 1
      %v2370 = vsel %vm961, %v2368, %v2369
      %v2371 = vrot.slane %v2254, 1
      %v2372 = vsel %vm961, %v2369, %v2371
      %v2373 = vrot.slane %v2255, 1
      %v2374 = vrot.slane %v2256, 1
      %v2375 = vsel %vm961, %v2373, %v2374
      %v2376 = vrot.slane %v2257, 1
      %v2377 = vsel %vm961, %v2374, %v2376
      %v2378 = vrot.slane %v2258, 1
      %v2379 = vrot.slane %v2259, 1
      %v2380 = vsel %vm961, %v2378, %v2379
      %v2381 = vrot.slane %v2260, 1
      %v2382 = vsel %vm961, %v2379, %v2381
      %v2383 = vrot.slane %v2261, 1
      %v2384 = vrot.slane %v2262, 1
      %v2385 = vsel %vm961, %v2383, %v2384
      %v2386 = vrot.slane %v2263, 1
      %v2387 = vsel %vm961, %v2384, %v2386
      %v2388 = vrot.slane %v2264, 1
      %v2389 = vrot.slane %v2265, 1
      %v2390 = vsel %vm961, %v2388, %v2389
      %v2391 = vrot.slane %v2266, 1
      %v2392 = vsel %vm961, %v2389, %v2391
      %v2393 = vrot.slane %v2267, 1
      %v2394 = vrot.slane %v2268, 1
      %v2395 = vsel %vm961, %v2393, %v2394
      %v2396 = vrot.slane %v2269, 1
      %v2397 = vsel %vm961, %v2394, %v2396
      %2398 = vrot.lane.b32.xlu0 %v2320, 96
      %v2399 = vpop.permute.xlu0 %2398
      %2400 = vrot.lane.b32.xlu0 %v2322, 96
      %v2401 = vpop.permute.xlu0 %2400
      %2402 = vrot.lane.b32.xlu0 %v2325, 96
      %v2403 = vpop.permute.xlu0 %2402
      %2404 = vrot.lane.b32.xlu0 %v2327, 96
      %v2405 = vpop.permute.xlu0 %2404
      %2406 = vrot.lane.b32.xlu0 %v2330, 96
      %v2407 = vpop.permute.xlu0 %2406
      %2408 = vrot.lane.b32.xlu0 %v2332, 96
      %v2409 = vpop.permute.xlu0 %2408
      %2410 = vrot.lane.b32.xlu0 %v2335, 96
      %v2411 = vpop.permute.xlu0 %2410
      %2412 = vrot.lane.b32.xlu0 %v2337, 96
      %v2413 = vpop.permute.xlu0 %2412
      %2414 = vrot.lane.b32.xlu0 %v2340, 96
      %v2415 = vpop.permute.xlu0 %2414
      %2416 = vrot.lane.b32.xlu0 %v2342, 96
      %v2417 = vpop.permute.xlu0 %2416
      %2418 = vrot.lane.b32.xlu0 %v2345, 96
      %v2419 = vpop.permute.xlu0 %2418
      %2420 = vrot.lane.b32.xlu0 %v2347, 96
      %v2421 = vpop.permute.xlu0 %2420
      %2422 = vrot.lane.b32.xlu0 %v2350, 96
      %v2423 = vpop.permute.xlu0 %2422
      %2424 = vrot.lane.b32.xlu0 %v2352, 96
      %v2425 = vpop.permute.xlu0 %2424
      %2426 = vrot.lane.b32.xlu0 %v2355, 96
      %v2427 = vpop.permute.xlu0 %2426
      %2428 = vrot.lane.b32.xlu0 %v2357, 96
      %v2429 = vpop.permute.xlu0 %2428
      %2430 = vrot.lane.b32.xlu0 %v2360, 96
      %v2431 = vpop.permute.xlu0 %2430
      %2432 = vrot.lane.b32.xlu0 %v2362, 96
      %v2433 = vpop.permute.xlu0 %2432
      %2434 = vrot.lane.b32.xlu0 %v2365, 96
      %v2435 = vpop.permute.xlu0 %2434
      %2436 = vrot.lane.b32.xlu0 %v2367, 96
      %v2437 = vpop.permute.xlu0 %2436
      %2438 = vrot.lane.b32.xlu0 %v2370, 96
      %v2439 = vpop.permute.xlu0 %2438
      %2440 = vrot.lane.b32.xlu0 %v2372, 96
      %v2441 = vpop.permute.xlu0 %2440
      %2442 = vrot.lane.b32.xlu0 %v2375, 96
      %v2443 = vpop.permute.xlu0 %2442
      %2444 = vrot.lane.b32.xlu0 %v2377, 96
      %v2445 = vpop.permute.xlu0 %2444
      %2446 = vrot.lane.b32.xlu0 %v2380, 96
      %v2447 = vpop.permute.xlu0 %2446
      %2448 = vrot.lane.b32.xlu0 %v2382, 96
      %v2449 = vpop.permute.xlu0 %2448
      %2450 = vrot.lane.b32.xlu0 %v2385, 96
      %v2451 = vpop.permute.xlu0 %2450
      %2452 = vrot.lane.b32.xlu0 %v2387, 96
      %v2453 = vpop.permute.xlu0 %2452
      %2454 = vrot.lane.b32.xlu0 %v2390, 96
      %v2455 = vpop.permute.xlu0 %2454
      %2456 = vrot.lane.b32.xlu0 %v2392, 96
      %v2457 = vpop.permute.xlu0 %2456
      %2458 = vrot.lane.b32.xlu0 %v2395, 96
      %v2459 = vpop.permute.xlu0 %2458
      %2460 = vrot.lane.b32.xlu0 %v2397, 96
      %v2461 = vpop.permute.xlu0 %2460
      %v2494 = vrot.slane %v2222, 2
      %v2495 = vrot.slane %v2223, 2
      %v2496 = vsel %vm1138, %v2494, %v2495
      %v2497 = vrot.slane %v2224, 2
      %v2498 = vsel %vm1138, %v2495, %v2497
      %v2499 = vrot.slane %v2225, 2
      %v2500 = vrot.slane %v2226, 2
      %v2501 = vsel %vm1138, %v2499, %v2500
      %v2502 = vrot.slane %v2227, 2
      %v2503 = vsel %vm1138, %v2500, %v2502
      %v2504 = vrot.slane %v2228, 2
      %v2505 = vrot.slane %v2229, 2
      %v2506 = vsel %vm1138, %v2504, %v2505
      %v2507 = vrot.slane %v2230, 2
      %v2508 = vsel %vm1138, %v2505, %v2507
      %v2509 = vrot.slane %v2231, 2
      %v2510 = vrot.slane %v2232, 2
      %v2511 = vsel %vm1138, %v2509, %v2510
      %v2512 = vrot.slane %v2233, 2
      %v2513 = vsel %vm1138, %v2510, %v2512
      %v2514 = vrot.slane %v2234, 2
      %v2515 = vrot.slane %v2235, 2
      %v2516 = vsel %vm1138, %v2514, %v2515
      %v2517 = vrot.slane %v2236, 2
      %v2518 = vsel %vm1138, %v2515, %v2517
      %v2519 = vrot.slane %v2237, 2
      %v2520 = vrot.slane %v2238, 2
      %v2521 = vsel %vm1138, %v2519, %v2520
      %v2522 = vrot.slane %v2239, 2
      %v2523 = vsel %vm1138, %v2520, %v2522
      %v2524 = vrot.slane %v2240, 2
      %v2525 = vrot.slane %v2241, 2
      %v2526 = vsel %vm1138, %v2524, %v2525
      %v2527 = vrot.slane %v2242, 2
      %v2528 = vsel %vm1138, %v2525, %v2527
      %v2529 = vrot.slane %v2243, 2
      %v2530 = vrot.slane %v2244, 2
      %v2531 = vsel %vm1138, %v2529, %v2530
      %v2532 = vrot.slane %v2245, 2
      %v2533 = vsel %vm1138, %v2530, %v2532
      %v2534 = vrot.slane %v2246, 2
      %v2535 = vrot.slane %v2247, 2
      %v2536 = vsel %vm1138, %v2534, %v2535
      %v2537 = vrot.slane %v2248, 2
      %v2538 = vsel %vm1138, %v2535, %v2537
      %v2539 = vrot.slane %v2249, 2
      %v2540 = vrot.slane %v2250, 2
      %v2541 = vsel %vm1138, %v2539, %v2540
      %v2542 = vrot.slane %v2251, 2
      %v2543 = vsel %vm1138, %v2540, %v2542
      %v2544 = vrot.slane %v2252, 2
      %v2545 = vrot.slane %v2253, 2
      %v2546 = vsel %vm1138, %v2544, %v2545
      %v2547 = vrot.slane %v2254, 2
      %v2548 = vsel %vm1138, %v2545, %v2547
      %v2549 = vrot.slane %v2255, 2
      %v2550 = vrot.slane %v2256, 2
      %v2551 = vsel %vm1138, %v2549, %v2550
      %v2552 = vrot.slane %v2257, 2
      %v2553 = vsel %vm1138, %v2550, %v2552
      %v2554 = vrot.slane %v2258, 2
      %v2555 = vrot.slane %v2259, 2
      %v2556 = vsel %vm1138, %v2554, %v2555
      %v2557 = vrot.slane %v2260, 2
      %v2558 = vsel %vm1138, %v2555, %v2557
      %v2559 = vrot.slane %v2261, 2
      %v2560 = vrot.slane %v2262, 2
      %v2561 = vsel %vm1138, %v2559, %v2560
      %v2562 = vrot.slane %v2263, 2
      %v2563 = vsel %vm1138, %v2560, %v2562
      %v2564 = vrot.slane %v2264, 2
      %v2565 = vrot.slane %v2265, 2
      %v2566 = vsel %vm1138, %v2564, %v2565
      %v2567 = vrot.slane %v2266, 2
      %v2568 = vsel %vm1138, %v2565, %v2567
      %v2569 = vrot.slane %v2267, 2
      %v2570 = vrot.slane %v2268, 2
      %v2571 = vsel %vm1138, %v2569, %v2570
      %v2572 = vrot.slane %v2269, 2
      %v2573 = vsel %vm1138, %v2570, %v2572
      %2574 = vrot.lane.b32.xlu0 %v2496, 64
      %v2575 = vpop.permute.xlu0 %2574
      %2576 = vrot.lane.b32.xlu0 %v2498, 64
      %v2577 = vpop.permute.xlu0 %2576
      %2578 = vrot.lane.b32.xlu0 %v2501, 64
      %v2579 = vpop.permute.xlu0 %2578
      %2580 = vrot.lane.b32.xlu0 %v2503, 64
      %v2581 = vpop.permute.xlu0 %2580
      %2582 = vrot.lane.b32.xlu0 %v2506, 64
      %v2583 = vpop.permute.xlu0 %2582
      %2584 = vrot.lane.b32.xlu0 %v2508, 64
      %v2585 = vpop.permute.xlu0 %2584
      %2586 = vrot.lane.b32.xlu0 %v2511, 64
      %v2587 = vpop.permute.xlu0 %2586
      %2588 = vrot.lane.b32.xlu0 %v2513, 64
      %v2589 = vpop.permute.xlu0 %2588
      %2590 = vrot.lane.b32.xlu0 %v2516, 64
      %v2591 = vpop.permute.xlu0 %2590
      %2592 = vrot.lane.b32.xlu0 %v2518, 64
      %v2593 = vpop.permute.xlu0 %2592
      %2594 = vrot.lane.b32.xlu0 %v2521, 64
      %v2595 = vpop.permute.xlu0 %2594
      %2596 = vrot.lane.b32.xlu0 %v2523, 64
      %v2597 = vpop.permute.xlu0 %2596
      %2598 = vrot.lane.b32.xlu0 %v2526, 64
      %v2599 = vpop.permute.xlu0 %2598
      %2600 = vrot.lane.b32.xlu0 %v2528, 64
      %v2601 = vpop.permute.xlu0 %2600
      %2602 = vrot.lane.b32.xlu0 %v2531, 64
      %v2603 = vpop.permute.xlu0 %2602
      %2604 = vrot.lane.b32.xlu0 %v2533, 64
      %v2605 = vpop.permute.xlu0 %2604
      %2606 = vrot.lane.b32.xlu0 %v2536, 64
      %v2607 = vpop.permute.xlu0 %2606
      %2608 = vrot.lane.b32.xlu0 %v2538, 64
      %v2609 = vpop.permute.xlu0 %2608
      %2610 = vrot.lane.b32.xlu0 %v2541, 64
      %v2611 = vpop.permute.xlu0 %2610
      %2612 = vrot.lane.b32.xlu0 %v2543, 64
      %v2613 = vpop.permute.xlu0 %2612
      %2614 = vrot.lane.b32.xlu0 %v2546, 64
      %v2615 = vpop.permute.xlu0 %2614
      %2616 = vrot.lane.b32.xlu0 %v2548, 64
      %v2617 = vpop.permute.xlu0 %2616
      %2618 = vrot.lane.b32.xlu0 %v2551, 64
      %v2619 = vpop.permute.xlu0 %2618
      %2620 = vrot.lane.b32.xlu0 %v2553, 64
      %v2621 = vpop.permute.xlu0 %2620
      %2622 = vrot.lane.b32.xlu0 %v2556, 64
      %v2623 = vpop.permute.xlu0 %2622
      %2624 = vrot.lane.b32.xlu0 %v2558, 64
      %v2625 = vpop.permute.xlu0 %2624
      %2626 = vrot.lane.b32.xlu0 %v2561, 64
      %v2627 = vpop.permute.xlu0 %2626
      %2628 = vrot.lane.b32.xlu0 %v2563, 64
      %v2629 = vpop.permute.xlu0 %2628
      %2630 = vrot.lane.b32.xlu0 %v2566, 64
      %v2631 = vpop.permute.xlu0 %2630
      %2632 = vrot.lane.b32.xlu0 %v2568, 64
      %v2633 = vpop.permute.xlu0 %2632
      %2634 = vrot.lane.b32.xlu0 %v2571, 64
      %v2635 = vpop.permute.xlu0 %2634
      %2636 = vrot.lane.b32.xlu0 %v2573, 64
      %v2637 = vpop.permute.xlu0 %2636
      %vm2670 = vcmask 785408
      %v2671 = vsel %vm2670, %v2222, %v2399
      %v2672 = vsel %vm2670, %v2223, %v2401
      %v2673 = vsel %vm2670, %v2225, %v2403
      %v2674 = vsel %vm2670, %v2226, %v2405
      %v2675 = vsel %vm2670, %v2228, %v2407
      %v2676 = vsel %vm2670, %v2229, %v2409
      %v2677 = vsel %vm2670, %v2231, %v2411
      %v2678 = vsel %vm2670, %v2232, %v2413
      %v2679 = vsel %vm2670, %v2234, %v2415
      %v2680 = vsel %vm2670, %v2235, %v2417
      %v2681 = vsel %vm2670, %v2237, %v2419
      %v2682 = vsel %vm2670, %v2238, %v2421
      %v2683 = vsel %vm2670, %v2240, %v2423
      %v2684 = vsel %vm2670, %v2241, %v2425
      %v2685 = vsel %vm2670, %v2243, %v2427
      %v2686 = vsel %vm2670, %v2244, %v2429
      %v2687 = vsel %vm2670, %v2246, %v2431
      %v2688 = vsel %vm2670, %v2247, %v2433
      %v2689 = vsel %vm2670, %v2249, %v2435
      %v2690 = vsel %vm2670, %v2250, %v2437
      %v2691 = vsel %vm2670, %v2252, %v2439
      %v2692 = vsel %vm2670, %v2253, %v2441
      %v2693 = vsel %vm2670, %v2255, %v2443
      %v2694 = vsel %vm2670, %v2256, %v2445
      %v2695 = vsel %vm2670, %v2258, %v2447
      %v2696 = vsel %vm2670, %v2259, %v2449
      %v2697 = vsel %vm2670, %v2261, %v2451
      %v2698 = vsel %vm2670, %v2262, %v2453
      %v2699 = vsel %vm2670, %v2264, %v2455
      %v2700 = vsel %vm2670, %v2265, %v2457
      %v2701 = vsel %vm2670, %v2267, %v2459
      %v2702 = vsel %vm2670, %v2268, %v2461
      %v2703 = vsel %vm2221, %v2399, %v2575
      %v2704 = vsel %vm2221, %v2401, %v2577
      %v2705 = vsel %vm2221, %v2403, %v2579
      %v2706 = vsel %vm2221, %v2405, %v2581
      %v2707 = vsel %vm2221, %v2407, %v2583
      %v2708 = vsel %vm2221, %v2409, %v2585
      %v2709 = vsel %vm2221, %v2411, %v2587
      %v2710 = vsel %vm2221, %v2413, %v2589
      %v2711 = vsel %vm2221, %v2415, %v2591
      %v2712 = vsel %vm2221, %v2417, %v2593
      %v2713 = vsel %vm2221, %v2419, %v2595
      %v2714 = vsel %vm2221, %v2421, %v2597
      %v2715 = vsel %vm2221, %v2423, %v2599
      %v2716 = vsel %vm2221, %v2425, %v2601
      %v2717 = vsel %vm2221, %v2427, %v2603
      %v2718 = vsel %vm2221, %v2429, %v2605
      %v2719 = vsel %vm2221, %v2431, %v2607
      %v2720 = vsel %vm2221, %v2433, %v2609
      %v2721 = vsel %vm2221, %v2435, %v2611
      %v2722 = vsel %vm2221, %v2437, %v2613
      %v2723 = vsel %vm2221, %v2439, %v2615
      %v2724 = vsel %vm2221, %v2441, %v2617
      %v2725 = vsel %vm2221, %v2443, %v2619
      %v2726 = vsel %vm2221, %v2445, %v2621
      %v2727 = vsel %vm2221, %v2447, %v2623
      %v2728 = vsel %vm2221, %v2449, %v2625
      %v2729 = vsel %vm2221, %v2451, %v2627
      %v2730 = vsel %vm2221, %v2453, %v2629
      %v2731 = vsel %vm2221, %v2455, %v2631
      %v2732 = vsel %vm2221, %v2457, %v2633
      %v2733 = vsel %vm2221, %v2459, %v2635
      %v2734 = vsel %vm2221, %v2461, %v2637
      %v2735 = vpack.c.bf16 %v2672, %v2671
      %v2736 = vpack.c.bf16 %v2704, %v2703
      %v2737 = vpack.c.bf16 %v2577, %v2575
      %v2738 = vpack.c.bf16 %v2674, %v2673
      %v2739 = vpack.c.bf16 %v2706, %v2705
      %v2740 = vpack.c.bf16 %v2581, %v2579
      %v2741 = vpack.c.bf16 %v2676, %v2675
      %v2742 = vpack.c.bf16 %v2708, %v2707
      %v2743 = vpack.c.bf16 %v2585, %v2583
      %v2744 = vpack.c.bf16 %v2678, %v2677
      %v2745 = vpack.c.bf16 %v2710, %v2709
      %v2746 = vpack.c.bf16 %v2589, %v2587
      %v2747 = vpack.c.bf16 %v2680, %v2679
      %v2748 = vpack.c.bf16 %v2712, %v2711
      %v2749 = vpack.c.bf16 %v2593, %v2591
      %v2750 = vpack.c.bf16 %v2682, %v2681
      %v2751 = vpack.c.bf16 %v2714, %v2713
      %v2752 = vpack.c.bf16 %v2597, %v2595
      %v2753 = vpack.c.bf16 %v2684, %v2683
      %v2754 = vpack.c.bf16 %v2716, %v2715
      %v2755 = vpack.c.bf16 %v2601, %v2599
      %v2756 = vpack.c.bf16 %v2686, %v2685
      %v2757 = vpack.c.bf16 %v2718, %v2717
      %v2758 = vpack.c.bf16 %v2605, %v2603
      %v2759 = vpack.c.bf16 %v2688, %v2687
      %v2760 = vpack.c.bf16 %v2720, %v2719
      %v2761 = vpack.c.bf16 %v2609, %v2607
      %v2762 = vpack.c.bf16 %v2690, %v2689
      %v2763 = vpack.c.bf16 %v2722, %v2721
      %v2764 = vpack.c.bf16 %v2613, %v2611
      %v2765 = vpack.c.bf16 %v2692, %v2691
      %v2766 = vpack.c.bf16 %v2724, %v2723
      %v2767 = vpack.c.bf16 %v2617, %v2615
      %v2768 = vpack.c.bf16 %v2694, %v2693
      %v2769 = vpack.c.bf16 %v2726, %v2725
      %v2770 = vpack.c.bf16 %v2621, %v2619
      %v2771 = vpack.c.bf16 %v2696, %v2695
      %v2772 = vpack.c.bf16 %v2728, %v2727
      %v2773 = vpack.c.bf16 %v2625, %v2623
      %v2774 = vpack.c.bf16 %v2698, %v2697
      %v2775 = vpack.c.bf16 %v2730, %v2729
      %v2776 = vpack.c.bf16 %v2629, %v2627
      %v2777 = vpack.c.bf16 %v2700, %v2699
      %v2778 = vpack.c.bf16 %v2732, %v2731
      %v2779 = vpack.c.bf16 %v2633, %v2631
      %v2780 = vpack.c.bf16 %v2702, %v2701
      %v2781 = vpack.c.bf16 %v2734, %v2733
      %v2782 = vpack.c.bf16 %v2637, %v2635
      %v2783 = vld [vmem:[%s3] sm:$0xf]
      %v2784 = vld [vmem:[%s3 + $0x4] sm:$0xf]
      %v2785 = vld [vmem:[%s3 + $0x8] sm:$0xf]
      %v2786 = vld [vmem:[%s3 + $0xc] sm:$0xf]
      %v2787 = vld [vmem:[%s3 + $0x10] sm:$0xf]
      %v2788 = vld [vmem:[%s3 + $0x14] sm:$0xf]
      %v2789 = vld [vmem:[%s3 + $0x18] sm:$0xf]
      %v2790 = vld [vmem:[%s3 + $0x1c] sm:$0xf]
      %v2791 = vld [vmem:[%s3 + $0x20] sm:$0xf]
      %v2792 = vld [vmem:[%s3 + $0x24] sm:$0xf]
      %v2793 = vld [vmem:[%s3 + $0x28] sm:$0xf]
      %v2794 = vld [vmem:[%s3 + $0x2c] sm:$0xf]
      %v2795 = vld [vmem:[%s3 + $0x30] sm:$0xf]
      %v2796 = vld [vmem:[%s3 + $0x34] sm:$0xf]
      %v2797 = vld [vmem:[%s3 + $0x38] sm:$0xf]
      %v2798 = vld [vmem:[%s3 + $0x3c] sm:$0xf]
      %v2799 = vld [vmem:[%s3 + $0x40] sm:$0xf]
      %v2800 = vld [vmem:[%s3 + $0x44] sm:$0xf]
      %v2801 = vld [vmem:[%s3 + $0x48] sm:$0xf]
      %v2802 = vld [vmem:[%s3 + $0x4c] sm:$0xf]
      %v2803 = vld [vmem:[%s3 + $0x50] sm:$0xf]
      %v2804 = vld [vmem:[%s3 + $0x54] sm:$0xf]
      %v2805 = vld [vmem:[%s3 + $0x58] sm:$0xf]
      %v2806 = vld [vmem:[%s3 + $0x5c] sm:$0xf]
      %v2807 = vld [vmem:[%s3 + $0x60] sm:$0xf]
      %v2808 = vld [vmem:[%s3 + $0x64] sm:$0xf]
      %v2809 = vld [vmem:[%s3 + $0x68] sm:$0xf]
      %v2810 = vld [vmem:[%s3 + $0x6c] sm:$0xf]
      %v2811 = vld [vmem:[%s3 + $0x70] sm:$0xf]
      %v2812 = vld [vmem:[%s3 + $0x74] sm:$0xf]
      %v2813 = vld [vmem:[%s3 + $0x78] sm:$0xf]
      %v2814 = vld [vmem:[%s3 + $0x7c] sm:$0xf]
      %v2815 = vld [vmem:[%s3 + $0x80] sm:$0xf]
      %v2816 = vld [vmem:[%s3 + $0x84] sm:$0xf]
      %v2817 = vld [vmem:[%s3 + $0x88] sm:$0xf]
      %v2818 = vld [vmem:[%s3 + $0x8c] sm:$0xf]
      %v2819 = vld [vmem:[%s4] sm:$0x1]
      %v2821 = vlaneseq
      %v2822 = vshrl.u32 %v2821, 7
      %v2823 = vsub.s32 0, %v2822
      %v2824 = vrot.slane %v2819, %v2823
      %v2862 = vunpack.c.l.b16 %v2783
      %v2863 = vunpack.c.l.b16 %v2784
      %v2864 = vunpack.c.l.b16 %v2785
      %v2865 = vunpack.c.l.b16 %v2786
      %v2866 = vunpack.c.l.b16 %v2787
      %v2867 = vunpack.c.l.b16 %v2788
      %v2868 = vunpack.c.l.b16 %v2789
      %v2869 = vunpack.c.l.b16 %v2790
      %v2870 = vunpack.c.l.b16 %v2791
      %v2871 = vunpack.c.l.b16 %v2792
      %v2872 = vunpack.c.l.b16 %v2793
      %v2873 = vunpack.c.l.b16 %v2794
      %v2874 = vunpack.c.l.b16 %v2795
      %v2875 = vunpack.c.l.b16 %v2796
      %v2876 = vunpack.c.l.b16 %v2797
      %v2877 = vunpack.c.l.b16 %v2798
      %v2878 = vunpack.c.l.b16 %v2799
      %v2879 = vunpack.c.l.b16 %v2800
      %v2880 = vunpack.c.l.b16 %v2801
      %v2881 = vunpack.c.l.b16 %v2802
      %v2882 = vunpack.c.l.b16 %v2803
      %v2883 = vunpack.c.l.b16 %v2804
      %v2884 = vunpack.c.l.b16 %v2805
      %v2885 = vunpack.c.l.b16 %v2806
      %v2886 = vunpack.c.l.b16 %v2807
      %v2887 = vunpack.c.l.b16 %v2808
      %v2888 = vunpack.c.l.b16 %v2809
      %v2889 = vunpack.c.l.b16 %v2810
      %v2890 = vunpack.c.l.b16 %v2811
      %v2891 = vunpack.c.l.b16 %v2812
      %v2892 = vunpack.c.l.b16 %v2813
      %v2893 = vunpack.c.l.b16 %v2814
      %v2894 = vunpack.c.l.b16 %v2815
      %v2895 = vunpack.c.l.b16 %v2816
      %v2896 = vunpack.c.l.b16 %v2817
      %v2897 = vunpack.c.l.b16 %v2818
      %v2898 = vpack.c.b16 %v2863, %v2862
      %v2899 = vpack.c.b16 %v2865, %v2864
      %v2900 = vpack.c.b16 %v2867, %v2866
      %v2901 = vpack.c.b16 %v2869, %v2868
      %v2902 = vpack.c.b16 %v2871, %v2870
      %v2903 = vpack.c.b16 %v2873, %v2872
      %v2904 = vpack.c.b16 %v2875, %v2874
      %v2905 = vpack.c.b16 %v2877, %v2876
      %v2906 = vpack.c.b16 %v2879, %v2878
      %v2907 = vpack.c.b16 %v2881, %v2880
      %v2908 = vpack.c.b16 %v2883, %v2882
      %v2909 = vpack.c.b16 %v2885, %v2884
      %v2910 = vpack.c.b16 %v2887, %v2886
      %v2911 = vpack.c.b16 %v2889, %v2888
      %v2912 = vpack.c.b16 %v2891, %v2890
      %v2913 = vpack.c.b16 %v2893, %v2892
      %v2914 = vpack.c.b16 %v2895, %v2894
      %v2915 = vpack.c.b16 %v2897, %v2896
      %v2935 = vsel %vm2172, %v2737, 0
      %v2938 = vsel %vm2172, %v2740, 0
      %v2941 = vsel %vm2172, %v2743, 0
      %v2944 = vsel %vm2172, %v2746, 0
      %v2947 = vsel %vm2172, %v2749, 0
      %v2950 = vsel %vm2172, %v2752, 0
      %v2953 = vsel %vm2172, %v2755, 0
      %v2956 = vsel %vm2172, %v2758, 0
      %v2959 = vsel %vm2172, %v2761, 0
      %v2962 = vsel %vm2172, %v2764, 0
      %v2965 = vsel %vm2172, %v2767, 0
      %v2968 = vsel %vm2172, %v2770, 0
      %v2971 = vsel %vm2172, %v2773, 0
      %v2974 = vsel %vm2172, %v2776, 0
      %v2977 = vsel %vm2172, %v2779, 0
      %v2980 = vsel %vm2172, %v2782, 0
      %2982 = vmatprep.subr.bf16.mxu0 0
      %2983 = vmatpush1.bf16.msra.mxu0 %v2898
      %2984 = vmatprep.subr.bf16.mxu0 0
      %2985 = vmatpush1.bf16.msra.mxu0 %v2899
      %2986 = vmatprep.subr.bf16.mxu0 0
      %2987 = vmatpush1.bf16.msra.mxu0 %v2900
      %2988 = vmatprep.subr.bf16.mxu0 0
      %2989 = vmatpush1.bf16.msra.mxu0 %v2901
      %2990 = vmatprep.subr.bf16.mxu0 0
      %2991 = vmatpush1.bf16.msra.mxu0 %v2902
      %2992 = vmatprep.subr.bf16.mxu0 0
      %2993 = vmatpush1.bf16.msra.mxu0 %v2903
      %2994 = vmatprep.subr.bf16.mxu0 0
      %2995 = vmatpush1.bf16.msra.mxu0 %v2904
      %2996 = vmatprep.subr.bf16.mxu0 0
      %2997 = vmatpush1.bf16.msra.mxu0 %v2905
      %2998 = vmatprep.subr.bf16.mxu0 0
      %2999 = vmatpush1.bf16.msra.mxu0 %v2906
      %3000 = vmatprep.subr.bf16.mxu0 0
      %3001 = vmatpush1.bf16.msra.mxu0 %v2907
      %3002 = vmatprep.subr.bf16.mxu0 0
      %3003 = vmatpush1.bf16.msra.mxu0 %v2908
      %3004 = vmatprep.subr.bf16.mxu0 0
      %3005 = vmatpush1.bf16.msra.mxu0 %v2909
      %3006 = vmatprep.subr.bf16.mxu0 0
      %3007 = vmatpush1.bf16.msra.mxu0 %v2910
      %3008 = vmatprep.subr.bf16.mxu0 0
      %3009 = vmatpush1.bf16.msra.mxu0 %v2911
      %3010 = vmatprep.subr.bf16.mxu0 0
      %3011 = vmatpush1.bf16.msra.mxu0 %v2912
      %3012 = vmatprep.subr.bf16.mxu0 0
      %3013 = vmatpush1.bf16.msra.mxu0 %v2913
      %3014 = vmatprep.mubr.bf16.mxu0 %v2736
      %3015 = vmatmul.mubr.bf16.gmra.mrb[0].mxu0 %v2735
      %v3016 = vpop.f32.mrb[0].mxu0
      %v3017 = vadd.f32 %v2824, %v3016
      %v3018 = vpop.f32.mrb[0].mxu0
      %v3019 = vpop.f32.mrb[0].mxu0
      %v3020 = vadd.f32 %v2824, %v3019
      %v3021 = vpop.f32.mrb[0].mxu0
      %3022 = vmatprep.mubr.bf16.mxu0 %v2739
      %3023 = vmatmul.mubr.bf16.gmra.mrb[0].mxu0 %v2738
      %v3024 = vpop.f32.mrb[0].mxu0
      %v3025 = vadd.f32 %v2824, %v3024
      %v3026 = vpop.f32.mrb[0].mxu0
      %v3027 = vpop.f32.mrb[0].mxu0
      %v3028 = vadd.f32 %v2824, %v3027
      %v3029 = vpop.f32.mrb[0].mxu0
      %3030 = vmatprep.mubr.bf16.mxu0 %v2742
      %3031 = vmatmul.mubr.bf16.gmra.mrb[0].mxu0 %v2741
      %v3032 = vpop.f32.mrb[0].mxu0
      %v3033 = vadd.f32 %v2824, %v3032
      %v3034 = vpop.f32.mrb[0].mxu0
      %v3035 = vpop.f32.mrb[0].mxu0
      %v3036 = vadd.f32 %v2824, %v3035
      %v3037 = vpop.f32.mrb[0].mxu0
      %3038 = vmatprep.mubr.bf16.mxu0 %v2745
      %3039 = vmatmul.mubr.bf16.gmra.mrb[0].mxu0 %v2744
      %v3040 = vpop.f32.mrb[0].mxu0
      %v3041 = vadd.f32 %v2824, %v3040
      %v3042 = vpop.f32.mrb[0].mxu0
      %v3043 = vpop.f32.mrb[0].mxu0
      %v3044 = vadd.f32 %v2824, %v3043
      %v3045 = vpop.f32.mrb[0].mxu0
      %3046 = vmatprep.mubr.bf16.mxu0 %v2748
      %3047 = vmatmul.mubr.bf16.gmra.mrb[0].mxu0 %v2747
      %v3048 = vpop.f32.mrb[0].mxu0
      %v3049 = vadd.f32 %v2824, %v3048
      %v3050 = vpop.f32.mrb[0].mxu0
      %v3051 = vpop.f32.mrb[0].mxu0
      %v3052 = vadd.f32 %v2824, %v3051
      %v3053 = vpop.f32.mrb[0].mxu0
      %3054 = vmatprep.mubr.bf16.mxu0 %v2751
      %3055 = vmatmul.mubr.bf16.gmra.mrb[0].mxu0 %v2750
      %v3056 = vpop.f32.mrb[0].mxu0
      %v3057 = vadd.f32 %v2824, %v3056
      %v3058 = vpop.f32.mrb[0].mxu0
      %v3059 = vpop.f32.mrb[0].mxu0
      %v3060 = vadd.f32 %v2824, %v3059
      %v3061 = vpop.f32.mrb[0].mxu0
      %3062 = vmatprep.mubr.bf16.mxu0 %v2754
      %3063 = vmatmul.mubr.bf16.gmra.mrb[0].mxu0 %v2753
      %v3064 = vpop.f32.mrb[0].mxu0
      %v3065 = vadd.f32 %v2824, %v3064
      %v3066 = vpop.f32.mrb[0].mxu0
      %v3067 = vpop.f32.mrb[0].mxu0
      %v3068 = vadd.f32 %v2824, %v3067
      %v3069 = vpop.f32.mrb[0].mxu0
      %3070 = vmatprep.mubr.bf16.mxu0 %v2757
      %3071 = vmatmul.mubr.bf16.gmra.mrb[0].mxu0 %v2756
      %v3072 = vpop.f32.mrb[0].mxu0
      %v3073 = vadd.f32 %v2824, %v3072
      %v3074 = vpop.f32.mrb[0].mxu0
      %v3075 = vpop.f32.mrb[0].mxu0
      %v3076 = vadd.f32 %v2824, %v3075
      %v3077 = vpop.f32.mrb[0].mxu0
      %3078 = vmatprep.mubr.bf16.mxu0 %v2760
      %3079 = vmatmul.mubr.bf16.gmra.mrb[0].mxu0 %v2759
      %v3080 = vpop.f32.mrb[0].mxu0
      %v3081 = vadd.f32 %v2824, %v3080
      %v3082 = vpop.f32.mrb[0].mxu0
      %v3083 = vpop.f32.mrb[0].mxu0
      %v3084 = vadd.f32 %v2824, %v3083
      %v3085 = vpop.f32.mrb[0].mxu0
      %3086 = vmatprep.mubr.bf16.mxu0 %v2763
      %3087 = vmatmul.mubr.bf16.gmra.mrb[0].mxu0 %v2762
      %v3088 = vpop.f32.mrb[0].mxu0
      %v3089 = vadd.f32 %v2824, %v3088
      %v3090 = vpop.f32.mrb[0].mxu0
      %v3091 = vpop.f32.mrb[0].mxu0
      %v3092 = vadd.f32 %v2824, %v3091
      %v3093 = vpop.f32.mrb[0].mxu0
      %3094 = vmatprep.mubr.bf16.mxu0 %v2766
      %3095 = vmatmul.mubr.bf16.gmra.mrb[0].mxu0 %v2765
      %v3096 = vpop.f32.mrb[0].mxu0
      %v3097 = vadd.f32 %v2824, %v3096
      %v3098 = vpop.f32.mrb[0].mxu0
      %v3099 = vpop.f32.mrb[0].mxu0
      %v3100 = vadd.f32 %v2824, %v3099
      %v3101 = vpop.f32.mrb[0].mxu0
      %3102 = vmatprep.mubr.bf16.mxu0 %v2769
      %3103 = vmatmul.mubr.bf16.gmra.mrb[0].mxu0 %v2768
      %v3104 = vpop.f32.mrb[0].mxu0
      %v3105 = vadd.f32 %v2824, %v3104
      %v3106 = vpop.f32.mrb[0].mxu0
      %v3107 = vpop.f32.mrb[0].mxu0
      %v3108 = vadd.f32 %v2824, %v3107
      %v3109 = vpop.f32.mrb[0].mxu0
      %3110 = vmatprep.mubr.bf16.mxu0 %v2772
      %3111 = vmatmul.mubr.bf16.gmra.mrb[0].mxu0 %v2771
      %v3112 = vpop.f32.mrb[0].mxu0
      %v3113 = vadd.f32 %v2824, %v3112
      %v3114 = vpop.f32.mrb[0].mxu0
      %v3115 = vpop.f32.mrb[0].mxu0
      %v3116 = vadd.f32 %v2824, %v3115
      %v3117 = vpop.f32.mrb[0].mxu0
      %3118 = vmatprep.mubr.bf16.mxu0 %v2775
      %3119 = vmatmul.mubr.bf16.gmra.mrb[0].mxu0 %v2774
      %v3120 = vpop.f32.mrb[0].mxu0
      %v3121 = vadd.f32 %v2824, %v3120
      %v3122 = vpop.f32.mrb[0].mxu0
      %v3123 = vpop.f32.mrb[0].mxu0
      %v3124 = vadd.f32 %v2824, %v3123
      %v3125 = vpop.f32.mrb[0].mxu0
      %3126 = vmatprep.mubr.bf16.mxu0 %v2778
      %3127 = vmatmul.mubr.bf16.gmra.mrb[0].mxu0 %v2777
      %v3128 = vpop.f32.mrb[0].mxu0
      %v3129 = vadd.f32 %v2824, %v3128
      %v3130 = vpop.f32.mrb[0].mxu0
      %v3131 = vpop.f32.mrb[0].mxu0
      %v3132 = vadd.f32 %v2824, %v3131
      %v3133 = vpop.f32.mrb[0].mxu0
      %3134 = vmatprep.mubr.bf16.mxu0 %v2781
      %3135 = vmatmul.mubr.bf16.gmra.mrb[0].mxu0 %v2780
      %v3136 = vpop.f32.mrb[0].mxu0
      %v3137 = vadd.f32 %v2824, %v3136
      %v3138 = vpop.f32.mrb[0].mxu0
      %v3139 = vpop.f32.mrb[0].mxu0
      %v3140 = vadd.f32 %v2824, %v3139
      %v3141 = vpop.f32.mrb[0].mxu0
      %3142 = vdwg.mxu0
      %3143 = vmatprep.subr.bf16.mxu0 0
      %3144 = vmatpush1.bf16.msra.mxu0 %v2914
      %3145 = vmatprep.subr.bf16.mxu0 0
      %3146 = vmatpush1.bf16.msra.mxu0 %v2915
      %3147 = vmatprep.subr.bf16.mxu0 0
      %3148 = vmatpush1.bf16.msra.mxu0 0
      %3149 = vmatprep.subr.bf16.mxu0 0
      %3150 = vmatpush1.bf16.msra.mxu0 0
      %3151 = vmatprep.subr.bf16.mxu0 0
      %3152 = vmatpush1.bf16.msra.mxu0 0
      %3153 = vmatprep.subr.bf16.mxu0 0
      %3154 = vmatpush1.bf16.msra.mxu0 0
      %3155 = vmatprep.subr.bf16.mxu0 0
      %3156 = vmatpush1.bf16.msra.mxu0 0
      %3157 = vmatprep.subr.bf16.mxu0 0
      %3158 = vmatpush1.bf16.msra.mxu0 0
      %3159 = vmatprep.subr.bf16.mxu0 0
      %3160 = vmatpush1.bf16.msra.mxu0 0
      %3161 = vmatprep.subr.bf16.mxu0 0
      %3162 = vmatpush1.bf16.msra.mxu0 0
      %3163 = vmatprep.subr.bf16.mxu0 0
      %3164 = vmatpush1.bf16.msra.mxu0 0
      %3165 = vmatprep.subr.bf16.mxu0 0
      %3166 = vmatpush1.bf16.msra.mxu0 0
      %3167 = vmatprep.subr.bf16.mxu0 0
      %3168 = vmatpush1.bf16.msra.mxu0 0
      %3169 = vmatprep.subr.bf16.mxu0 0
      %3170 = vmatpush1.bf16.msra.mxu0 0
      %3171 = vmatprep.subr.bf16.mxu0 0
      %3172 = vmatpush1.bf16.msra.mxu0 0
      %3173 = vmatprep.subr.bf16.mxu0 0
      %3174 = vmatpush1.bf16.msra.mxu0 0
      %3175 = vmatprep.mubr.bf16.mxu0 0
      %3176 = vmatmul.mubr.bf16.gmra.mrb[0].mxu0 %v2935
      %v3177 = vpop.f32.mrb[0].mxu0
      %v3178 = vadd.f32 %v3017, %v3177
      %v3179 = vpop.f32.mrb[0].mxu0
      %v3180 = vpop.f32.mrb[0].mxu0
      %v3181 = vadd.f32 %v3020, %v3180
      %v3182 = vpop.f32.mrb[0].mxu0
      %3183 = vmatprep.mubr.bf16.mxu0 0
      %3184 = vmatmul.mubr.bf16.gmra.mrb[0].mxu0 %v2938
      %v3185 = vpop.f32.mrb[0].mxu0
      %v3186 = vadd.f32 %v3025, %v3185
      %v3187 = vpop.f32.mrb[0].mxu0
      %v3188 = vpop.f32.mrb[0].mxu0
      %v3189 = vadd.f32 %v3028, %v3188
      %v3190 = vpop.f32.mrb[0].mxu0
      %3191 = vmatprep.mubr.bf16.mxu0 0
      %3192 = vmatmul.mubr.bf16.gmra.mrb[0].mxu0 %v2941
      %v3193 = vpop.f32.mrb[0].mxu0
      %v3194 = vadd.f32 %v3033, %v3193
      %v3195 = vpop.f32.mrb[0].mxu0
      %v3196 = vpop.f32.mrb[0].mxu0
      %v3197 = vadd.f32 %v3036, %v3196
      %v3198 = vpop.f32.mrb[0].mxu0
      %3199 = vmatprep.mubr.bf16.mxu0 0
      %3200 = vmatmul.mubr.bf16.gmra.mrb[0].mxu0 %v2944
      %v3201 = vpop.f32.mrb[0].mxu0
      %v3202 = vadd.f32 %v3041, %v3201
      %v3203 = vpop.f32.mrb[0].mxu0
      %v3204 = vpop.f32.mrb[0].mxu0
      %v3205 = vadd.f32 %v3044, %v3204
      %v3206 = vpop.f32.mrb[0].mxu0
      %3207 = vmatprep.mubr.bf16.mxu0 0
      %3208 = vmatmul.mubr.bf16.gmra.mrb[0].mxu0 %v2947
      %v3209 = vpop.f32.mrb[0].mxu0
      %v3210 = vadd.f32 %v3049, %v3209
      %v3211 = vpop.f32.mrb[0].mxu0
      %v3212 = vpop.f32.mrb[0].mxu0
      %v3213 = vadd.f32 %v3052, %v3212
      %v3214 = vpop.f32.mrb[0].mxu0
      %3215 = vmatprep.mubr.bf16.mxu0 0
      %3216 = vmatmul.mubr.bf16.gmra.mrb[0].mxu0 %v2950
      %v3217 = vpop.f32.mrb[0].mxu0
      %v3218 = vadd.f32 %v3057, %v3217
      %v3219 = vpop.f32.mrb[0].mxu0
      %v3220 = vpop.f32.mrb[0].mxu0
      %v3221 = vadd.f32 %v3060, %v3220
      %v3222 = vpop.f32.mrb[0].mxu0
      %3223 = vmatprep.mubr.bf16.mxu0 0
      %3224 = vmatmul.mubr.bf16.gmra.mrb[0].mxu0 %v2953
      %v3225 = vpop.f32.mrb[0].mxu0
      %v3226 = vadd.f32 %v3065, %v3225
      %v3227 = vpop.f32.mrb[0].mxu0
      %v3228 = vpop.f32.mrb[0].mxu0
      %v3229 = vadd.f32 %v3068, %v3228
      %v3230 = vpop.f32.mrb[0].mxu0
      %3231 = vmatprep.mubr.bf16.mxu0 0
      %3232 = vmatmul.mubr.bf16.gmra.mrb[0].mxu0 %v2956
      %v3233 = vpop.f32.mrb[0].mxu0
      %v3234 = vadd.f32 %v3073, %v3233
      %v3235 = vpop.f32.mrb[0].mxu0
      %v3236 = vpop.f32.mrb[0].mxu0
      %v3237 = vadd.f32 %v3076, %v3236
      %v3238 = vpop.f32.mrb[0].mxu0
      %3239 = vmatprep.mubr.bf16.mxu0 0
      %3240 = vmatmul.mubr.bf16.gmra.mrb[0].mxu0 %v2959
      %v3241 = vpop.f32.mrb[0].mxu0
      %v3242 = vadd.f32 %v3081, %v3241
      %v3243 = vpop.f32.mrb[0].mxu0
      %v3244 = vpop.f32.mrb[0].mxu0
      %v3245 = vadd.f32 %v3084, %v3244
      %v3246 = vpop.f32.mrb[0].mxu0
      %3247 = vmatprep.mubr.bf16.mxu0 0
      %3248 = vmatmul.mubr.bf16.gmra.mrb[0].mxu0 %v2962
      %v3249 = vpop.f32.mrb[0].mxu0
      %v3250 = vadd.f32 %v3089, %v3249
      %v3251 = vpop.f32.mrb[0].mxu0
      %v3252 = vpop.f32.mrb[0].mxu0
      %v3253 = vadd.f32 %v3092, %v3252
      %v3254 = vpop.f32.mrb[0].mxu0
      %3255 = vmatprep.mubr.bf16.mxu0 0
      %3256 = vmatmul.mubr.bf16.gmra.mrb[0].mxu0 %v2965
      %v3257 = vpop.f32.mrb[0].mxu0
      %v3258 = vadd.f32 %v3097, %v3257
      %v3259 = vpop.f32.mrb[0].mxu0
      %v3260 = vpop.f32.mrb[0].mxu0
      %v3261 = vadd.f32 %v3100, %v3260
      %v3262 = vpop.f32.mrb[0].mxu0
      %3263 = vmatprep.mubr.bf16.mxu0 0
      %3264 = vmatmul.mubr.bf16.gmra.mrb[0].mxu0 %v2968
      %v3265 = vpop.f32.mrb[0].mxu0
      %v3266 = vadd.f32 %v3105, %v3265
      %v3267 = vpop.f32.mrb[0].mxu0
      %v3268 = vpop.f32.mrb[0].mxu0
      %v3269 = vadd.f32 %v3108, %v3268
      %v3270 = vpop.f32.mrb[0].mxu0
      %3271 = vmatprep.mubr.bf16.mxu0 0
      %3272 = vmatmul.mubr.bf16.gmra.mrb[0].mxu0 %v2971
      %v3273 = vpop.f32.mrb[0].mxu0
      %v3274 = vadd.f32 %v3113, %v3273
      %v3275 = vpop.f32.mrb[0].mxu0
      %v3276 = vpop.f32.mrb[0].mxu0
      %v3277 = vadd.f32 %v3116, %v3276
      %v3278 = vpop.f32.mrb[0].mxu0
      %3279 = vmatprep.mubr.bf16.mxu0 0
      %3280 = vmatmul.mubr.bf16.gmra.mrb[0].mxu0 %v2974
      %v3281 = vpop.f32.mrb[0].mxu0
      %v3282 = vadd.f32 %v3121, %v3281
      %v3283 = vpop.f32.mrb[0].mxu0
      %v3284 = vpop.f32.mrb[0].mxu0
      %v3285 = vadd.f32 %v3124, %v3284
      %v3286 = vpop.f32.mrb[0].mxu0
      %3287 = vmatprep.mubr.bf16.mxu0 0
      %3288 = vmatmul.mubr.bf16.gmra.mrb[0].mxu0 %v2977
      %v3289 = vpop.f32.mrb[0].mxu0
      %v3290 = vadd.f32 %v3129, %v3289
      %v3291 = vpop.f32.mrb[0].mxu0
      %v3292 = vpop.f32.mrb[0].mxu0
      %v3293 = vadd.f32 %v3132, %v3292
      %v3294 = vpop.f32.mrb[0].mxu0
      %3295 = vmatprep.mubr.bf16.mxu0 0
      %3296 = vmatmul.mubr.bf16.gmra.mrb[0].mxu0 %v2980
      %v3297 = vpop.f32.mrb[0].mxu0
      %v3298 = vadd.f32 %v3137, %v3297
      %v3299 = vpop.f32.mrb[0].mxu0
      %v3300 = vpop.f32.mrb[0].mxu0
      %v3301 = vadd.f32 %v3140, %v3300
      %v3302 = vpop.f32.mrb[0].mxu0
      %3303 = vdwg.mxu0
      %v3304 = vmax.f32 %v3178, 0.0
      %v3305 = vmax.f32 %v3181, 0.0
      %v3306 = vmax.f32 %v3186, 0.0
      %v3307 = vmax.f32 %v3189, 0.0
      %v3308 = vmax.f32 %v3194, 0.0
      %v3309 = vmax.f32 %v3197, 0.0
      %v3310 = vmax.f32 %v3202, 0.0
      %v3311 = vmax.f32 %v3205, 0.0
      %v3312 = vmax.f32 %v3210, 0.0
      %v3313 = vmax.f32 %v3213, 0.0
      %v3314 = vmax.f32 %v3218, 0.0
      %v3315 = vmax.f32 %v3221, 0.0
      %v3316 = vmax.f32 %v3226, 0.0
      %v3317 = vmax.f32 %v3229, 0.0
      %v3318 = vmax.f32 %v3234, 0.0
      %v3319 = vmax.f32 %v3237, 0.0
      %v3320 = vmax.f32 %v3242, 0.0
      %v3321 = vmax.f32 %v3245, 0.0
      %v3322 = vmax.f32 %v3250, 0.0
      %v3323 = vmax.f32 %v3253, 0.0
      %v3324 = vmax.f32 %v3258, 0.0
      %v3325 = vmax.f32 %v3261, 0.0
      %v3326 = vmax.f32 %v3266, 0.0
      %v3327 = vmax.f32 %v3269, 0.0
      %v3328 = vmax.f32 %v3274, 0.0
      %v3329 = vmax.f32 %v3277, 0.0
      %v3330 = vmax.f32 %v3282, 0.0
      %v3331 = vmax.f32 %v3285, 0.0
      %v3332 = vmax.f32 %v3290, 0.0
      %v3333 = vmax.f32 %v3293, 0.0
      %v3334 = vmax.f32 %v3298, 0.0
      %v3335 = vmax.f32 %v3301, 0.0
      %v3368 = vrot.slane %v3304, 7
      %v3369 = vrot.slane %v3305, 7
      %v3370 = vsel %vm344, %v3368, %v3369
      %v3371 = vrot.slane %v3306, 7
      %v3372 = vrot.slane %v3307, 7
      %v3373 = vsel %vm344, %v3371, %v3372
      %v3374 = vrot.slane %v3308, 7
      %v3375 = vrot.slane %v3309, 7
      %v3376 = vsel %vm344, %v3374, %v3375
      %v3377 = vrot.slane %v3310, 7
      %v3378 = vrot.slane %v3311, 7
      %v3379 = vsel %vm344, %v3377, %v3378
      %v3380 = vrot.slane %v3312, 7
      %v3381 = vrot.slane %v3313, 7
      %v3382 = vsel %vm344, %v3380, %v3381
      %v3383 = vrot.slane %v3314, 7
      %v3384 = vrot.slane %v3315, 7
      %v3385 = vsel %vm344, %v3383, %v3384
      %v3386 = vrot.slane %v3316, 7
      %v3387 = vrot.slane %v3317, 7
      %v3388 = vsel %vm344, %v3386, %v3387
      %v3389 = vrot.slane %v3318, 7
      %v3390 = vrot.slane %v3319, 7
      %v3391 = vsel %vm344, %v3389, %v3390
      %v3392 = vrot.slane %v3320, 7
      %v3393 = vrot.slane %v3321, 7
      %v3394 = vsel %vm344, %v3392, %v3393
      %v3395 = vrot.slane %v3322, 7
      %v3396 = vrot.slane %v3323, 7
      %v3397 = vsel %vm344, %v3395, %v3396
      %v3398 = vrot.slane %v3324, 7
      %v3399 = vrot.slane %v3325, 7
      %v3400 = vsel %vm344, %v3398, %v3399
      %v3401 = vrot.slane %v3326, 7
      %v3402 = vrot.slane %v3327, 7
      %v3403 = vsel %vm344, %v3401, %v3402
      %v3404 = vrot.slane %v3328, 7
      %v3405 = vrot.slane %v3329, 7
      %v3406 = vsel %vm344, %v3404, %v3405
      %v3407 = vrot.slane %v3330, 7
      %v3408 = vrot.slane %v3331, 7
      %v3409 = vsel %vm344, %v3407, %v3408
      %v3410 = vrot.slane %v3332, 7
      %v3411 = vrot.slane %v3333, 7
      %v3412 = vsel %vm344, %v3410, %v3411
      %v3413 = vrot.slane %v3334, 7
      %v3414 = vrot.slane %v3335, 7
      %v3415 = vsel %vm344, %v3413, %v3414
      %v3463 = vrot.slane %v3305, 6
      %v3464 = vrot.slane %v3307, 6
      %v3465 = vrot.slane %v3309, 6
      %v3466 = vrot.slane %v3311, 6
      %v3467 = vrot.slane %v3313, 6
      %v3468 = vrot.slane %v3315, 6
      %v3469 = vrot.slane %v3317, 6
      %v3470 = vrot.slane %v3319, 6
      %v3471 = vrot.slane %v3321, 6
      %v3472 = vrot.slane %v3323, 6
      %v3473 = vrot.slane %v3325, 6
      %v3474 = vrot.slane %v3327, 6
      %v3475 = vrot.slane %v3329, 6
      %v3476 = vrot.slane %v3331, 6
      %v3477 = vrot.slane %v3333, 6
      %v3478 = vrot.slane %v3335, 6
      %v3495 = vsel %vm344, %v3304, %v3368
      %v3496 = vsel %vm344, %v3306, %v3371
      %v3497 = vsel %vm344, %v3308, %v3374
      %v3498 = vsel %vm344, %v3310, %v3377
      %v3499 = vsel %vm344, %v3312, %v3380
      %v3500 = vsel %vm344, %v3314, %v3383
      %v3501 = vsel %vm344, %v3316, %v3386
      %v3502 = vsel %vm344, %v3318, %v3389
      %v3503 = vsel %vm344, %v3320, %v3392
      %v3504 = vsel %vm344, %v3322, %v3395
      %v3505 = vsel %vm344, %v3324, %v3398
      %v3506 = vsel %vm344, %v3326, %v3401
      %v3507 = vsel %vm344, %v3328, %v3404
      %v3508 = vsel %vm344, %v3330, %v3407
      %v3509 = vsel %vm344, %v3332, %v3410
      %v3510 = vsel %vm344, %v3334, %v3413
      %v3511 = vsel %vm344, %v3369, %v3463
      %v3512 = vsel %vm344, %v3372, %v3464
      %v3513 = vsel %vm344, %v3375, %v3465
      %v3514 = vsel %vm344, %v3378, %v3466
      %v3515 = vsel %vm344, %v3381, %v3467
      %v3516 = vsel %vm344, %v3384, %v3468
      %v3517 = vsel %vm344, %v3387, %v3469
      %v3518 = vsel %vm344, %v3390, %v3470
      %v3519 = vsel %vm344, %v3393, %v3471
      %v3520 = vsel %vm344, %v3396, %v3472
      %v3521 = vsel %vm344, %v3399, %v3473
      %v3522 = vsel %vm344, %v3402, %v3474
      %v3523 = vsel %vm344, %v3405, %v3475
      %v3524 = vsel %vm344, %v3408, %v3476
      %v3525 = vsel %vm344, %v3411, %v3477
      %v3526 = vsel %vm344, %v3414, %v3478
      %3559 = vrot.lane.b32.xlu0 %v3495, 32
      %v3560 = vpop.permute.xlu0 %3559
      %3561 = vrot.lane.b32.xlu0 %v3370, 32
      %v3562 = vpop.permute.xlu0 %3561
      %3563 = vrot.lane.b32.xlu0 %v3511, 32
      %v3564 = vpop.permute.xlu0 %3563
      %3565 = vrot.lane.b32.xlu0 %v3496, 32
      %v3566 = vpop.permute.xlu0 %3565
      %3567 = vrot.lane.b32.xlu0 %v3373, 32
      %v3568 = vpop.permute.xlu0 %3567
      %3569 = vrot.lane.b32.xlu0 %v3512, 32
      %v3570 = vpop.permute.xlu0 %3569
      %3571 = vrot.lane.b32.xlu0 %v3497, 32
      %v3572 = vpop.permute.xlu0 %3571
      %3573 = vrot.lane.b32.xlu0 %v3376, 32
      %v3574 = vpop.permute.xlu0 %3573
      %3575 = vrot.lane.b32.xlu0 %v3513, 32
      %v3576 = vpop.permute.xlu0 %3575
      %3577 = vrot.lane.b32.xlu0 %v3498, 32
      %v3578 = vpop.permute.xlu0 %3577
      %3579 = vrot.lane.b32.xlu0 %v3379, 32
      %v3580 = vpop.permute.xlu0 %3579
      %3581 = vrot.lane.b32.xlu0 %v3514, 32
      %v3582 = vpop.permute.xlu0 %3581
      %3583 = vrot.lane.b32.xlu0 %v3499, 32
      %v3584 = vpop.permute.xlu0 %3583
      %3585 = vrot.lane.b32.xlu0 %v3382, 32
      %v3586 = vpop.permute.xlu0 %3585
      %3587 = vrot.lane.b32.xlu0 %v3515, 32
      %v3588 = vpop.permute.xlu0 %3587
      %3589 = vrot.lane.b32.xlu0 %v3500, 32
      %v3590 = vpop.permute.xlu0 %3589
      %3591 = vrot.lane.b32.xlu0 %v3385, 32
      %v3592 = vpop.permute.xlu0 %3591
      %3593 = vrot.lane.b32.xlu0 %v3516, 32
      %v3594 = vpop.permute.xlu0 %3593
      %3595 = vrot.lane.b32.xlu0 %v3501, 32
      %v3596 = vpop.permute.xlu0 %3595
      %3597 = vrot.lane.b32.xlu0 %v3388, 32
      %v3598 = vpop.permute.xlu0 %3597
      %3599 = vrot.lane.b32.xlu0 %v3517, 32
      %v3600 = vpop.permute.xlu0 %3599
      %3601 = vrot.lane.b32.xlu0 %v3502, 32
      %v3602 = vpop.permute.xlu0 %3601
      %3603 = vrot.lane.b32.xlu0 %v3391, 32
      %v3604 = vpop.permute.xlu0 %3603
      %3605 = vrot.lane.b32.xlu0 %v3518, 32
      %v3606 = vpop.permute.xlu0 %3605
      %3607 = vrot.lane.b32.xlu0 %v3503, 32
      %v3608 = vpop.permute.xlu0 %3607
      %3609 = vrot.lane.b32.xlu0 %v3394, 32
      %v3610 = vpop.permute.xlu0 %3609
      %3611 = vrot.lane.b32.xlu0 %v3519, 32
      %v3612 = vpop.permute.xlu0 %3611
      %3613 = vrot.lane.b32.xlu0 %v3504, 32
      %v3614 = vpop.permute.xlu0 %3613
      %3615 = vrot.lane.b32.xlu0 %v3397, 32
      %v3616 = vpop.permute.xlu0 %3615
      %3617 = vrot.lane.b32.xlu0 %v3520, 32
      %v3618 = vpop.permute.xlu0 %3617
      %3619 = vrot.lane.b32.xlu0 %v3505, 32
      %v3620 = vpop.permute.xlu0 %3619
      %3621 = vrot.lane.b32.xlu0 %v3400, 32
      %v3622 = vpop.permute.xlu0 %3621
      %3623 = vrot.lane.b32.xlu0 %v3521, 32
      %v3624 = vpop.permute.xlu0 %3623
      %3625 = vrot.lane.b32.xlu0 %v3506, 32
      %v3626 = vpop.permute.xlu0 %3625
      %3627 = vrot.lane.b32.xlu0 %v3403, 32
      %v3628 = vpop.permute.xlu0 %3627
      %3629 = vrot.lane.b32.xlu0 %v3522, 32
      %v3630 = vpop.permute.xlu0 %3629
      %3631 = vrot.lane.b32.xlu0 %v3507, 32
      %v3632 = vpop.permute.xlu0 %3631
      %3633 = vrot.lane.b32.xlu0 %v3406, 32
      %v3634 = vpop.permute.xlu0 %3633
      %3635 = vrot.lane.b32.xlu0 %v3523, 32
      %v3636 = vpop.permute.xlu0 %3635
      %3637 = vrot.lane.b32.xlu0 %v3508, 32
      %v3638 = vpop.permute.xlu0 %3637
      %3639 = vrot.lane.b32.xlu0 %v3409, 32
      %v3640 = vpop.permute.xlu0 %3639
      %3641 = vrot.lane.b32.xlu0 %v3524, 32
      %v3642 = vpop.permute.xlu0 %3641
      %3643 = vrot.lane.b32.xlu0 %v3509, 32
      %v3644 = vpop.permute.xlu0 %3643
      %3645 = vrot.lane.b32.xlu0 %v3412, 32
      %v3646 = vpop.permute.xlu0 %3645
      %3647 = vrot.lane.b32.xlu0 %v3525, 32
      %v3648 = vpop.permute.xlu0 %3647
      %3649 = vrot.lane.b32.xlu0 %v3510, 32
      %v3650 = vpop.permute.xlu0 %3649
      %3651 = vrot.lane.b32.xlu0 %v3415, 32
      %v3652 = vpop.permute.xlu0 %3651
      %3653 = vrot.lane.b32.xlu0 %v3526, 32
      %v3654 = vpop.permute.xlu0 %3653
      %3703 = vrot.lane.b32.xlu0 %v3496, 64
      %v3704 = vpop.permute.xlu0 %3703
      %3705 = vrot.lane.b32.xlu0 %v3373, 64
      %v3706 = vpop.permute.xlu0 %3705
      %3707 = vrot.lane.b32.xlu0 %v3512, 64
      %v3708 = vpop.permute.xlu0 %3707
      %3709 = vrot.lane.b32.xlu0 %v3497, 64
      %v3710 = vpop.permute.xlu0 %3709
      %3711 = vrot.lane.b32.xlu0 %v3376, 64
      %v3712 = vpop.permute.xlu0 %3711
      %3713 = vrot.lane.b32.xlu0 %v3513, 64
      %v3714 = vpop.permute.xlu0 %3713
      %3715 = vrot.lane.b32.xlu0 %v3498, 64
      %v3716 = vpop.permute.xlu0 %3715
      %3717 = vrot.lane.b32.xlu0 %v3379, 64
      %v3718 = vpop.permute.xlu0 %3717
      %3719 = vrot.lane.b32.xlu0 %v3514, 64
      %v3720 = vpop.permute.xlu0 %3719
      %3721 = vrot.lane.b32.xlu0 %v3499, 64
      %v3722 = vpop.permute.xlu0 %3721
      %3723 = vrot.lane.b32.xlu0 %v3382, 64
      %v3724 = vpop.permute.xlu0 %3723
      %3725 = vrot.lane.b32.xlu0 %v3515, 64
      %v3726 = vpop.permute.xlu0 %3725
      %3727 = vrot.lane.b32.xlu0 %v3500, 64
      %v3728 = vpop.permute.xlu0 %3727
      %3729 = vrot.lane.b32.xlu0 %v3385, 64
      %v3730 = vpop.permute.xlu0 %3729
      %3731 = vrot.lane.b32.xlu0 %v3516, 64
      %v3732 = vpop.permute.xlu0 %3731
      %3733 = vrot.lane.b32.xlu0 %v3501, 64
      %v3734 = vpop.permute.xlu0 %3733
      %3735 = vrot.lane.b32.xlu0 %v3388, 64
      %v3736 = vpop.permute.xlu0 %3735
      %3737 = vrot.lane.b32.xlu0 %v3517, 64
      %v3738 = vpop.permute.xlu0 %3737
      %3739 = vrot.lane.b32.xlu0 %v3502, 64
      %v3740 = vpop.permute.xlu0 %3739
      %3741 = vrot.lane.b32.xlu0 %v3391, 64
      %v3742 = vpop.permute.xlu0 %3741
      %3743 = vrot.lane.b32.xlu0 %v3518, 64
      %v3744 = vpop.permute.xlu0 %3743
      %3745 = vrot.lane.b32.xlu0 %v3503, 64
      %v3746 = vpop.permute.xlu0 %3745
      %3747 = vrot.lane.b32.xlu0 %v3394, 64
      %v3748 = vpop.permute.xlu0 %3747
      %3749 = vrot.lane.b32.xlu0 %v3519, 64
      %v3750 = vpop.permute.xlu0 %3749
      %3751 = vrot.lane.b32.xlu0 %v3504, 64
      %v3752 = vpop.permute.xlu0 %3751
      %3753 = vrot.lane.b32.xlu0 %v3397, 64
      %v3754 = vpop.permute.xlu0 %3753
      %3755 = vrot.lane.b32.xlu0 %v3520, 64
      %v3756 = vpop.permute.xlu0 %3755
      %3757 = vrot.lane.b32.xlu0 %v3505, 64
      %v3758 = vpop.permute.xlu0 %3757
      %3759 = vrot.lane.b32.xlu0 %v3400, 64
      %v3760 = vpop.permute.xlu0 %3759
      %3761 = vrot.lane.b32.xlu0 %v3521, 64
      %v3762 = vpop.permute.xlu0 %3761
      %3763 = vrot.lane.b32.xlu0 %v3506, 64
      %v3764 = vpop.permute.xlu0 %3763
      %3765 = vrot.lane.b32.xlu0 %v3403, 64
      %v3766 = vpop.permute.xlu0 %3765
      %3767 = vrot.lane.b32.xlu0 %v3522, 64
      %v3768 = vpop.permute.xlu0 %3767
      %3769 = vrot.lane.b32.xlu0 %v3507, 64
      %v3770 = vpop.permute.xlu0 %3769
      %3771 = vrot.lane.b32.xlu0 %v3406, 64
      %v3772 = vpop.permute.xlu0 %3771
      %3773 = vrot.lane.b32.xlu0 %v3523, 64
      %v3774 = vpop.permute.xlu0 %3773
      %3775 = vrot.lane.b32.xlu0 %v3508, 64
      %v3776 = vpop.permute.xlu0 %3775
      %3777 = vrot.lane.b32.xlu0 %v3409, 64
      %v3778 = vpop.permute.xlu0 %3777
      %3779 = vrot.lane.b32.xlu0 %v3524, 64
      %v3780 = vpop.permute.xlu0 %3779
      %3781 = vrot.lane.b32.xlu0 %v3509, 64
      %v3782 = vpop.permute.xlu0 %3781
      %3783 = vrot.lane.b32.xlu0 %v3412, 64
      %v3784 = vpop.permute.xlu0 %3783
      %3785 = vrot.lane.b32.xlu0 %v3525, 64
      %v3786 = vpop.permute.xlu0 %3785
      %3787 = vrot.lane.b32.xlu0 %v3510, 64
      %v3788 = vpop.permute.xlu0 %3787
      %3789 = vrot.lane.b32.xlu0 %v3415, 64
      %v3790 = vpop.permute.xlu0 %3789
      %3791 = vrot.lane.b32.xlu0 %v3526, 64
      %v3792 = vpop.permute.xlu0 %3791
      %v3838 = vsel %vm2172, %v3495, %v3560
      %v3839 = vsel %vm2172, %v3370, %v3562
      %v3840 = vsel %vm2172, %v3511, %v3564
      %v3841 = vsel %vm2172, %v3495, %v3566
      %v3842 = vsel %vm2172, %v3370, %v3568
      %v3843 = vsel %vm2172, %v3511, %v3570
      %v3844 = vsel %vm2172, %v3496, %v3572
      %v3845 = vsel %vm2172, %v3373, %v3574
      %v3846 = vsel %vm2172, %v3512, %v3576
      %v3847 = vsel %vm2172, %v3497, %v3578
      %v3848 = vsel %vm2172, %v3376, %v3580
      %v3849 = vsel %vm2172, %v3513, %v3582
      %v3850 = vsel %vm2172, %v3498, %v3584
      %v3851 = vsel %vm2172, %v3379, %v3586
      %v3852 = vsel %vm2172, %v3514, %v3588
      %v3853 = vsel %vm2172, %v3499, %v3590
      %v3854 = vsel %vm2172, %v3382, %v3592
      %v3855 = vsel %vm2172, %v3515, %v3594
      %v3856 = vsel %vm2172, %v3500, %v3596
      %v3857 = vsel %vm2172, %v3385, %v3598
      %v3858 = vsel %vm2172, %v3516, %v3600
      %v3859 = vsel %vm2172, %v3501, %v3602
      %v3860 = vsel %vm2172, %v3388, %v3604
      %v3861 = vsel %vm2172, %v3517, %v3606
      %v3862 = vsel %vm2172, %v3502, %v3608
      %v3863 = vsel %vm2172, %v3391, %v3610
      %v3864 = vsel %vm2172, %v3518, %v3612
      %v3865 = vsel %vm2172, %v3503, %v3614
      %v3866 = vsel %vm2172, %v3394, %v3616
      %v3867 = vsel %vm2172, %v3519, %v3618
      %v3868 = vsel %vm2172, %v3504, %v3620
      %v3869 = vsel %vm2172, %v3397, %v3622
      %v3870 = vsel %vm2172, %v3520, %v3624
      %v3871 = vsel %vm2172, %v3505, %v3626
      %v3872 = vsel %vm2172, %v3400, %v3628
      %v3873 = vsel %vm2172, %v3521, %v3630
      %v3874 = vsel %vm2172, %v3506, %v3632
      %v3875 = vsel %vm2172, %v3403, %v3634
      %v3876 = vsel %vm2172, %v3522, %v3636
      %v3877 = vsel %vm2172, %v3507, %v3638
      %v3878 = vsel %vm2172, %v3406, %v3640
      %v3879 = vsel %vm2172, %v3523, %v3642
      %v3880 = vsel %vm2172, %v3508, %v3644
      %v3881 = vsel %vm2172, %v3409, %v3646
      %v3882 = vsel %vm2172, %v3524, %v3648
      %v3883 = vsel %vm2172, %v3509, %v3650
      %v3884 = vsel %vm2172, %v3412, %v3652
      %v3885 = vsel %vm2172, %v3525, %v3654
      %v3886 = vsel %vm2221, %v3838, %v3704
      %v3887 = vsel %vm2221, %v3839, %v3706
      %v3888 = vsel %vm2221, %v3840, %v3708
      %v3889 = vsel %vm2221, %v3841, %v3710
      %v3890 = vsel %vm2221, %v3842, %v3712
      %v3891 = vsel %vm2221, %v3843, %v3714
      %v3892 = vsel %vm2221, %v3844, %v3716
      %v3893 = vsel %vm2221, %v3845, %v3718
      %v3894 = vsel %vm2221, %v3846, %v3720
      %v3895 = vsel %vm2221, %v3847, %v3722
      %v3896 = vsel %vm2221, %v3848, %v3724
      %v3897 = vsel %vm2221, %v3849, %v3726
      %v3898 = vsel %vm2221, %v3850, %v3728
      %v3899 = vsel %vm2221, %v3851, %v3730
      %v3900 = vsel %vm2221, %v3852, %v3732
      %v3901 = vsel %vm2221, %v3853, %v3734
      %v3902 = vsel %vm2221, %v3854, %v3736
      %v3903 = vsel %vm2221, %v3855, %v3738
      %v3904 = vsel %vm2221, %v3856, %v3740
      %v3905 = vsel %vm2221, %v3857, %v3742
      %v3906 = vsel %vm2221, %v3858, %v3744
      %v3907 = vsel %vm2221, %v3859, %v3746
      %v3908 = vsel %vm2221, %v3860, %v3748
      %v3909 = vsel %vm2221, %v3861, %v3750
      %v3910 = vsel %vm2221, %v3862, %v3752
      %v3911 = vsel %vm2221, %v3863, %v3754
      %v3912 = vsel %vm2221, %v3864, %v3756
      %v3913 = vsel %vm2221, %v3865, %v3758
      %v3914 = vsel %vm2221, %v3866, %v3760
      %v3915 = vsel %vm2221, %v3867, %v3762
      %v3916 = vsel %vm2221, %v3868, %v3764
      %v3917 = vsel %vm2221, %v3869, %v3766
      %v3918 = vsel %vm2221, %v3870, %v3768
      %v3919 = vsel %vm2221, %v3871, %v3770
      %v3920 = vsel %vm2221, %v3872, %v3772
      %v3921 = vsel %vm2221, %v3873, %v3774
      %v3922 = vsel %vm2221, %v3874, %v3776
      %v3923 = vsel %vm2221, %v3875, %v3778
      %v3924 = vsel %vm2221, %v3876, %v3780
      %v3925 = vsel %vm2221, %v3877, %v3782
      %v3926 = vsel %vm2221, %v3878, %v3784
      %v3927 = vsel %vm2221, %v3879, %v3786
      %v3928 = vsel %vm2221, %v3880, %v3788
      %v3929 = vsel %vm2221, %v3881, %v3790
      %v3930 = vsel %vm2221, %v3882, %v3792
      %v3931 = vsel %vm2221, %v3883, %v3788
      %v3932 = vsel %vm2221, %v3884, %v3790
      %v3933 = vsel %vm2221, %v3885, %v3792
      %v3982 = vrot.slane %v3886, 1
      %v3983 = vrot.slane %v3887, 1
      %v3984 = vsel %vm961, %v3982, %v3983
      %v3985 = vrot.slane %v3888, 1
      %v3986 = vsel %vm961, %v3983, %v3985
      %v3987 = vrot.slane %v3889, 1
      %v3988 = vrot.slane %v3890, 1
      %v3989 = vsel %vm961, %v3987, %v3988
      %v3990 = vrot.slane %v3891, 1
      %v3991 = vsel %vm961, %v3988, %v3990
      %v3992 = vrot.slane %v3892, 1
      %v3993 = vrot.slane %v3893, 1
      %v3994 = vsel %vm961, %v3992, %v3993
      %v3995 = vrot.slane %v3894, 1
      %v3996 = vsel %vm961, %v3993, %v3995
      %v3997 = vrot.slane %v3895, 1
      %v3998 = vrot.slane %v3896, 1
      %v3999 = vsel %vm961, %v3997, %v3998
      %v4000 = vrot.slane %v3897, 1
      %v4001 = vsel %vm961, %v3998, %v4000
      %v4002 = vrot.slane %v3898, 1
      %v4003 = vrot.slane %v3899, 1
      %v4004 = vsel %vm961, %v4002, %v4003
      %v4005 = vrot.slane %v3900, 1
      %v4006 = vsel %vm961, %v4003, %v4005
      %v4007 = vrot.slane %v3901, 1
      %v4008 = vrot.slane %v3902, 1
      %v4009 = vsel %vm961, %v4007, %v4008
      %v4010 = vrot.slane %v3903, 1
      %v4011 = vsel %vm961, %v4008, %v4010
      %v4012 = vrot.slane %v3904, 1
      %v4013 = vrot.slane %v3905, 1
      %v4014 = vsel %vm961, %v4012, %v4013
      %v4015 = vrot.slane %v3906, 1
      %v4016 = vsel %vm961, %v4013, %v4015
      %v4017 = vrot.slane %v3907, 1
      %v4018 = vrot.slane %v3908, 1
      %v4019 = vsel %vm961, %v4017, %v4018
      %v4020 = vrot.slane %v3909, 1
      %v4021 = vsel %vm961, %v4018, %v4020
      %v4022 = vrot.slane %v3910, 1
      %v4023 = vrot.slane %v3911, 1
      %v4024 = vsel %vm961, %v4022, %v4023
      %v4025 = vrot.slane %v3912, 1
      %v4026 = vsel %vm961, %v4023, %v4025
      %v4027 = vrot.slane %v3913, 1
      %v4028 = vrot.slane %v3914, 1
      %v4029 = vsel %vm961, %v4027, %v4028
      %v4030 = vrot.slane %v3915, 1
      %v4031 = vsel %vm961, %v4028, %v4030
      %v4032 = vrot.slane %v3916, 1
      %v4033 = vrot.slane %v3917, 1
      %v4034 = vsel %vm961, %v4032, %v4033
      %v4035 = vrot.slane %v3918, 1
      %v4036 = vsel %vm961, %v4033, %v4035
      %v4037 = vrot.slane %v3919, 1
      %v4038 = vrot.slane %v3920, 1
      %v4039 = vsel %vm961, %v4037, %v4038
      %v4040 = vrot.slane %v3921, 1
      %v4041 = vsel %vm961, %v4038, %v4040
      %v4042 = vrot.slane %v3922, 1
      %v4043 = vrot.slane %v3923, 1
      %v4044 = vsel %vm961, %v4042, %v4043
      %v4045 = vrot.slane %v3924, 1
      %v4046 = vsel %vm961, %v4043, %v4045
      %v4047 = vrot.slane %v3925, 1
      %v4048 = vrot.slane %v3926, 1
      %v4049 = vsel %vm961, %v4047, %v4048
      %v4050 = vrot.slane %v3927, 1
      %v4051 = vsel %vm961, %v4048, %v4050
      %v4052 = vrot.slane %v3928, 1
      %v4053 = vrot.slane %v3929, 1
      %v4054 = vsel %vm961, %v4052, %v4053
      %v4055 = vrot.slane %v3930, 1
      %v4056 = vsel %vm961, %v4053, %v4055
      %v4057 = vrot.slane %v3931, 1
      %v4058 = vrot.slane %v3932, 1
      %v4059 = vsel %vm961, %v4057, %v4058
      %v4060 = vrot.slane %v3933, 1
      %v4061 = vsel %vm961, %v4058, %v4060
      %4062 = vrot.lane.b32.xlu0 %v3984, 96
      %v4063 = vpop.permute.xlu0 %4062
      %4064 = vrot.lane.b32.xlu0 %v3986, 96
      %v4065 = vpop.permute.xlu0 %4064
      %4066 = vrot.lane.b32.xlu0 %v3989, 96
      %v4067 = vpop.permute.xlu0 %4066
      %4068 = vrot.lane.b32.xlu0 %v3991, 96
      %v4069 = vpop.permute.xlu0 %4068
      %4070 = vrot.lane.b32.xlu0 %v3994, 96
      %v4071 = vpop.permute.xlu0 %4070
      %4072 = vrot.lane.b32.xlu0 %v3996, 96
      %v4073 = vpop.permute.xlu0 %4072
      %4074 = vrot.lane.b32.xlu0 %v3999, 96
      %v4075 = vpop.permute.xlu0 %4074
      %4076 = vrot.lane.b32.xlu0 %v4001, 96
      %v4077 = vpop.permute.xlu0 %4076
      %4078 = vrot.lane.b32.xlu0 %v4004, 96
      %v4079 = vpop.permute.xlu0 %4078
      %4080 = vrot.lane.b32.xlu0 %v4006, 96
      %v4081 = vpop.permute.xlu0 %4080
      %4082 = vrot.lane.b32.xlu0 %v4009, 96
      %v4083 = vpop.permute.xlu0 %4082
      %4084 = vrot.lane.b32.xlu0 %v4011, 96
      %v4085 = vpop.permute.xlu0 %4084
      %4086 = vrot.lane.b32.xlu0 %v4014, 96
      %v4087 = vpop.permute.xlu0 %4086
      %4088 = vrot.lane.b32.xlu0 %v4016, 96
      %v4089 = vpop.permute.xlu0 %4088
      %4090 = vrot.lane.b32.xlu0 %v4019, 96
      %v4091 = vpop.permute.xlu0 %4090
      %4092 = vrot.lane.b32.xlu0 %v4021, 96
      %v4093 = vpop.permute.xlu0 %4092
      %4094 = vrot.lane.b32.xlu0 %v4024, 96
      %v4095 = vpop.permute.xlu0 %4094
      %4096 = vrot.lane.b32.xlu0 %v4026, 96
      %v4097 = vpop.permute.xlu0 %4096
      %4098 = vrot.lane.b32.xlu0 %v4029, 96
      %v4099 = vpop.permute.xlu0 %4098
      %4100 = vrot.lane.b32.xlu0 %v4031, 96
      %v4101 = vpop.permute.xlu0 %4100
      %4102 = vrot.lane.b32.xlu0 %v4034, 96
      %v4103 = vpop.permute.xlu0 %4102
      %4104 = vrot.lane.b32.xlu0 %v4036, 96
      %v4105 = vpop.permute.xlu0 %4104
      %4106 = vrot.lane.b32.xlu0 %v4039, 96
      %v4107 = vpop.permute.xlu0 %4106
      %4108 = vrot.lane.b32.xlu0 %v4041, 96
      %v4109 = vpop.permute.xlu0 %4108
      %4110 = vrot.lane.b32.xlu0 %v4044, 96
      %v4111 = vpop.permute.xlu0 %4110
      %4112 = vrot.lane.b32.xlu0 %v4046, 96
      %v4113 = vpop.permute.xlu0 %4112
      %4114 = vrot.lane.b32.xlu0 %v4049, 96
      %v4115 = vpop.permute.xlu0 %4114
      %4116 = vrot.lane.b32.xlu0 %v4051, 96
      %v4117 = vpop.permute.xlu0 %4116
      %4118 = vrot.lane.b32.xlu0 %v4054, 96
      %v4119 = vpop.permute.xlu0 %4118
      %4120 = vrot.lane.b32.xlu0 %v4056, 96
      %v4121 = vpop.permute.xlu0 %4120
      %4122 = vrot.lane.b32.xlu0 %v4059, 96
      %v4123 = vpop.permute.xlu0 %4122
      %4124 = vrot.lane.b32.xlu0 %v4061, 96
      %v4125 = vpop.permute.xlu0 %4124
      %v4158 = vrot.slane %v3886, 2
      %v4159 = vrot.slane %v3887, 2
      %v4160 = vsel %vm1138, %v4158, %v4159
      %v4161 = vrot.slane %v3888, 2
      %v4162 = vsel %vm1138, %v4159, %v4161
      %v4163 = vrot.slane %v3889, 2
      %v4164 = vrot.slane %v3890, 2
      %v4165 = vsel %vm1138, %v4163, %v4164
      %v4166 = vrot.slane %v3891, 2
      %v4167 = vsel %vm1138, %v4164, %v4166
      %v4168 = vrot.slane %v3892, 2
      %v4169 = vrot.slane %v3893, 2
      %v4170 = vsel %vm1138, %v4168, %v4169
      %v4171 = vrot.slane %v3894, 2
      %v4172 = vsel %vm1138, %v4169, %v4171
      %v4173 = vrot.slane %v3895, 2
      %v4174 = vrot.slane %v3896, 2
      %v4175 = vsel %vm1138, %v4173, %v4174
      %v4176 = vrot.slane %v3897, 2
      %v4177 = vsel %vm1138, %v4174, %v4176
      %v4178 = vrot.slane %v3898, 2
      %v4179 = vrot.slane %v3899, 2
      %v4180 = vsel %vm1138, %v4178, %v4179
      %v4181 = vrot.slane %v3900, 2
      %v4182 = vsel %vm1138, %v4179, %v4181
      %v4183 = vrot.slane %v3901, 2
      %v4184 = vrot.slane %v3902, 2
      %v4185 = vsel %vm1138, %v4183, %v4184
      %v4186 = vrot.slane %v3903, 2
      %v4187 = vsel %vm1138, %v4184, %v4186
      %v4188 = vrot.slane %v3904, 2
      %v4189 = vrot.slane %v3905, 2
      %v4190 = vsel %vm1138, %v4188, %v4189
      %v4191 = vrot.slane %v3906, 2
      %v4192 = vsel %vm1138, %v4189, %v4191
      %v4193 = vrot.slane %v3907, 2
      %v4194 = vrot.slane %v3908, 2
      %v4195 = vsel %vm1138, %v4193, %v4194
      %v4196 = vrot.slane %v3909, 2
      %v4197 = vsel %vm1138, %v4194, %v4196
      %v4198 = vrot.slane %v3910, 2
      %v4199 = vrot.slane %v3911, 2
      %v4200 = vsel %vm1138, %v4198, %v4199
      %v4201 = vrot.slane %v3912, 2
      %v4202 = vsel %vm1138, %v4199, %v4201
      %v4203 = vrot.slane %v3913, 2
      %v4204 = vrot.slane %v3914, 2
      %v4205 = vsel %vm1138, %v4203, %v4204
      %v4206 = vrot.slane %v3915, 2
      %v4207 = vsel %vm1138, %v4204, %v4206
      %v4208 = vrot.slane %v3916, 2
      %v4209 = vrot.slane %v3917, 2
      %v4210 = vsel %vm1138, %v4208, %v4209
      %v4211 = vrot.slane %v3918, 2
      %v4212 = vsel %vm1138, %v4209, %v4211
      %v4213 = vrot.slane %v3919, 2
      %v4214 = vrot.slane %v3920, 2
      %v4215 = vsel %vm1138, %v4213, %v4214
      %v4216 = vrot.slane %v3921, 2
      %v4217 = vsel %vm1138, %v4214, %v4216
      %v4218 = vrot.slane %v3922, 2
      %v4219 = vrot.slane %v3923, 2
      %v4220 = vsel %vm1138, %v4218, %v4219
      %v4221 = vrot.slane %v3924, 2
      %v4222 = vsel %vm1138, %v4219, %v4221
      %v4223 = vrot.slane %v3925, 2
      %v4224 = vrot.slane %v3926, 2
      %v4225 = vsel %vm1138, %v4223, %v4224
      %v4226 = vrot.slane %v3927, 2
      %v4227 = vsel %vm1138, %v4224, %v4226
      %v4228 = vrot.slane %v3928, 2
      %v4229 = vrot.slane %v3929, 2
      %v4230 = vsel %vm1138, %v4228, %v4229
      %v4231 = vrot.slane %v3930, 2
      %v4232 = vsel %vm1138, %v4229, %v4231
      %v4233 = vrot.slane %v3931, 2
      %v4234 = vrot.slane %v3932, 2
      %v4235 = vsel %vm1138, %v4233, %v4234
      %v4236 = vrot.slane %v3933, 2
      %v4237 = vsel %vm1138, %v4234, %v4236
      %4238 = vrot.lane.b32.xlu0 %v4160, 64
      %v4239 = vpop.permute.xlu0 %4238
      %4240 = vrot.lane.b32.xlu0 %v4162, 64
      %v4241 = vpop.permute.xlu0 %4240
      %4242 = vrot.lane.b32.xlu0 %v4165, 64
      %v4243 = vpop.permute.xlu0 %4242
      %4244 = vrot.lane.b32.xlu0 %v4167, 64
      %v4245 = vpop.permute.xlu0 %4244
      %4246 = vrot.lane.b32.xlu0 %v4170, 64
      %v4247 = vpop.permute.xlu0 %4246
      %4248 = vrot.lane.b32.xlu0 %v4172, 64
      %v4249 = vpop.permute.xlu0 %4248
      %4250 = vrot.lane.b32.xlu0 %v4175, 64
      %v4251 = vpop.permute.xlu0 %4250
      %4252 = vrot.lane.b32.xlu0 %v4177, 64
      %v4253 = vpop.permute.xlu0 %4252
      %4254 = vrot.lane.b32.xlu0 %v4180, 64
      %v4255 = vpop.permute.xlu0 %4254
      %4256 = vrot.lane.b32.xlu0 %v4182, 64
      %v4257 = vpop.permute.xlu0 %4256
      %4258 = vrot.lane.b32.xlu0 %v4185, 64
      %v4259 = vpop.permute.xlu0 %4258
      %4260 = vrot.lane.b32.xlu0 %v4187, 64
      %v4261 = vpop.permute.xlu0 %4260
      %4262 = vrot.lane.b32.xlu0 %v4190, 64
      %v4263 = vpop.permute.xlu0 %4262
      %4264 = vrot.lane.b32.xlu0 %v4192, 64
      %v4265 = vpop.permute.xlu0 %4264
      %4266 = vrot.lane.b32.xlu0 %v4195, 64
      %v4267 = vpop.permute.xlu0 %4266
      %4268 = vrot.lane.b32.xlu0 %v4197, 64
      %v4269 = vpop.permute.xlu0 %4268
      %4270 = vrot.lane.b32.xlu0 %v4200, 64
      %v4271 = vpop.permute.xlu0 %4270
      %4272 = vrot.lane.b32.xlu0 %v4202, 64
      %v4273 = vpop.permute.xlu0 %4272
      %4274 = vrot.lane.b32.xlu0 %v4205, 64
      %v4275 = vpop.permute.xlu0 %4274
      %4276 = vrot.lane.b32.xlu0 %v4207, 64
      %v4277 = vpop.permute.xlu0 %4276
      %4278 = vrot.lane.b32.xlu0 %v4210, 64
      %v4279 = vpop.permute.xlu0 %4278
      %4280 = vrot.lane.b32.xlu0 %v4212, 64
      %v4281 = vpop.permute.xlu0 %4280
      %4282 = vrot.lane.b32.xlu0 %v4215, 64
      %v4283 = vpop.permute.xlu0 %4282
      %4284 = vrot.lane.b32.xlu0 %v4217, 64
      %v4285 = vpop.permute.xlu0 %4284
      %4286 = vrot.lane.b32.xlu0 %v4220, 64
      %v4287 = vpop.permute.xlu0 %4286
      %4288 = vrot.lane.b32.xlu0 %v4222, 64
      %v4289 = vpop.permute.xlu0 %4288
      %4290 = vrot.lane.b32.xlu0 %v4225, 64
      %v4291 = vpop.permute.xlu0 %4290
      %4292 = vrot.lane.b32.xlu0 %v4227, 64
      %v4293 = vpop.permute.xlu0 %4292
      %4294 = vrot.lane.b32.xlu0 %v4230, 64
      %v4295 = vpop.permute.xlu0 %4294
      %4296 = vrot.lane.b32.xlu0 %v4232, 64
      %v4297 = vpop.permute.xlu0 %4296
      %4298 = vrot.lane.b32.xlu0 %v4235, 64
      %v4299 = vpop.permute.xlu0 %4298
      %4300 = vrot.lane.b32.xlu0 %v4237, 64
      %v4301 = vpop.permute.xlu0 %4300
      %v4334 = vsel %vm2670, %v3886, %v4063
      %v4335 = vsel %vm2670, %v3887, %v4065
      %v4336 = vsel %vm2670, %v3889, %v4067
      %v4337 = vsel %vm2670, %v3890, %v4069
      %v4338 = vsel %vm2670, %v3892, %v4071
      %v4339 = vsel %vm2670, %v3893, %v4073
      %v4340 = vsel %vm2670, %v3895, %v4075
      %v4341 = vsel %vm2670, %v3896, %v4077
      %v4342 = vsel %vm2670, %v3898, %v4079
      %v4343 = vsel %vm2670, %v3899, %v4081
      %v4344 = vsel %vm2670, %v3901, %v4083
      %v4345 = vsel %vm2670, %v3902, %v4085
      %v4346 = vsel %vm2670, %v3904, %v4087
      %v4347 = vsel %vm2670, %v3905, %v4089
      %v4348 = vsel %vm2670, %v3907, %v4091
      %v4349 = vsel %vm2670, %v3908, %v4093
      %v4350 = vsel %vm2670, %v3910, %v4095
      %v4351 = vsel %vm2670, %v3911, %v4097
      %v4352 = vsel %vm2670, %v3913, %v4099
      %v4353 = vsel %vm2670, %v3914, %v4101
      %v4354 = vsel %vm2670, %v3916, %v4103
      %v4355 = vsel %vm2670, %v3917, %v4105
      %v4356 = vsel %vm2670, %v3919, %v4107
      %v4357 = vsel %vm2670, %v3920, %v4109
      %v4358 = vsel %vm2670, %v3922, %v4111
      %v4359 = vsel %vm2670, %v3923, %v4113
      %v4360 = vsel %vm2670, %v3925, %v4115
      %v4361 = vsel %vm2670, %v3926, %v4117
      %v4362 = vsel %vm2670, %v3928, %v4119
      %v4363 = vsel %vm2670, %v3929, %v4121
      %v4364 = vsel %vm2670, %v3931, %v4123
      %v4365 = vsel %vm2670, %v3932, %v4125
      %v4366 = vsel %vm2221, %v4063, %v4239
      %v4367 = vsel %vm2221, %v4065, %v4241
      %v4368 = vsel %vm2221, %v4067, %v4243
      %v4369 = vsel %vm2221, %v4069, %v4245
      %v4370 = vsel %vm2221, %v4071, %v4247
      %v4371 = vsel %vm2221, %v4073, %v4249
      %v4372 = vsel %vm2221, %v4075, %v4251
      %v4373 = vsel %vm2221, %v4077, %v4253
      %v4374 = vsel %vm2221, %v4079, %v4255
      %v4375 = vsel %vm2221, %v4081, %v4257
      %v4376 = vsel %vm2221, %v4083, %v4259
      %v4377 = vsel %vm2221, %v4085, %v4261
      %v4378 = vsel %vm2221, %v4087, %v4263
      %v4379 = vsel %vm2221, %v4089, %v4265
      %v4380 = vsel %vm2221, %v4091, %v4267
      %v4381 = vsel %vm2221, %v4093, %v4269
      %v4382 = vsel %vm2221, %v4095, %v4271
      %v4383 = vsel %vm2221, %v4097, %v4273
      %v4384 = vsel %vm2221, %v4099, %v4275
      %v4385 = vsel %vm2221, %v4101, %v4277
      %v4386 = vsel %vm2221, %v4103, %v4279
      %v4387 = vsel %vm2221, %v4105, %v4281
      %v4388 = vsel %vm2221, %v4107, %v4283
      %v4389 = vsel %vm2221, %v4109, %v4285
      %v4390 = vsel %vm2221, %v4111, %v4287
      %v4391 = vsel %vm2221, %v4113, %v4289
      %v4392 = vsel %vm2221, %v4115, %v4291
      %v4393 = vsel %vm2221, %v4117, %v4293
      %v4394 = vsel %vm2221, %v4119, %v4295
      %v4395 = vsel %vm2221, %v4121, %v4297
      %v4396 = vsel %vm2221, %v4123, %v4299
      %v4397 = vsel %vm2221, %v4125, %v4301
      %v4398 = vpack.c.bf16 %v4335, %v4334
      %v4399 = vpack.c.bf16 %v4367, %v4366
      %v4400 = vpack.c.bf16 %v4241, %v4239
      %v4401 = vpack.c.bf16 %v4337, %v4336
      %v4402 = vpack.c.bf16 %v4369, %v4368
      %v4403 = vpack.c.bf16 %v4245, %v4243
      %v4404 = vpack.c.bf16 %v4339, %v4338
      %v4405 = vpack.c.bf16 %v4371, %v4370
      %v4406 = vpack.c.bf16 %v4249, %v4247
      %v4407 = vpack.c.bf16 %v4341, %v4340
      %v4408 = vpack.c.bf16 %v4373, %v4372
      %v4409 = vpack.c.bf16 %v4253, %v4251
      %v4410 = vpack.c.bf16 %v4343, %v4342
      %v4411 = vpack.c.bf16 %v4375, %v4374
      %v4412 = vpack.c.bf16 %v4257, %v4255
      %v4413 = vpack.c.bf16 %v4345, %v4344
      %v4414 = vpack.c.bf16 %v4377, %v4376
      %v4415 = vpack.c.bf16 %v4261, %v4259
      %v4416 = vpack.c.bf16 %v4347, %v4346
      %v4417 = vpack.c.bf16 %v4379, %v4378
      %v4418 = vpack.c.bf16 %v4265, %v4263
      %v4419 = vpack.c.bf16 %v4349, %v4348
      %v4420 = vpack.c.bf16 %v4381, %v4380
      %v4421 = vpack.c.bf16 %v4269, %v4267
      %v4422 = vpack.c.bf16 %v4351, %v4350
      %v4423 = vpack.c.bf16 %v4383, %v4382
      %v4424 = vpack.c.bf16 %v4273, %v4271
      %v4425 = vpack.c.bf16 %v4353, %v4352
      %v4426 = vpack.c.bf16 %v4385, %v4384
      %v4427 = vpack.c.bf16 %v4277, %v4275
      %v4428 = vpack.c.bf16 %v4355, %v4354
      %v4429 = vpack.c.bf16 %v4387, %v4386
      %v4430 = vpack.c.bf16 %v4281, %v4279
      %v4431 = vpack.c.bf16 %v4357, %v4356
      %v4432 = vpack.c.bf16 %v4389, %v4388
      %v4433 = vpack.c.bf16 %v4285, %v4283
      %v4434 = vpack.c.bf16 %v4359, %v4358
      %v4435 = vpack.c.bf16 %v4391, %v4390
      %v4436 = vpack.c.bf16 %v4289, %v4287
      %v4437 = vpack.c.bf16 %v4361, %v4360
      %v4438 = vpack.c.bf16 %v4393, %v4392
      %v4439 = vpack.c.bf16 %v4293, %v4291
      %v4440 = vpack.c.bf16 %v4363, %v4362
      %v4441 = vpack.c.bf16 %v4395, %v4394
      %v4442 = vpack.c.bf16 %v4297, %v4295
      %v4443 = vpack.c.bf16 %v4365, %v4364
      %v4444 = vpack.c.bf16 %v4397, %v4396
      %v4445 = vpack.c.bf16 %v4301, %v4299
      %v4446 = vld [vmem:[%s5] sm:$0x3f]
      %v4447 = vld [vmem:[%s6] sm:$0xf]
      %4449 = vset.pattern.permute.xlu0 0
      %4450 = vperm.xlu0 %4449, %v4447
      %v4451 = vpop.permute.xlu0 %4450
      %v4454 = vcombine.high %v4446, %v4446
      %v4456 = vunpack.c.l.s4 1983009808
      %v4457 = vunpack.c.0.s8 %v4456
      %v4458 = vlaneseq
      %v4459 = vshrl.u32 %v4458, 7
      %v4460 = vsub.s32 %v4457, %v4459
      %v4461 = vrot.slane %v4446, %v4460
      %v4463 = vunpack.c.l.s4 1983009808
      %v4464 = vunpack.c.0.s8 %v4463
      %v4465 = vlaneseq
      %v4466 = vshrl.u32 %v4465, 7
      %v4467 = vsub.s32 %v4464, %v4466
      %v4468 = vrot.slane %v4454, %v4467
      %v4469 = vcombine.high %v4461, %v4461
      %v4473 = vsel %vm2172, %v4468, 0
      %v4476 = vsel %vm2172, %v4400, 0
      %v4479 = vsel %vm2172, %v4403, 0
      %v4482 = vsel %vm2172, %v4406, 0
      %v4485 = vsel %vm2172, %v4409, 0
      %v4488 = vsel %vm2172, %v4412, 0
      %v4491 = vsel %vm2172, %v4415, 0
      %v4494 = vsel %vm2172, %v4418, 0
      %v4497 = vsel %vm2172, %v4421, 0
      %v4500 = vsel %vm2172, %v4424, 0
      %v4503 = vsel %vm2172, %v4427, 0
      %v4506 = vsel %vm2172, %v4430, 0
      %v4509 = vsel %vm2172, %v4433, 0
      %v4512 = vsel %vm2172, %v4436, 0
      %v4515 = vsel %vm2172, %v4439, 0
      %v4518 = vsel %vm2172, %v4442, 0
      %v4521 = vsel %vm2172, %v4445, 0
      %4523 = vmatprep.subr.bf16.mxu0 %v4399
      %4524 = vmatpush1.bf16.xpose.msra.mxu0 %v4398
      %4525 = vmatprep.subr.bf16.mxu0 %v4402
      %4526 = vmatpush1.bf16.xpose.msra.mxu0 %v4401
      %4527 = vmatprep.subr.bf16.mxu0 %v4405
      %4528 = vmatpush1.bf16.xpose.msra.mxu0 %v4404
      %4529 = vmatprep.subr.bf16.mxu0 %v4408
      %4530 = vmatpush1.bf16.xpose.msra.mxu0 %v4407
      %4531 = vmatprep.subr.bf16.mxu0 %v4411
      %4532 = vmatpush1.bf16.xpose.msra.mxu0 %v4410
      %4533 = vmatprep.subr.bf16.mxu0 %v4414
      %4534 = vmatpush1.bf16.xpose.msra.mxu0 %v4413
      %4535 = vmatprep.subr.bf16.mxu0 %v4417
      %4536 = vmatpush1.bf16.xpose.msra.mxu0 %v4416
      %4537 = vmatprep.subr.bf16.mxu0 %v4420
      %4538 = vmatpush1.bf16.xpose.msra.mxu0 %v4419
      %4539 = vmatprep.subr.bf16.mxu0 %v4423
      %4540 = vmatpush1.bf16.xpose.msra.mxu0 %v4422
      %4541 = vmatprep.subr.bf16.mxu0 %v4426
      %4542 = vmatpush1.bf16.xpose.msra.mxu0 %v4425
      %4543 = vmatprep.subr.bf16.mxu0 %v4429
      %4544 = vmatpush1.bf16.xpose.msra.mxu0 %v4428
      %4545 = vmatprep.subr.bf16.mxu0 %v4432
      %4546 = vmatpush1.bf16.xpose.msra.mxu0 %v4431
      %4547 = vmatprep.subr.bf16.mxu0 %v4435
      %4548 = vmatpush1.bf16.xpose.msra.mxu0 %v4434
      %4549 = vmatprep.subr.bf16.mxu0 %v4438
      %4550 = vmatpush1.bf16.xpose.msra.mxu0 %v4437
      %4551 = vmatprep.subr.bf16.mxu0 %v4441
      %4552 = vmatpush1.bf16.xpose.msra.mxu0 %v4440
      %4553 = vmatprep.subr.bf16.mxu0 %v4444
      %4554 = vmatpush1.bf16.xpose.msra.mxu0 %v4443
      %4555 = vmatprep.mubr.bf16.mxu0 %v4469
      %4556 = vmatmul.mubr.bf16.gmra.mrb[0].mxu0 %v4461
      %v4557 = vpop.f32.mrb[0].mxu0
      %v4558 = vadd.f32 %v4451, %v4557
      %v4559 = vpop.f32.mrb[0].mxu0
      %v4560 = vadd.f32 %v4451, %v4559
      %v4561 = vpop.f32.mrb[0].mxu0
      %v4562 = vpop.f32.mrb[0].mxu0
      %4563 = vdwg.mxu0
      %4564 = vmatprep.subr.bf16.mxu0 0
      %4565 = vmatpush1.bf16.xpose.msra.mxu0 %v4476
      %4566 = vmatprep.subr.bf16.mxu0 0
      %4567 = vmatpush1.bf16.xpose.msra.mxu0 %v4479
      %4568 = vmatprep.subr.bf16.mxu0 0
      %4569 = vmatpush1.bf16.xpose.msra.mxu0 %v4482
      %4570 = vmatprep.subr.bf16.mxu0 0
      %4571 = vmatpush1.bf16.xpose.msra.mxu0 %v4485
      %4572 = vmatprep.subr.bf16.mxu0 0
      %4573 = vmatpush1.bf16.xpose.msra.mxu0 %v4488
      %4574 = vmatprep.subr.bf16.mxu0 0
      %4575 = vmatpush1.bf16.xpose.msra.mxu0 %v4491
      %4576 = vmatprep.subr.bf16.mxu0 0
      %4577 = vmatpush1.bf16.xpose.msra.mxu0 %v4494
      %4578 = vmatprep.subr.bf16.mxu0 0
      %4579 = vmatpush1.bf16.xpose.msra.mxu0 %v4497
      %4580 = vmatprep.subr.bf16.mxu0 0
      %4581 = vmatpush1.bf16.xpose.msra.mxu0 %v4500
      %4582 = vmatprep.subr.bf16.mxu0 0
      %4583 = vmatpush1.bf16.xpose.msra.mxu0 %v4503
      %4584 = vmatprep.subr.bf16.mxu0 0
      %4585 = vmatpush1.bf16.xpose.msra.mxu0 %v4506
      %4586 = vmatprep.subr.bf16.mxu0 0
      %4587 = vmatpush1.bf16.xpose.msra.mxu0 %v4509
      %4588 = vmatprep.subr.bf16.mxu0 0
      %4589 = vmatpush1.bf16.xpose.msra.mxu0 %v4512
      %4590 = vmatprep.subr.bf16.mxu0 0
      %4591 = vmatpush1.bf16.xpose.msra.mxu0 %v4515
      %4592 = vmatprep.subr.bf16.mxu0 0
      %4593 = vmatpush1.bf16.xpose.msra.mxu0 %v4518
      %4594 = vmatprep.subr.bf16.mxu0 0
      %4595 = vmatpush1.bf16.xpose.msra.mxu0 %v4521
      %4596 = vmatprep.mubr.bf16.mxu0 0
      %4597 = vmatmul.mubr.bf16.gmra.mrb[0].mxu0 %v4473
      %v4598 = vpop.f32.mrb[0].mxu0
      %v4599 = vadd.f32 %v4558, %v4598
      %v4600 = vpop.f32.mrb[0].mxu0
      %v4601 = vadd.f32 %v4560, %v4600
      %v4602 = vpop.f32.mrb[0].mxu0
      %v4603 = vpop.f32.mrb[0].mxu0
      %4604 = vdwg.mxu0
      %v4607 = vcombine.low %v4599, %v4601
      %4609 = vst [vmem:[%s278] sm:$0xff] %v4607
      %p4610 = scmp.lt.s32.totalorder %s18, 1
      %s4611 = scalar_select %p4610, %s18, 1
      %s4612 = smul.addr %s4611, 2
      %s4613 = smul.addr %s4612, 4
      %s4614 = scalar_lea.vmem %s7, %s4613
      // Predicated region
      $region49: #{cnn_forward.1} parent=47 // pred_check
        %p4615 = pneg %p188
      $region50: #{cnn_forward.1} parent=47 // pred_check_branch
        %4617 = sbr.rel (%p4615) target = $region52
      $region51: #{cnn_forward.1} parent=47 // pred_region
        _
      $region52: #{cnn_forward.1} parent=47 // pred_fallthru
        _
    $region48: #{cnn_forward.1} parent=5 // pred_fallthru
      _
    %p4618 = scmp.le.s32.totalorder 2, %s13
    // Predicated region
    $region53: #{cnn_forward.1} parent=5 // pred_check
      %p4619 = pneg %p4618
    $region54: #{cnn_forward.1} parent=5 // pred_check_branch
      %4621 = sbr.rel (%p4619) target = $region56
    $region55: #{cnn_forward.1} parent=5 // pred_region
      %s4622 = ssub.s32 %s13, 2
      // Predicated region
      $region57: #{cnn_forward.1} parent=55 // pred_check
        %p4623 = pneg %p194
      $region58: #{cnn_forward.1} parent=55 // pred_check_branch
        %4625 = sbr.rel (%p4623) target = $region60
      $region59: #{cnn_forward.1} parent=55 // pred_region
        %p4626 = scmp.lt.s32.totalorder %s19, 1
        %s4627 = scalar_select %p4626, %s19, 1
        %s4628 = smul.addr %s4627, 2
        %s4629 = smul.addr %s4628, 4
        %s4630 = scalar_lea.vmem %s7, %s4629
      $region60: #{cnn_forward.1} parent=55 // pred_fallthru
        _
    $region56: #{cnn_forward.1} parent=5 // pred_fallthru
      _
  $region6: #{cnn_forward.1} parent=0 // loop_footer
    %s17 = sadd.s32 1, %s13
  $region7: #{cnn_forward.1} parent=0 // loop_footer_branch
    %12 = sbr.rel target = $region3
  $region8: #{cnn_forward.1} parent=0 // loop_exit
    _

</llo_original>
